<compile_context>
chip_gen: v7x
topology: tpu7x:2x2x1
jax: 0.10.0
libtpu: 0.0.40
codegen_flags: <defaults>
</compile_context>

<pallas_src>
import functools

import numpy as np
import jax
import jax.numpy as jnp
from jax import lax
from jax.experimental import pallas as pl
from jax.experimental.pallas import tpu as pltpu


# -----------------------------------------------------------------------------
# Fused forward kernel (one batch tile per grid step): 3 conv blocks + Linear.
# -----------------------------------------------------------------------------
def _disc_fwd_kernel(col1_ref, w1_ref, b1_ref, s1_ref, t1_ref,
                     w2_ref, b2_ref, s2_ref, t2_ref,
                     w3_ref, b3_ref, advw_ref, advb_ref,
                     h1_ref, h2_ref, h3_ref, v_ref,
                     a1_pad, a2_pad, col2, col3,
                     *, Bt, C, K1, OH1, OW1, OH2, OW2, OH3, OW3, PADL, neg_slope):
    f32 = jnp.float32

    # ---- Block 1: pre-im2col'd input -> one MXU matmul (Bt*OH1*OW1, K1) @ (K1, C) ---
    col1 = col1_ref[...].reshape(Bt * OH1 * OW1, K1)
    y1 = jnp.dot(col1, w1_ref[...], preferred_element_type=f32)
    y1 = y1 + b1_ref[...]
    y1 = jnp.maximum(y1, neg_slope * y1)                 # LeakyReLU(0.2): mul + max
    # Dropout2d(0.25): identity at inference.
    y1 = y1 * s1_ref[...] + t1_ref[...]                  # folded BatchNorm2d(eps=0.8)
    h1_ref[...] = y1.reshape(Bt, OH1 * OW1, C)           # lane/sublane-dense slab

    # Stage for block 2 at sublane-aligned interior offset PADL.  Zero ONLY the halo
    # that block-2 taps can read (top pad row 0, left pad column block); right/bottom
    # pads are never read by a stride-2 3x3 conv on even extents.
    a1_pad[:, 0:1, :, :] = jnp.zeros((Bt, 1, PADL + OW1, C), f32)
    a1_pad[:, :, 0:PADL, :] = jnp.zeros((Bt, OH1 + 2, PADL, C), f32)
    a1_pad[:, 1:1 + OH1, PADL:PADL + OW1, :] = y1.reshape(Bt, OH1, OW1, C)

    # ---- Block 2: im2col into ONE (Bt*OH2*OW2, 9*C) @ (9*C, C) MXU matmul -----------
    M2 = Bt * OH2 * OW2
    for kh in range(3):
        for kw in range(3):
            t = kh * 3 + kw
            patch = a1_pad[:, pl.ds(kh, OH2, stride=2),
                           pl.ds(PADL - 1 + kw, OW2, stride=2), :]
            col2[:, t * C:(t + 1) * C] = patch.reshape(M2, C)   # 128-aligned lane slice
    y2 = jnp.dot(col2[...], w2_ref[...], preferred_element_type=f32)
    y2 = y2 + b2_ref[...]
    y2 = jnp.maximum(y2, neg_slope * y2)
    y2 = y2 * s2_ref[...] + t2_ref[...]                  # folded BatchNorm2d
    h2_ref[...] = y2.reshape(Bt, OH2 * OW2, C)

    a2_pad[:, 0:1, :, :] = jnp.zeros((Bt, 1, 2 * PADL, C), f32)
    a2_pad[:, :, 0:PADL, :] = jnp.zeros((Bt, OH2 + 2, PADL, C), f32)
    a2_pad[:, 1:1 + OH2, PADL:PADL + OW2, :] = y2.reshape(Bt, OH2, OW2, C)

    # ---- Block 3: im2col matmul, no BatchNorm ----------------------------------------
    M3 = Bt * OH3 * OW3
    for kh in range(3):
        for kw in range(3):
            t = kh * 3 + kw
            patch = a2_pad[:, pl.ds(kh, OH3, stride=2),
                           pl.ds(PADL - 1 + kw, OW3, stride=2), :]
            col3[:, t * C:(t + 1) * C] = patch.reshape(M3, C)
    y3 = jnp.dot(col3[...], w3_ref[...], preferred_element_type=f32)
    y3 = y3 + b3_ref[...]
    y3 = jnp.maximum(y3, neg_slope * y3)
    h3_ref[...] = y3.reshape(Bt, OH3 * OW3, C)

    # ---- adv_layer: Linear(C*OH3*OW3 -> 1), fused VPU multiply + reduce --------------
    # advw_ref is pre-permuted to (OH3*OW3, C) so the contraction matches PyTorch's
    # NCHW .view(B, -1) flatten order.
    prod = y3.reshape(Bt, OH3 * OW3, C) * advw_ref[...]
    v = jnp.sum(prod, axis=2)                            # (Bt, H3*W3)
    v_ref[...] = jnp.sum(v, axis=1, keepdims=True) + advb_ref[...]


# -----------------------------------------------------------------------------
# Public wrapper (NCHW in / NCHW hiddens out) and pure-JAX reference.
# -----------------------------------------------------------------------------
def _pick_batch_tile(B, max_tile=16):
    # Largest divisor of B that is <= max_tile and keeps every block (8,128)-legal
    # (either the whole batch or a multiple of 8).  Fallback: whole batch.
    for d in range(min(B, max_tile), 0, -1):
        if B % d == 0 and (d == B or d % 8 == 0):
            return d
    return B


def single_window_disc_forward(x_nchw, params, *, max_batch_tile=16):
    """x: [B, C, T, n_bins] (NCHW). Returns (validity [B, 1], h: list of NCHW hiddens)."""
    B, _, H, W = x_nchw.shape
    (w1, b1, s1, t1), (w2, b2, s2, t2), (w3, b3, _, _) = params["blocks"]
    C = w1.shape[-1]
    OH1, OW1 = H // 2, W // 2
    OH2, OW2 = OH1 // 2, OW1 // 2
    OH3, OW3 = OH2 // 2, OW2 // 2
    PADL = 8                        # sublane-aligned left staging offset
    K1 = 16                         # block-1 im2col K (9 taps zero-padded to 16)

    Bt = _pick_batch_tile(B, max_batch_tile)
    grid = (B // Bt,)

    # NHWC + one-time pad, then block-1 im2col in the wrapper (Cin=1) so the kernel
    # gets a lane-friendly (B, OH1*OW1, K1) matrix instead of a 1-lane-wide image.
    x = jnp.transpose(x_nchw, (0, 2, 3, 1))                       # (B, H, W, 1)
    xpad = jnp.pad(x, ((0, 0), (1, 1), (1, 1), (0, 0)))
    taps = [xpad[:, kh:kh + 2 * OH1:2, kw:kw + 2 * OW1:2, 0]
            for kh in range(3) for kw in range(3)]                # 9 x (B, OH1, OW1)
    col1 = jnp.stack(taps, axis=-1)                               # (B, OH1, OW1, 9)
    col1 = jnp.pad(col1, ((0, 0), (0, 0), (0, 0), (0, K1 - 9)))
    col1 = col1.reshape(B, OH1 * OW1, K1)
    w1p = jnp.pad(w1.reshape(9, C), ((0, K1 - 9), (0, 0)))        # (K1, C)

    kernel = functools.partial(
        _disc_fwd_kernel, Bt=Bt, C=C, K1=K1, OH1=OH1, OW1=OW1, OH2=OH2, OW2=OW2,
        OH3=OH3, OW3=OW3, PADL=PADL, neg_slope=0.2)

    c2 = lambda b: (0, 0)                                         # VMEM-resident weights
    in_specs = [
        pl.BlockSpec((Bt, OH1 * OW1, K1), lambda b: (b, 0, 0)),   # col1 (batch-tiled)
        pl.BlockSpec((K1, C), c2),                                # w1
        pl.BlockSpec((1, C), c2), pl.BlockSpec((1, C), c2), pl.BlockSpec((1, C), c2),
        pl.BlockSpec((9 * C, C), c2),                             # w2
        pl.BlockSpec((1, C), c2), pl.BlockSpec((1, C), c2), pl.BlockSpec((1, C), c2),
        pl.BlockSpec((9 * C, C), c2),                             # w3
        pl.BlockSpec((1, C), c2),                                 # b3
        pl.BlockSpec((OH3 * OW3, C), c2),                         # adv_w (H3*W3, C)
        pl.BlockSpec((1, 1), c2),                                 # adv_b
    ]
    out_specs = [
        pl.BlockSpec((Bt, OH1 * OW1, C), lambda b: (b, 0, 0)),
        pl.BlockSpec((Bt, OH2 * OW2, C), lambda b: (b, 0, 0)),
        pl.BlockSpec((Bt, OH3 * OW3, C), lambda b: (b, 0, 0)),
        pl.BlockSpec((Bt, 1), lambda b: (b, 0)),
    ]
    out_shapes = (
        jax.ShapeDtypeStruct((B, OH1 * OW1, C), jnp.float32),     # h1 slab
        jax.ShapeDtypeStruct((B, OH2 * OW2, C), jnp.float32),     # h2 slab
        jax.ShapeDtypeStruct((B, OH3 * OW3, C), jnp.float32),     # h3 slab
        jax.ShapeDtypeStruct((B, 1), jnp.float32),                # validity
    )
    scratch = [
        pltpu.VMEM((Bt, OH1 + 2, PADL + OW1, C), jnp.float32),    # padded block-1 act (16 wide)
        pltpu.VMEM((Bt, OH2 + 2, 2 * PADL, C), jnp.float32),      # padded block-2 act (16 wide)
        pltpu.VMEM((Bt * OH2 * OW2, 9 * C), jnp.float32),         # block-2 im2col
        pltpu.VMEM((Bt * OH3 * OW3, 9 * C), jnp.float32),         # block-3 im2col
    ]

    h1s, h2s, h3s, validity = pl.pallas_call(
        kernel,
        out_shape=out_shapes,
        grid_spec=pltpu.PrefetchScalarGridSpec(
            num_scalar_prefetch=0,
            grid=grid,
            in_specs=in_specs,
            out_specs=out_specs,
            scratch_shapes=scratch),
        compiler_params=pltpu.CompilerParams(
            dimension_semantics=("parallel",),
            vmem_limit_bytes=32 * 1024 * 1024),
    )(
        col1,
        w1p, b1.reshape(1, C), s1.reshape(1, C), t1.reshape(1, C),
        w2.reshape(9 * C, C), b2.reshape(1, C), s2.reshape(1, C), t2.reshape(1, C),
        w3.reshape(9 * C, C), b3.reshape(1, C),
        params["adv_w"].reshape(C, OH3 * OW3).T, params["adv_b"].reshape(1, 1),
    )
    h1 = jnp.transpose(h1s.reshape(B, OH1, OW1, C), (0, 3, 1, 2))
    h2 = jnp.transpose(h2s.reshape(B, OH2, OW2, C), (0, 3, 1, 2))
    h3 = jnp.transpose(h3s.reshape(B, OH3, OW3, C), (0, 3, 1, 2))
    return validity, [h1, h2, h3]


def ref_forward(x_nchw, params):
    x = jnp.transpose(x_nchw, (0, 2, 3, 1))
    h = []
    for (w, b, scale, shift) in params["blocks"]:
        y = lax.conv_general_dilated(x, w, (2, 2), ((1, 1), (1, 1)),
                                     dimension_numbers=("NHWC", "HWIO", "NHWC"))
        y = y + b[None, None, None, :]
        y = jnp.where(y >= 0.0, y, 0.2 * y)
        y = y * scale[None, None, None, :] + shift[None, None, None, :]
        x = y
        h.append(x)
    flat = jnp.transpose(x, (0, 3, 1, 2)).reshape(x.shape[0], -1)
    validity = flat @ params["adv_w"] + params["adv_b"][None, :]
    h = [jnp.transpose(hh, (0, 3, 1, 2)) for hh in h]
    return validity, h


def init_params(key, c_in, hidden, feat_in, bn_eps=0.8):
    keys = jax.random.split(key, 20)
    blocks = []
    cins = [c_in, hidden, hidden]
    for i in range(3):
        cin = cins[i]
        w = jax.random.normal(keys[4 * i + 0], (3, 3, cin, hidden), jnp.float32) / np.sqrt(9.0 * cin)
        b = 0.05 * jax.random.normal(keys[4 * i + 1], (hidden,), jnp.float32)
        if i < 2:
            gamma = 1.0 + 0.1 * jax.random.normal(keys[4 * i + 2], (hidden,), jnp.float32)
            beta = 0.1 * jax.random.normal(keys[4 * i + 3], (hidden,), jnp.float32)
            run_mean = 0.1 * jax.random.normal(keys[12 + i], (hidden,), jnp.float32)
            run_var = 1.0 + 0.1 * jnp.abs(jax.random.normal(keys[15 + i], (hidden,), jnp.float32))
            scale = gamma / jnp.sqrt(run_var + bn_eps)      # eps = 0.8 per nn.BatchNorm2d(hidden, 0.8)
            shift = beta - run_mean * scale
        else:                                               # third block: no BatchNorm
            scale = jnp.ones((hidden,), jnp.float32)
            shift = jnp.zeros((hidden,), jnp.float32)
        blocks.append((w, b, scale, shift))
    adv_w = jax.random.normal(keys[18], (feat_in, 1), jnp.float32) / np.sqrt(feat_in)
    adv_b = 0.05 * jax.random.normal(keys[19], (1,), jnp.float32)
    return {"blocks": blocks, "adv_w": adv_w, "adv_b": adv_b}


if __name__ == "__main__":
    # config: time_length=16, freq_length=16, c_in=1, hidden_size=128 (module default), batch=2
    B, C_IN, T, NBINS, HIDDEN = 2, 1, 16, 16, 128
    ds = (T // 2 ** 3, (NBINS + 7) // 2 ** 3)               # (2, 2)
    feat_in = HIDDEN * ds[0] * ds[1]                        # 512

    key = jax.random.PRNGKey(0)
    kx, kp = jax.random.split(key)
    x = jax.random.normal(kx, (B, C_IN, T, NBINS), jnp.float32)
    params = init_params(kp, C_IN, HIDDEN, feat_in)

    validity, h = single_window_disc_forward(x, params)
    validity = jax.block_until_ready(validity)
    h = [jax.block_until_ready(hh) for hh in h]

    validity_ref, h_ref = ref_forward(x, params)
    assert validity.shape == (B, 1)
    assert [hh.shape for hh in h] == [(B, HIDDEN, 8, 8), (B, HIDDEN, 4, 4), (B, HIDDEN, 2, 2)]
    for a, r in zip(h, h_ref):
        np.testing.assert_allclose(np.asarray(a), np.asarray(r), rtol=1e-4, atol=2e-4)
    np.testing.assert_allclose(np.asarray(validity), np.asarray(validity_ref), rtol=1e-4, atol=2e-4)

    print("KERNEL_OK")
</pallas_src>

<mosaic_0001>
module attributes {stable_mosaic.version = 11 : i64} {
  func.func @_disc_fwd_kernel(%arg0: i32, %arg1: memref<2x64x16xf32, #tpu.memory_space<vmem>>, %arg2: memref<16x128xf32, #tpu.memory_space<vmem>>, %arg3: memref<1x128xf32, #tpu.memory_space<vmem>>, %arg4: memref<1x128xf32, #tpu.memory_space<vmem>>, %arg5: memref<1x128xf32, #tpu.memory_space<vmem>>, %arg6: memref<1152x128xf32, #tpu.memory_space<vmem>>, %arg7: memref<1x128xf32, #tpu.memory_space<vmem>>, %arg8: memref<1x128xf32, #tpu.memory_space<vmem>>, %arg9: memref<1x128xf32, #tpu.memory_space<vmem>>, %arg10: memref<1152x128xf32, #tpu.memory_space<vmem>>, %arg11: memref<1x128xf32, #tpu.memory_space<vmem>>, %arg12: memref<4x128xf32, #tpu.memory_space<vmem>>, %arg13: memref<1x1xf32, #tpu.memory_space<vmem>>, %arg14: memref<2x64x128xf32, #tpu.memory_space<vmem>>, %arg15: memref<2x16x128xf32, #tpu.memory_space<vmem>>, %arg16: memref<2x4x128xf32, #tpu.memory_space<vmem>>, %arg17: memref<2x1xf32, #tpu.memory_space<vmem>>, %arg18: memref<2x10x16x128xf32, #tpu.memory_space<vmem>>, %arg19: memref<2x6x16x128xf32, #tpu.memory_space<vmem>>, %arg20: memref<32x1152xf32, #tpu.memory_space<vmem>>, %arg21: memref<8x1152xf32, #tpu.memory_space<vmem>>) attributes {dimension_semantics = [#tpu.dimension_semantics<parallel>], iteration_bounds = array<i64: 1>, scalar_prefetch = 0 : i64, scratch_operands = 4 : i64, tpu.core_type = #tpu.core_type<tc>, window_params = [{transform_indices = @transform_0, window_bounds = array<i64: 2, 64, 16>}, {pipeline_mode = #tpu.pipeline_mode<synchronous>, transform_indices = @transform_1, window_bounds = array<i64: 16, 128>}, {pipeline_mode = #tpu.pipeline_mode<synchronous>, transform_indices = @transform_2, window_bounds = array<i64: 1, 128>}, {pipeline_mode = #tpu.pipeline_mode<synchronous>, transform_indices = @transform_3, window_bounds = array<i64: 1, 128>}, {pipeline_mode = #tpu.pipeline_mode<synchronous>, transform_indices = @transform_4, window_bounds = array<i64: 1, 128>}, {pipeline_mode = #tpu.pipeline_mode<synchronous>, transform_indices = @transform_5, window_bounds = array<i64: 1152, 128>}, {pipeline_mode = #tpu.pipeline_mode<synchronous>, transform_indices = @transform_6, window_bounds = array<i64: 1, 128>}, {pipeline_mode = #tpu.pipeline_mode<synchronous>, transform_indices = @transform_7, window_bounds = array<i64: 1, 128>}, {pipeline_mode = #tpu.pipeline_mode<synchronous>, transform_indices = @transform_8, window_bounds = array<i64: 1, 128>}, {pipeline_mode = #tpu.pipeline_mode<synchronous>, transform_indices = @transform_9, window_bounds = array<i64: 1152, 128>}, {pipeline_mode = #tpu.pipeline_mode<synchronous>, transform_indices = @transform_10, window_bounds = array<i64: 1, 128>}, {pipeline_mode = #tpu.pipeline_mode<synchronous>, transform_indices = @transform_11, window_bounds = array<i64: 4, 128>}, {pipeline_mode = #tpu.pipeline_mode<synchronous>, transform_indices = @transform_12, window_bounds = array<i64: 1, 1>}, {transform_indices = @transform_13, window_bounds = array<i64: 2, 64, 128>}, {transform_indices = @transform_14, window_bounds = array<i64: 2, 16, 128>}, {transform_indices = @transform_15, window_bounds = array<i64: 2, 4, 128>}, {transform_indices = @transform_16, window_bounds = array<i64: 2, 1>}]} {
    %c0 = arith.constant 0 : index
    %c0_0 = arith.constant 0 : index
    %c0_1 = arith.constant 0 : index
    %0 = vector.load %arg1[%c0, %c0_0, %c0_1] : memref<2x64x16xf32, #tpu.memory_space<vmem>>, vector<2x64x16xf32>
    %1 = vector.shape_cast %0 : vector<2x64x16xf32> to vector<128x16xf32>
    %c0_2 = arith.constant 0 : index
    %c0_3 = arith.constant 0 : index
    %2 = vector.load %arg2[%c0_2, %c0_3] : memref<16x128xf32, #tpu.memory_space<vmem>>, vector<16x128xf32>
    %cst = arith.constant dense<0.000000e+00> : vector<128x128xf32>
    %3 = tpu.matmul %1, %2, %cst {dimension_numbers = #tpu.dot_dimension_numbers<[1], [0], [0], [1], [0, 0, 1, 1], [], []>} : vector<128x16xf32>, vector<16x128xf32>, vector<128x128xf32> -> vector<128x128xf32>
    %c0_4 = arith.constant 0 : index
    %c0_5 = arith.constant 0 : index
    %4 = vector.load %arg3[%c0_4, %c0_5] : memref<1x128xf32, #tpu.memory_space<vmem>>, vector<1x128xf32>
    %5 = vector.broadcast %4 : vector<1x128xf32> to vector<128x128xf32>
    %6 = arith.addf %3, %5 : vector<128x128xf32>
    %cst_6 = arith.constant 2.000000e-01 : f32
    %7 = vector.broadcast %cst_6 : f32 to vector<128x128xf32>
    %8 = arith.mulf %7, %6 : vector<128x128xf32>
    %9 = arith.maximumf %6, %8 : vector<128x128xf32>
    %c0_7 = arith.constant 0 : index
    %c0_8 = arith.constant 0 : index
    %10 = vector.load %arg4[%c0_7, %c0_8] : memref<1x128xf32, #tpu.memory_space<vmem>>, vector<1x128xf32>
    %11 = vector.broadcast %10 : vector<1x128xf32> to vector<128x128xf32>
    %12 = arith.mulf %9, %11 : vector<128x128xf32>
    %c0_9 = arith.constant 0 : index
    %c0_10 = arith.constant 0 : index
    %13 = vector.load %arg5[%c0_9, %c0_10] : memref<1x128xf32, #tpu.memory_space<vmem>>, vector<1x128xf32>
    %14 = vector.broadcast %13 : vector<1x128xf32> to vector<128x128xf32>
    %15 = arith.addf %12, %14 : vector<128x128xf32>
    %16 = vector.shape_cast %15 : vector<128x128xf32> to vector<2x64x128xf32>
    %c0_11 = arith.constant 0 : index
    %c0_12 = arith.constant 0 : index
    %c0_13 = arith.constant 0 : index
    %17 = vector.load %arg14[%c0_11, %c0_12, %c0_13] : memref<2x64x128xf32, #tpu.memory_space<vmem>>, vector<2x64x128xf32>
    tpu.vector_store %arg14[%c0_11, %c0_12, %c0_13], %16 {strides = array<i32>} : memref<2x64x128xf32, #tpu.memory_space<vmem>>, vector<2x64x128xf32>,
    %cst_14 = arith.constant 0.000000e+00 : f32
    %18 = vector.broadcast %cst_14 : f32 to vector<2x1x16x128xf32>
    %c0_15 = arith.constant 0 : index
    %c0_16 = arith.constant 0 : index
    %c0_17 = arith.constant 0 : index
    %c0_18 = arith.constant 0 : index
    %19 = vector.load %arg18[%c0_15, %c0_16, %c0_17, %c0_18] : memref<2x10x16x128xf32, #tpu.memory_space<vmem>>, vector<2x1x16x128xf32>
    tpu.vector_store %arg18[%c0_15, %c0_16, %c0_17, %c0_18], %18 {strides = array<i32>} : memref<2x10x16x128xf32, #tpu.memory_space<vmem>>, vector<2x1x16x128xf32>,
    %cst_19 = arith.constant 0.000000e+00 : f32
    %20 = vector.broadcast %cst_19 : f32 to vector<2x10x8x128xf32>
    %c0_20 = arith.constant 0 : index
    %c0_21 = arith.constant 0 : index
    %c0_22 = arith.constant 0 : index
    %c0_23 = arith.constant 0 : index
    %21 = vector.load %arg18[%c0_20, %c0_21, %c0_22, %c0_23] : memref<2x10x16x128xf32, #tpu.memory_space<vmem>>, vector<2x10x8x128xf32>
    tpu.vector_store %arg18[%c0_20, %c0_21, %c0_22, %c0_23], %20 {strides = array<i32>} : memref<2x10x16x128xf32, #tpu.memory_space<vmem>>, vector<2x10x8x128xf32>,
    %22 = vector.shape_cast %15 : vector<128x128xf32> to vector<2x8x8x128xf32>
    %c0_24 = arith.constant 0 : index
    %c1 = arith.constant 1 : index
    %c8 = arith.constant 8 : index
    %c0_25 = arith.constant 0 : index
    %23 = vector.load %arg18[%c0_24, %c1, %c8, %c0_25] : memref<2x10x16x128xf32, #tpu.memory_space<vmem>>, vector<2x8x8x128xf32>
    tpu.vector_store %arg18[%c0_24, %c1, %c8, %c0_25], %22 {strides = array<i32>} : memref<2x10x16x128xf32, #tpu.memory_space<vmem>>, vector<2x8x8x128xf32>,
    %c0_26 = arith.constant 0 : index
    %c0_27 = arith.constant 0 : index
    %c7 = arith.constant 7 : index
    %c0_28 = arith.constant 0 : index
    %24 = tpu.strided_load %arg18[%c0_26, %c0_27, %c7, %c0_28] {strides = array<i32: 1, 2, 2, 1>} : memref<2x10x16x128xf32, #tpu.memory_space<vmem>>, vector<2x4x4x128xf32>
    %25 = vector.shape_cast %24 : vector<2x4x4x128xf32> to vector<32x128xf32>
    %c0_29 = arith.constant 0 : index
    %c0_30 = arith.constant 0 : index
    %26 = vector.load %arg20[%c0_29, %c0_30] : memref<32x1152xf32, #tpu.memory_space<vmem>>, vector<32x128xf32>
    tpu.vector_store %arg20[%c0_29, %c0_30], %25 {strides = array<i32>} : memref<32x1152xf32, #tpu.memory_space<vmem>>, vector<32x128xf32>,
    %c0_31 = arith.constant 0 : index
    %c0_32 = arith.constant 0 : index
    %c8_33 = arith.constant 8 : index
    %c0_34 = arith.constant 0 : index
    %27 = tpu.strided_load %arg18[%c0_31, %c0_32, %c8_33, %c0_34] {strides = array<i32: 1, 2, 2, 1>} : memref<2x10x16x128xf32, #tpu.memory_space<vmem>>, vector<2x4x4x128xf32>
    %28 = vector.shape_cast %27 : vector<2x4x4x128xf32> to vector<32x128xf32>
    %c0_35 = arith.constant 0 : index
    %c128 = arith.constant 128 : index
    %29 = vector.load %arg20[%c0_35, %c128] : memref<32x1152xf32, #tpu.memory_space<vmem>>, vector<32x128xf32>
    tpu.vector_store %arg20[%c0_35, %c128], %28 {strides = array<i32>} : memref<32x1152xf32, #tpu.memory_space<vmem>>, vector<32x128xf32>,
    %c0_36 = arith.constant 0 : index
    %c0_37 = arith.constant 0 : index
    %c9 = arith.constant 9 : index
    %c0_38 = arith.constant 0 : index
    %30 = tpu.strided_load %arg18[%c0_36, %c0_37, %c9, %c0_38] {strides = array<i32: 1, 2, 2, 1>} : memref<2x10x16x128xf32, #tpu.memory_space<vmem>>, vector<2x4x4x128xf32>
    %31 = vector.shape_cast %30 : vector<2x4x4x128xf32> to vector<32x128xf32>
    %c0_39 = arith.constant 0 : index
    %c256 = arith.constant 256 : index
    %32 = vector.load %arg20[%c0_39, %c256] : memref<32x1152xf32, #tpu.memory_space<vmem>>, vector<32x128xf32>
    tpu.vector_store %arg20[%c0_39, %c256], %31 {strides = array<i32>} : memref<32x1152xf32, #tpu.memory_space<vmem>>, vector<32x128xf32>,
    %c0_40 = arith.constant 0 : index
    %c1_41 = arith.constant 1 : index
    %c7_42 = arith.constant 7 : index
    %c0_43 = arith.constant 0 : index
    %33 = tpu.strided_load %arg18[%c0_40, %c1_41, %c7_42, %c0_43] {strides = array<i32: 1, 2, 2, 1>} : memref<2x10x16x128xf32, #tpu.memory_space<vmem>>, vector<2x4x4x128xf32>
    %34 = vector.shape_cast %33 : vector<2x4x4x128xf32> to vector<32x128xf32>
    %c0_44 = arith.constant 0 : index
    %c384 = arith.constant 384 : index
    %35 = vector.load %arg20[%c0_44, %c384] : memref<32x1152xf32, #tpu.memory_space<vmem>>, vector<32x128xf32>
    tpu.vector_store %arg20[%c0_44, %c384], %34 {strides = array<i32>} : memref<32x1152xf32, #tpu.memory_space<vmem>>, vector<32x128xf32>,
    %c0_45 = arith.constant 0 : index
    %c1_46 = arith.constant 1 : index
    %c8_47 = arith.constant 8 : index
    %c0_48 = arith.constant 0 : index
    %36 = tpu.strided_load %arg18[%c0_45, %c1_46, %c8_47, %c0_48] {strides = array<i32: 1, 2, 2, 1>} : memref<2x10x16x128xf32, #tpu.memory_space<vmem>>, vector<2x4x4x128xf32>
    %37 = vector.shape_cast %36 : vector<2x4x4x128xf32> to vector<32x128xf32>
    %c0_49 = arith.constant 0 : index
    %c512 = arith.constant 512 : index
    %38 = vector.load %arg20[%c0_49, %c512] : memref<32x1152xf32, #tpu.memory_space<vmem>>, vector<32x128xf32>
    tpu.vector_store %arg20[%c0_49, %c512], %37 {strides = array<i32>} : memref<32x1152xf32, #tpu.memory_space<vmem>>, vector<32x128xf32>,
    %c0_50 = arith.constant 0 : index
    %c1_51 = arith.constant 1 : index
    %c9_52 = arith.constant 9 : index
    %c0_53 = arith.constant 0 : index
    %39 = tpu.strided_load %arg18[%c0_50, %c1_51, %c9_52, %c0_53] {strides = array<i32: 1, 2, 2, 1>} : memref<2x10x16x128xf32, #tpu.memory_space<vmem>>, vector<2x4x4x128xf32>
    %40 = vector.shape_cast %39 : vector<2x4x4x128xf32> to vector<32x128xf32>
    %c0_54 = arith.constant 0 : index
    %c640 = arith.constant 640 : index
    %41 = vector.load %arg20[%c0_54, %c640] : memref<32x1152xf32, #tpu.memory_space<vmem>>, vector<32x128xf32>
    tpu.vector_store %arg20[%c0_54, %c640], %40 {strides = array<i32>} : memref<32x1152xf32, #tpu.memory_space<vmem>>, vector<32x128xf32>,
    %c0_55 = arith.constant 0 : index
    %c2 = arith.constant 2 : index
    %c7_56 = arith.constant 7 : index
    %c0_57 = arith.constant 0 : index
    %42 = tpu.strided_load %arg18[%c0_55, %c2, %c7_56, %c0_57] {strides = array<i32: 1, 2, 2, 1>} : memref<2x10x16x128xf32, #tpu.memory_space<vmem>>, vector<2x4x4x128xf32>
    %43 = vector.shape_cast %42 : vector<2x4x4x128xf32> to vector<32x128xf32>
    %c0_58 = arith.constant 0 : index
    %c768 = arith.constant 768 : index
    %44 = vector.load %arg20[%c0_58, %c768] : memref<32x1152xf32, #tpu.memory_space<vmem>>, vector<32x128xf32>
    tpu.vector_store %arg20[%c0_58, %c768], %43 {strides = array<i32>} : memref<32x1152xf32, #tpu.memory_space<vmem>>, vector<32x128xf32>,
    %c0_59 = arith.constant 0 : index
    %c2_60 = arith.constant 2 : index
    %c8_61 = arith.constant 8 : index
    %c0_62 = arith.constant 0 : index
    %45 = tpu.strided_load %arg18[%c0_59, %c2_60, %c8_61, %c0_62] {strides = array<i32: 1, 2, 2, 1>} : memref<2x10x16x128xf32, #tpu.memory_space<vmem>>, vector<2x4x4x128xf32>
    %46 = vector.shape_cast %45 : vector<2x4x4x128xf32> to vector<32x128xf32>
    %c0_63 = arith.constant 0 : index
    %c896 = arith.constant 896 : index
    %47 = vector.load %arg20[%c0_63, %c896] : memref<32x1152xf32, #tpu.memory_space<vmem>>, vector<32x128xf32>
    tpu.vector_store %arg20[%c0_63, %c896], %46 {strides = array<i32>} : memref<32x1152xf32, #tpu.memory_space<vmem>>, vector<32x128xf32>,
    %c0_64 = arith.constant 0 : index
    %c2_65 = arith.constant 2 : index
    %c9_66 = arith.constant 9 : index
    %c0_67 = arith.constant 0 : index
    %48 = tpu.strided_load %arg18[%c0_64, %c2_65, %c9_66, %c0_67] {strides = array<i32: 1, 2, 2, 1>} : memref<2x10x16x128xf32, #tpu.memory_space<vmem>>, vector<2x4x4x128xf32>
    %49 = vector.shape_cast %48 : vector<2x4x4x128xf32> to vector<32x128xf32>
    %c0_68 = arith.constant 0 : index
    %c1024 = arith.constant 1024 : index
    %50 = vector.load %arg20[%c0_68, %c1024] : memref<32x1152xf32, #tpu.memory_space<vmem>>, vector<32x128xf32>
    tpu.vector_store %arg20[%c0_68, %c1024], %49 {strides = array<i32>} : memref<32x1152xf32, #tpu.memory_space<vmem>>, vector<32x128xf32>,
    %c0_69 = arith.constant 0 : index
    %c0_70 = arith.constant 0 : index
    %51 = vector.load %arg20[%c0_69, %c0_70] : memref<32x1152xf32, #tpu.memory_space<vmem>>, vector<32x1152xf32>
    %c0_71 = arith.constant 0 : index
    %c0_72 = arith.constant 0 : index
    %52 = vector.load %arg6[%c0_71, %c0_72] : memref<1152x128xf32, #tpu.memory_space<vmem>>, vector<1152x128xf32>
    %cst_73 = arith.constant dense<0.000000e+00> : vector<32x128xf32>
    %53 = tpu.matmul %51, %52, %cst_73 {dimension_numbers = #tpu.dot_dimension_numbers<[1], [0], [0], [1], [0, 0, 1, 1], [], []>} : vector<32x1152xf32>, vector<1152x128xf32>, vector<32x128xf32> -> vector<32x128xf32>
    %c0_74 = arith.constant 0 : index
    %c0_75 = arith.constant 0 : index
    %54 = vector.load %arg7[%c0_74, %c0_75] : memref<1x128xf32, #tpu.memory_space<vmem>>, vector<1x128xf32>
    %55 = vector.broadcast %54 : vector<1x128xf32> to vector<32x128xf32>
    %56 = arith.addf %53, %55 : vector<32x128xf32>
    %cst_76 = arith.constant 2.000000e-01 : f32
    %57 = vector.broadcast %cst_76 : f32 to vector<32x128xf32>
    %58 = arith.mulf %57, %56 : vector<32x128xf32>
    %59 = arith.maximumf %56, %58 : vector<32x128xf32>
    %c0_77 = arith.constant 0 : index
    %c0_78 = arith.constant 0 : index
    %60 = vector.load %arg8[%c0_77, %c0_78] : memref<1x128xf32, #tpu.memory_space<vmem>>, vector<1x128xf32>
    %61 = vector.broadcast %60 : vector<1x128xf32> to vector<32x128xf32>
    %62 = arith.mulf %59, %61 : vector<32x128xf32>
    %c0_79 = arith.constant 0 : index
    %c0_80 = arith.constant 0 : index
    %63 = vector.load %arg9[%c0_79, %c0_80] : memref<1x128xf32, #tpu.memory_space<vmem>>, vector<1x128xf32>
    %64 = vector.broadcast %63 : vector<1x128xf32> to vector<32x128xf32>
    %65 = arith.addf %62, %64 : vector<32x128xf32>
    %66 = vector.shape_cast %65 : vector<32x128xf32> to vector<2x16x128xf32>
    %c0_81 = arith.constant 0 : index
    %c0_82 = arith.constant 0 : index
    %c0_83 = arith.constant 0 : index
    %67 = vector.load %arg15[%c0_81, %c0_82, %c0_83] : memref<2x16x128xf32, #tpu.memory_space<vmem>>, vector<2x16x128xf32>
    tpu.vector_store %arg15[%c0_81, %c0_82, %c0_83], %66 {strides = array<i32>} : memref<2x16x128xf32, #tpu.memory_space<vmem>>, vector<2x16x128xf32>,
    %cst_84 = arith.constant 0.000000e+00 : f32
    %68 = vector.broadcast %cst_84 : f32 to vector<2x1x16x128xf32>
    %c0_85 = arith.constant 0 : index
    %c0_86 = arith.constant 0 : index
    %c0_87 = arith.constant 0 : index
    %c0_88 = arith.constant 0 : index
    %69 = vector.load %arg19[%c0_85, %c0_86, %c0_87, %c0_88] : memref<2x6x16x128xf32, #tpu.memory_space<vmem>>, vector<2x1x16x128xf32>
    tpu.vector_store %arg19[%c0_85, %c0_86, %c0_87, %c0_88], %68 {strides = array<i32>} : memref<2x6x16x128xf32, #tpu.memory_space<vmem>>, vector<2x1x16x128xf32>,
    %cst_89 = arith.constant 0.000000e+00 : f32
    %70 = vector.broadcast %cst_89 : f32 to vector<2x6x8x128xf32>
    %c0_90 = arith.constant 0 : index
    %c0_91 = arith.constant 0 : index
    %c0_92 = arith.constant 0 : index
    %c0_93 = arith.constant 0 : index
    %71 = vector.load %arg19[%c0_90, %c0_91, %c0_92, %c0_93] : memref<2x6x16x128xf32, #tpu.memory_space<vmem>>, vector<2x6x8x128xf32>
    tpu.vector_store %arg19[%c0_90, %c0_91, %c0_92, %c0_93], %70 {strides = array<i32>} : memref<2x6x16x128xf32, #tpu.memory_space<vmem>>, vector<2x6x8x128xf32>,
    %72 = vector.shape_cast %65 : vector<32x128xf32> to vector<2x4x4x128xf32>
    %c0_94 = arith.constant 0 : index
    %c1_95 = arith.constant 1 : index
    %c8_96 = arith.constant 8 : index
    %c0_97 = arith.constant 0 : index
    %73 = vector.load %arg19[%c0_94, %c1_95, %c8_96, %c0_97] : memref<2x6x16x128xf32, #tpu.memory_space<vmem>>, vector<2x4x4x128xf32>
    tpu.vector_store %arg19[%c0_94, %c1_95, %c8_96, %c0_97], %72 {strides = array<i32>} : memref<2x6x16x128xf32, #tpu.memory_space<vmem>>, vector<2x4x4x128xf32>,
    %c0_98 = arith.constant 0 : index
    %c0_99 = arith.constant 0 : index
    %c7_100 = arith.constant 7 : index
    %c0_101 = arith.constant 0 : index
    %74 = tpu.strided_load %arg19[%c0_98, %c0_99, %c7_100, %c0_101] {strides = array<i32: 1, 2, 2, 1>} : memref<2x6x16x128xf32, #tpu.memory_space<vmem>>, vector<2x2x2x128xf32>
    %75 = vector.shape_cast %74 : vector<2x2x2x128xf32> to vector<8x128xf32>
    %c0_102 = arith.constant 0 : index
    %c0_103 = arith.constant 0 : index
    %76 = vector.load %arg21[%c0_102, %c0_103] : memref<8x1152xf32, #tpu.memory_space<vmem>>, vector<8x128xf32>
    tpu.vector_store %arg21[%c0_102, %c0_103], %75 {strides = array<i32>} : memref<8x1152xf32, #tpu.memory_space<vmem>>, vector<8x128xf32>,
    %c0_104 = arith.constant 0 : index
    %c0_105 = arith.constant 0 : index
    %c8_106 = arith.constant 8 : index
    %c0_107 = arith.constant 0 : index
    %77 = tpu.strided_load %arg19[%c0_104, %c0_105, %c8_106, %c0_107] {strides = array<i32: 1, 2, 2, 1>} : memref<2x6x16x128xf32, #tpu.memory_space<vmem>>, vector<2x2x2x128xf32>
    %78 = vector.shape_cast %77 : vector<2x2x2x128xf32> to vector<8x128xf32>
    %c0_108 = arith.constant 0 : index
    %c128_109 = arith.constant 128 : index
    %79 = vector.load %arg21[%c0_108, %c128_109] : memref<8x1152xf32, #tpu.memory_space<vmem>>, vector<8x128xf32>
    tpu.vector_store %arg21[%c0_108, %c128_109], %78 {strides = array<i32>} : memref<8x1152xf32, #tpu.memory_space<vmem>>, vector<8x128xf32>,
    %c0_110 = arith.constant 0 : index
    %c0_111 = arith.constant 0 : index
    %c9_112 = arith.constant 9 : index
    %c0_113 = arith.constant 0 : index
    %80 = tpu.strided_load %arg19[%c0_110, %c0_111, %c9_112, %c0_113] {strides = array<i32: 1, 2, 2, 1>} : memref<2x6x16x128xf32, #tpu.memory_space<vmem>>, vector<2x2x2x128xf32>
    %81 = vector.shape_cast %80 : vector<2x2x2x128xf32> to vector<8x128xf32>
    %c0_114 = arith.constant 0 : index
    %c256_115 = arith.constant 256 : index
    %82 = vector.load %arg21[%c0_114, %c256_115] : memref<8x1152xf32, #tpu.memory_space<vmem>>, vector<8x128xf32>
    tpu.vector_store %arg21[%c0_114, %c256_115], %81 {strides = array<i32>} : memref<8x1152xf32, #tpu.memory_space<vmem>>, vector<8x128xf32>,
    %c0_116 = arith.constant 0 : index
    %c1_117 = arith.constant 1 : index
    %c7_118 = arith.constant 7 : index
    %c0_119 = arith.constant 0 : index
    %83 = tpu.strided_load %arg19[%c0_116, %c1_117, %c7_118, %c0_119] {strides = array<i32: 1, 2, 2, 1>} : memref<2x6x16x128xf32, #tpu.memory_space<vmem>>, vector<2x2x2x128xf32>
    %84 = vector.shape_cast %83 : vector<2x2x2x128xf32> to vector<8x128xf32>
    %c0_120 = arith.constant 0 : index
    %c384_121 = arith.constant 384 : index
    %85 = vector.load %arg21[%c0_120, %c384_121] : memref<8x1152xf32, #tpu.memory_space<vmem>>, vector<8x128xf32>
    tpu.vector_store %arg21[%c0_120, %c384_121], %84 {strides = array<i32>} : memref<8x1152xf32, #tpu.memory_space<vmem>>, vector<8x128xf32>,
    %c0_122 = arith.constant 0 : index
    %c1_123 = arith.constant 1 : index
    %c8_124 = arith.constant 8 : index
    %c0_125 = arith.constant 0 : index
    %86 = tpu.strided_load %arg19[%c0_122, %c1_123, %c8_124, %c0_125] {strides = array<i32: 1, 2, 2, 1>} : memref<2x6x16x128xf32, #tpu.memory_space<vmem>>, vector<2x2x2x128xf32>
    %87 = vector.shape_cast %86 : vector<2x2x2x128xf32> to vector<8x128xf32>
    %c0_126 = arith.constant 0 : index
    %c512_127 = arith.constant 512 : index
    %88 = vector.load %arg21[%c0_126, %c512_127] : memref<8x1152xf32, #tpu.memory_space<vmem>>, vector<8x128xf32>
    tpu.vector_store %arg21[%c0_126, %c512_127], %87 {strides = array<i32>} : memref<8x1152xf32, #tpu.memory_space<vmem>>, vector<8x128xf32>,
    %c0_128 = arith.constant 0 : index
    %c1_129 = arith.constant 1 : index
    %c9_130 = arith.constant 9 : index
    %c0_131 = arith.constant 0 : index
    %89 = tpu.strided_load %arg19[%c0_128, %c1_129, %c9_130, %c0_131] {strides = array<i32: 1, 2, 2, 1>} : memref<2x6x16x128xf32, #tpu.memory_space<vmem>>, vector<2x2x2x128xf32>
    %90 = vector.shape_cast %89 : vector<2x2x2x128xf32> to vector<8x128xf32>
    %c0_132 = arith.constant 0 : index
    %c640_133 = arith.constant 640 : index
    %91 = vector.load %arg21[%c0_132, %c640_133] : memref<8x1152xf32, #tpu.memory_space<vmem>>, vector<8x128xf32>
    tpu.vector_store %arg21[%c0_132, %c640_133], %90 {strides = array<i32>} : memref<8x1152xf32, #tpu.memory_space<vmem>>, vector<8x128xf32>,
    %c0_134 = arith.constant 0 : index
    %c2_135 = arith.constant 2 : index
    %c7_136 = arith.constant 7 : index
    %c0_137 = arith.constant 0 : index
    %92 = tpu.strided_load %arg19[%c0_134, %c2_135, %c7_136, %c0_137] {strides = array<i32: 1, 2, 2, 1>} : memref<2x6x16x128xf32, #tpu.memory_space<vmem>>, vector<2x2x2x128xf32>
    %93 = vector.shape_cast %92 : vector<2x2x2x128xf32> to vector<8x128xf32>
    %c0_138 = arith.constant 0 : index
    %c768_139 = arith.constant 768 : index
    %94 = vector.load %arg21[%c0_138, %c768_139] : memref<8x1152xf32, #tpu.memory_space<vmem>>, vector<8x128xf32>
    tpu.vector_store %arg21[%c0_138, %c768_139], %93 {strides = array<i32>} : memref<8x1152xf32, #tpu.memory_space<vmem>>, vector<8x128xf32>,
    %c0_140 = arith.constant 0 : index
    %c2_141 = arith.constant 2 : index
    %c8_142 = arith.constant 8 : index
    %c0_143 = arith.constant 0 : index
    %95 = tpu.strided_load %arg19[%c0_140, %c2_141, %c8_142, %c0_143] {strides = array<i32: 1, 2, 2, 1>} : memref<2x6x16x128xf32, #tpu.memory_space<vmem>>, vector<2x2x2x128xf32>
    %96 = vector.shape_cast %95 : vector<2x2x2x128xf32> to vector<8x128xf32>
    %c0_144 = arith.constant 0 : index
    %c896_145 = arith.constant 896 : index
    %97 = vector.load %arg21[%c0_144, %c896_145] : memref<8x1152xf32, #tpu.memory_space<vmem>>, vector<8x128xf32>
    tpu.vector_store %arg21[%c0_144, %c896_145], %96 {strides = array<i32>} : memref<8x1152xf32, #tpu.memory_space<vmem>>, vector<8x128xf32>,
    %c0_146 = arith.constant 0 : index
    %c2_147 = arith.constant 2 : index
    %c9_148 = arith.constant 9 : index
    %c0_149 = arith.constant 0 : index
    %98 = tpu.strided_load %arg19[%c0_146, %c2_147, %c9_148, %c0_149] {strides = array<i32: 1, 2, 2, 1>} : memref<2x6x16x128xf32, #tpu.memory_space<vmem>>, vector<2x2x2x128xf32>
    %99 = vector.shape_cast %98 : vector<2x2x2x128xf32> to vector<8x128xf32>
    %c0_150 = arith.constant 0 : index
    %c1024_151 = arith.constant 1024 : index
    %100 = vector.load %arg21[%c0_150, %c1024_151] : memref<8x1152xf32, #tpu.memory_space<vmem>>, vector<8x128xf32>
    tpu.vector_store %arg21[%c0_150, %c1024_151], %99 {strides = array<i32>} : memref<8x1152xf32, #tpu.memory_space<vmem>>, vector<8x128xf32>,
    %c0_152 = arith.constant 0 : index
    %c0_153 = arith.constant 0 : index
    %101 = vector.load %arg21[%c0_152, %c0_153] : memref<8x1152xf32, #tpu.memory_space<vmem>>, vector<8x1152xf32>
    %c0_154 = arith.constant 0 : index
    %c0_155 = arith.constant 0 : index
    %102 = vector.load %arg10[%c0_154, %c0_155] : memref<1152x128xf32, #tpu.memory_space<vmem>>, vector<1152x128xf32>
    %cst_156 = arith.constant dense<0.000000e+00> : vector<8x128xf32>
    %103 = tpu.matmul %101, %102, %cst_156 {dimension_numbers = #tpu.dot_dimension_numbers<[1], [0], [0], [1], [0, 0, 1, 1], [], []>} : vector<8x1152xf32>, vector<1152x128xf32>, vector<8x128xf32> -> vector<8x128xf32>
    %c0_157 = arith.constant 0 : index
    %c0_158 = arith.constant 0 : index
    %104 = vector.load %arg11[%c0_157, %c0_158] : memref<1x128xf32, #tpu.memory_space<vmem>>, vector<1x128xf32>
    %105 = vector.broadcast %104 : vector<1x128xf32> to vector<8x128xf32>
    %106 = arith.addf %103, %105 : vector<8x128xf32>
    %cst_159 = arith.constant 2.000000e-01 : f32
    %107 = vector.broadcast %cst_159 : f32 to vector<8x128xf32>
    %108 = arith.mulf %107, %106 : vector<8x128xf32>
    %109 = arith.maximumf %106, %108 : vector<8x128xf32>
    %110 = vector.shape_cast %109 : vector<8x128xf32> to vector<2x4x128xf32>
    %c0_160 = arith.constant 0 : index
    %c0_161 = arith.constant 0 : index
    %c0_162 = arith.constant 0 : index
    %111 = vector.load %arg16[%c0_160, %c0_161, %c0_162] : memref<2x4x128xf32, #tpu.memory_space<vmem>>, vector<2x4x128xf32>
    tpu.vector_store %arg16[%c0_160, %c0_161, %c0_162], %110 {strides = array<i32>} : memref<2x4x128xf32, #tpu.memory_space<vmem>>, vector<2x4x128xf32>,
    %112 = vector.shape_cast %109 : vector<8x128xf32> to vector<2x4x128xf32>
    %c0_163 = arith.constant 0 : index
    %c0_164 = arith.constant 0 : index
    %113 = vector.load %arg12[%c0_163, %c0_164] : memref<4x128xf32, #tpu.memory_space<vmem>>, vector<4x128xf32>
    %114 = vector.shape_cast %113 : vector<4x128xf32> to vector<1x4x128xf32>
    %115 = vector.broadcast %114 : vector<1x4x128xf32> to vector<2x4x128xf32>
    %116 = arith.mulf %112, %115 : vector<2x4x128xf32>
    %cst_165 = arith.constant dense<0.000000e+00> : vector<2x4xf32>
    %117 = vector.multi_reduction <add>, %116, %cst_165 [2] : vector<2x4x128xf32> to vector<2x4xf32>
    %cst_166 = arith.constant dense<0.000000e+00> : vector<2xf32>
    %118 = vector.multi_reduction <add>, %117, %cst_166 [1] : vector<2x4xf32> to vector<2xf32>
    %119 = vector.shape_cast %118 : vector<2xf32> to vector<2x1xf32>
    %c0_167 = arith.constant 0 : index
    %c0_168 = arith.constant 0 : index
    %120 = vector.load %arg13[%c0_167, %c0_168] : memref<1x1xf32, #tpu.memory_space<vmem>>, vector<1x1xf32>
    %121 = vector.broadcast %120 : vector<1x1xf32> to vector<2x1xf32>
    %122 = arith.addf %119, %121 : vector<2x1xf32>
    %c0_169 = arith.constant 0 : index
    %c0_170 = arith.constant 0 : index
    %123 = vector.load %arg17[%c0_169, %c0_170] : memref<2x1xf32, #tpu.memory_space<vmem>>, vector<2x1xf32>
    tpu.vector_store %arg17[%c0_169, %c0_170], %122 {strides = array<i32>} : memref<2x1xf32, #tpu.memory_space<vmem>>, vector<2x1xf32>,
    return
  }
  func.func @transform_0(%arg0: i32) -> (i32, i32, i32) {
    %c0_i32 = arith.constant 0 : i32
    %c0_i32_0 = arith.constant 0 : i32
    %c0_i32_1 = arith.constant 0 : i32
    return %arg0, %c0_i32, %c0_i32_0 : i32, i32, i32
  }
  func.func @transform_1(%arg0: i32) -> (i32, i32) {
    %c0_i32 = arith.constant 0 : i32
    %c0_i32_0 = arith.constant 0 : i32
    %c0_i32_1 = arith.constant 0 : i32
    return %c0_i32, %c0_i32_0 : i32, i32
  }
  func.func @transform_2(%arg0: i32) -> (i32, i32) {
    %c0_i32 = arith.constant 0 : i32
    %c0_i32_0 = arith.constant 0 : i32
    %c0_i32_1 = arith.constant 0 : i32
    return %c0_i32, %c0_i32_0 : i32, i32
  }
  func.func @transform_3(%arg0: i32) -> (i32, i32) {
    %c0_i32 = arith.constant 0 : i32
    %c0_i32_0 = arith.constant 0 : i32
    %c0_i32_1 = arith.constant 0 : i32
    return %c0_i32, %c0_i32_0 : i32, i32
  }
  func.func @transform_4(%arg0: i32) -> (i32, i32) {
    %c0_i32 = arith.constant 0 : i32
    %c0_i32_0 = arith.constant 0 : i32
    %c0_i32_1 = arith.constant 0 : i32
    return %c0_i32, %c0_i32_0 : i32, i32
  }
  func.func @transform_5(%arg0: i32) -> (i32, i32) {
    %c0_i32 = arith.constant 0 : i32
    %c0_i32_0 = arith.constant 0 : i32
    %c0_i32_1 = arith.constant 0 : i32
    return %c0_i32, %c0_i32_0 : i32, i32
  }
  func.func @transform_6(%arg0: i32) -> (i32, i32) {
    %c0_i32 = arith.constant 0 : i32
    %c0_i32_0 = arith.constant 0 : i32
    %c0_i32_1 = arith.constant 0 : i32
    return %c0_i32, %c0_i32_0 : i32, i32
  }
  func.func @transform_7(%arg0: i32) -> (i32, i32) {
    %c0_i32 = arith.constant 0 : i32
    %c0_i32_0 = arith.constant 0 : i32
    %c0_i32_1 = arith.constant 0 : i32
    return %c0_i32, %c0_i32_0 : i32, i32
  }
  func.func @transform_8(%arg0: i32) -> (i32, i32) {
    %c0_i32 = arith.constant 0 : i32
    %c0_i32_0 = arith.constant 0 : i32
    %c0_i32_1 = arith.constant 0 : i32
    return %c0_i32, %c0_i32_0 : i32, i32
  }
  func.func @transform_9(%arg0: i32) -> (i32, i32) {
    %c0_i32 = arith.constant 0 : i32
    %c0_i32_0 = arith.constant 0 : i32
    %c0_i32_1 = arith.constant 0 : i32
    return %c0_i32, %c0_i32_0 : i32, i32
  }
  func.func @transform_10(%arg0: i32) -> (i32, i32) {
    %c0_i32 = arith.constant 0 : i32
    %c0_i32_0 = arith.constant 0 : i32
    %c0_i32_1 = arith.constant 0 : i32
    return %c0_i32, %c0_i32_0 : i32, i32
  }
  func.func @transform_11(%arg0: i32) -> (i32, i32) {
    %c0_i32 = arith.constant 0 : i32
    %c0_i32_0 = arith.constant 0 : i32
    %c0_i32_1 = arith.constant 0 : i32
    return %c0_i32, %c0_i32_0 : i32, i32
  }
  func.func @transform_12(%arg0: i32) -> (i32, i32) {
    %c0_i32 = arith.constant 0 : i32
    %c0_i32_0 = arith.constant 0 : i32
    %c0_i32_1 = arith.constant 0 : i32
    return %c0_i32, %c0_i32_0 : i32, i32
  }
  func.func @transform_13(%arg0: i32) -> (i32, i32, i32) {
    %c0_i32 = arith.constant 0 : i32
    %c0_i32_0 = arith.constant 0 : i32
    %c0_i32_1 = arith.constant 0 : i32
    return %arg0, %c0_i32, %c0_i32_0 : i32, i32, i32
  }
  func.func @transform_14(%arg0: i32) -> (i32, i32, i32) {
    %c0_i32 = arith.constant 0 : i32
    %c0_i32_0 = arith.constant 0 : i32
    %c0_i32_1 = arith.constant 0 : i32
    return %arg0, %c0_i32, %c0_i32_0 : i32, i32, i32
  }
  func.func @transform_15(%arg0: i32) -> (i32, i32, i32) {
    %c0_i32 = arith.constant 0 : i32
    %c0_i32_0 = arith.constant 0 : i32
    %c0_i32_1 = arith.constant 0 : i32
    return %arg0, %c0_i32, %c0_i32_0 : i32, i32, i32
  }
  func.func @transform_16(%arg0: i32) -> (i32, i32) {
    %c0_i32 = arith.constant 0 : i32
    %c0_i32_0 = arith.constant 0 : i32
    return %arg0, %c0_i32 : i32, i32
  }
}

</mosaic_0001>

<llo_original>
// kernel: tpu_custom_call.1
$region0: #{tpu_custom_call.1}
  #allocation0 [shape = 'u32[]', space=smem, size = 0x4, offset = 0x4, fixed_abs, tag = 'smem constant byte address 0x4 - core index']
  #allocation1 [shape = 'u32[144,128]{1,0:T(1,128)}', space=vmem, size = 0x12000, scoped, tag = 'internal scratch']
  #allocation2 [shape = 'f32[2,10,16,128]{3,2,1,0:T(8,128)}', space=vmem, size = 0x28000, scoped, tag = 'scratch operand']
  #allocation3 [shape = 'f32[2,6,16,128]{3,2,1,0:T(8,128)}', space=vmem, size = 0x18000, scoped, tag = 'scratch operand']
  #allocation4 [shape = 'f32[32,1152]{1,0:T(8,128)}', space=vmem, size = 0x24000, scoped, tag = 'scratch operand']
  #allocation5 [shape = 'f32[8,1152]{1,0:T(8,128)}', space=vmem, size = 0x9000, scoped, tag = 'scratch operand']
  #allocation6 [shape = 'f32[1,1]{1,0:T(1,128)S(1)}', space=vmem, size = 0x200, scoped, tag = 'scoped memory for tpu_custom_call.1']
  %s0 = inlined_call_operand.vmem [shape: f32[2,64,16], index: 0, kind: input, shape index: {}]
  %s1 = inlined_call_operand.vmem [shape: f32[16,128], index: 1, kind: input, shape index: {}]
  %s2 = inlined_call_operand.vmem [shape: f32[1,128], index: 2, kind: input, shape index: {}]
  %s3 = inlined_call_operand.vmem [shape: f32[1,128], index: 3, kind: input, shape index: {}]
  %s4 = inlined_call_operand.vmem [shape: f32[1,128], index: 4, kind: input, shape index: {}]
  %s5 = inlined_call_operand.hbm [shape: f32[1152,128], index: 5, kind: input, shape index: {}]
  %s6 = inlined_call_operand.vmem [shape: f32[1,128], index: 6, kind: input, shape index: {}]
  %s7 = inlined_call_operand.vmem [shape: f32[1,128], index: 7, kind: input, shape index: {}]
  %s8 = inlined_call_operand.vmem [shape: f32[1,128], index: 8, kind: input, shape index: {}]
  %s9 = inlined_call_operand.hbm [shape: f32[1152,128], index: 9, kind: input, shape index: {}]
  %s10 = inlined_call_operand.vmem [shape: f32[1,128], index: 10, kind: input, shape index: {}]
  %s11 = inlined_call_operand.vmem [shape: f32[4,128], index: 11, kind: input, shape index: {}]
  %s12 = inlined_call_operand.<no memory space> [shape: f32[1,1], index: 12, kind: input, shape index: {}]
  %s13 = inlined_call_operand.hbm [shape: f32[2,64,128], index: 13, kind: output, shape index: {0}]
  %s14 = inlined_call_operand.hbm [shape: f32[2,16,128], index: 14, kind: output, shape index: {1}]
  %s15 = inlined_call_operand.hbm [shape: f32[2,4,128], index: 15, kind: output, shape index: {2}]
  %s16 = inlined_call_operand.vmem [shape: f32[2,1], index: 16, kind: output, shape index: {3}]
  %17 = xla_tuple %s13, %s14, %s15, %s16
  %s18 = sld [smem:[#allocation0]]
  $region94: #{tpu_custom_call.1} parent=0
    _
  %s20 = ssub.s32 1, %s18
  %s21 = scalar_select 0, %s20, %s18
  %v22 = vstv %s12
  %23 = vst [vmem:[#allocation6] sm:$0x1] %v22
  $region1: #{tpu_custom_call.1} parent=0
    #allocation7 [shape = 'u8[589824]{0}', space=vmem, size = 0x90000, scoped, tag = 'input window, operand 5, single buffered']
    #allocation8 [shape = 's32[1]{0}', space=sflag, size = 0x4, scoped, tag = 'scoped memory for tpu_custom_call.1']
    #allocation9 [shape = 's32[1]{0}', space=sflag, size = 0x4, scoped, tag = 'scoped memory for tpu_custom_call.1']
    #allocation10 [shape = 'u8[589824]{0}', space=vmem, size = 0x90000, scoped, tag = 'input window, operand 9, single buffered']
    #allocation11 [shape = 's32[1]{0}', space=sflag, size = 0x4, scoped, tag = 'scoped memory for tpu_custom_call.1']
    #allocation12 [shape = 'u8[65536]{0}', space=vmem, size = 0x10000, scoped, tag = 'output window, operand 0, single buffered']
    #allocation13 [shape = 'u8[16384]{0}', space=vmem, size = 0x4000, scoped, tag = 'output window, operand 1, single buffered']
    #allocation14 [shape = 's32[1]{0}', space=sflag, size = 0x4, scoped, tag = 'scoped memory for tpu_custom_call.1']
    #allocation15 [shape = 'u8[4096]{0}', space=vmem, size = 0x1000, scoped, tag = 'output window, operand 2, single buffered']
    %24 = vsyncpa [#allocation8], 0
    %25 = vsyncpa [#allocation11], 0
    %26 = vsyncpa [#allocation9], 0
    %27 = vsyncpa [#allocation14], 0
    // Predicated region
    $region2: #{tpu_custom_call.1} parent=1 // pred_check
      _
    $region3: #{tpu_custom_call.1} parent=1 // pred_check_branch
      %29 = sbr.rel (0) target = $region5
    $region4: #{tpu_custom_call.1} parent=1 // pred_region
      _
    $region5: #{tpu_custom_call.1} parent=1 // pred_fallthru
      _
    // Predicated region
    $region6: #{tpu_custom_call.1} parent=1 // pred_check
      _
    $region7: #{tpu_custom_call.1} parent=1 // pred_check_branch
      %31 = sbr.rel (0) target = $region9
    $region8: #{tpu_custom_call.1} parent=1 // pred_region
      _
    $region9: #{tpu_custom_call.1} parent=1 // pred_fallthru
      _
    // Predicated region
    $region10: #{tpu_custom_call.1} parent=1 // pred_check
      _
    $region11: #{tpu_custom_call.1} parent=1 // pred_check_branch
      %33 = sbr.rel (0) target = $region13
    $region12: #{tpu_custom_call.1} parent=1 // pred_region
      _
    $region13: #{tpu_custom_call.1} parent=1 // pred_fallthru
      _
    // Predicated region
    $region14: #{tpu_custom_call.1} parent=1 // pred_check
      _
    $region15: #{tpu_custom_call.1} parent=1 // pred_check_branch
      %35 = sbr.rel (0) target = $region17
    $region16: #{tpu_custom_call.1} parent=1 // pred_region
      _
    $region17: #{tpu_custom_call.1} parent=1 // pred_fallthru
      _
    // Predicated region
    $region18: #{tpu_custom_call.1} parent=1 // pred_check
      _
    $region19: #{tpu_custom_call.1} parent=1 // pred_check_branch
      %37 = sbr.rel (0) target = $region21
    $region20: #{tpu_custom_call.1} parent=1 // pred_region
      _
    $region21: #{tpu_custom_call.1} parent=1 // pred_fallthru
      _
    // Predicated region
    $region22: #{tpu_custom_call.1} parent=1 // pred_check
      _
    $region23: #{tpu_custom_call.1} parent=1 // pred_check_branch
      %39 = sbr.rel (0) target = $region25
    $region24: #{tpu_custom_call.1} parent=1 // pred_region
      %s41 = ssub.s32 18432, 18432
      %42 = vsyncadd [#allocation8], %s41
      %s43 = sshll.u32 [#allocation7], 4
      %s44 = int_to_ptr.vmem [resolvable:$true] %s43
      %49 = dma.hbm_to_vmem [thread:$0]  %s5, 18432, %s44, [#allocation8], 128, 128, 8
    $region25: #{tpu_custom_call.1} parent=1 // pred_fallthru
      _
    // Predicated region
    $region26: #{tpu_custom_call.1} parent=1 // pred_check
      _
    $region27: #{tpu_custom_call.1} parent=1 // pred_check_branch
      %51 = sbr.rel (0) target = $region29
    $region28: #{tpu_custom_call.1} parent=1 // pred_region
      _
    $region29: #{tpu_custom_call.1} parent=1 // pred_fallthru
      _
    // Predicated region
    $region30: #{tpu_custom_call.1} parent=1 // pred_check
      _
    $region31: #{tpu_custom_call.1} parent=1 // pred_check_branch
      %53 = sbr.rel (0) target = $region33
    $region32: #{tpu_custom_call.1} parent=1 // pred_region
      _
    $region33: #{tpu_custom_call.1} parent=1 // pred_fallthru
      _
    // Predicated region
    $region34: #{tpu_custom_call.1} parent=1 // pred_check
      _
    $region35: #{tpu_custom_call.1} parent=1 // pred_check_branch
      %55 = sbr.rel (0) target = $region37
    $region36: #{tpu_custom_call.1} parent=1 // pred_region
      _
    $region37: #{tpu_custom_call.1} parent=1 // pred_fallthru
      _
    // Predicated region
    $region38: #{tpu_custom_call.1} parent=1 // pred_check
      _
    $region39: #{tpu_custom_call.1} parent=1 // pred_check_branch
      %57 = sbr.rel (0) target = $region41
    $region40: #{tpu_custom_call.1} parent=1 // pred_region
      %s59 = ssub.s32 18432, 18432
      %60 = vsyncadd [#allocation11], %s59
      %s61 = sshll.u32 [#allocation10], 4
      %s62 = int_to_ptr.vmem [resolvable:$true] %s61
      %67 = dma.hbm_to_vmem [thread:$0]  %s9, 18432, %s62, [#allocation11], 128, 128, 8
    $region41: #{tpu_custom_call.1} parent=1 // pred_fallthru
      _
    // Predicated region
    $region42: #{tpu_custom_call.1} parent=1 // pred_check
      _
    $region43: #{tpu_custom_call.1} parent=1 // pred_check_branch
      %69 = sbr.rel (0) target = $region45
    $region44: #{tpu_custom_call.1} parent=1 // pred_region
      _
    $region45: #{tpu_custom_call.1} parent=1 // pred_fallthru
      _
    // Predicated region
    $region46: #{tpu_custom_call.1} parent=1 // pred_check
      _
    $region47: #{tpu_custom_call.1} parent=1 // pred_check_branch
      %71 = sbr.rel (0) target = $region49
    $region48: #{tpu_custom_call.1} parent=1 // pred_region
      _
    $region49: #{tpu_custom_call.1} parent=1 // pred_fallthru
      _
    // Predicated region
    $region50: #{tpu_custom_call.1} parent=1 // pred_check
      _
    $region51: #{tpu_custom_call.1} parent=1 // pred_check_branch
      %73 = sbr.rel (0) target = $region53
    $region52: #{tpu_custom_call.1} parent=1 // pred_region
      _
    $region53: #{tpu_custom_call.1} parent=1 // pred_fallthru
      _
    // Predicated region
    $region54: #{tpu_custom_call.1} parent=1 // pred_check
      _
    $region55: #{tpu_custom_call.1} parent=1 // pred_check_branch
      %75 = sbr.rel (0) target = $region57
    $region56: #{tpu_custom_call.1} parent=1 // pred_region
      %76 = dma.done [#allocation8], 18432
    $region57: #{tpu_custom_call.1} parent=1 // pred_fallthru
      _
    // Predicated region
    $region58: #{tpu_custom_call.1} parent=1 // pred_check
      _
    $region59: #{tpu_custom_call.1} parent=1 // pred_check_branch
      %78 = sbr.rel (0) target = $region61
    $region60: #{tpu_custom_call.1} parent=1 // pred_region
      %79 = dma.done [#allocation11], 18432
    $region61: #{tpu_custom_call.1} parent=1 // pred_fallthru
      _
    %v80 = vld [vmem:[%s0] sm:$0xff]
    %v81 = vld [vmem:[%s0 + $0x8] sm:$0xff]
    %v82 = vld [vmem:[%s0 + $0x10] sm:$0xff]
    %v83 = vld [vmem:[%s0 + $0x18] sm:$0xff]
    %v84 = vld [vmem:[%s0 + $0x20] sm:$0xff]
    %v85 = vld [vmem:[%s0 + $0x28] sm:$0xff]
    %v86 = vld [vmem:[%s0 + $0x30] sm:$0xff]
    %v87 = vld [vmem:[%s0 + $0x38] sm:$0xff]
    %v88 = vld [vmem:[%s0 + $0x40] sm:$0xff]
    %v89 = vld [vmem:[%s0 + $0x48] sm:$0xff]
    %v90 = vld [vmem:[%s0 + $0x50] sm:$0xff]
    %v91 = vld [vmem:[%s0 + $0x58] sm:$0xff]
    %v92 = vld [vmem:[%s0 + $0x60] sm:$0xff]
    %v93 = vld [vmem:[%s0 + $0x68] sm:$0xff]
    %v94 = vld [vmem:[%s0 + $0x70] sm:$0xff]
    %v95 = vld [vmem:[%s0 + $0x78] sm:$0xff]
    %v96 = vld [vmem:[%s1] sm:$0xff]
    %v97 = vld [vmem:[%s1 + $0x8] sm:$0xff]
    %v98 = vld [vmem:[%s2] sm:$0x1]
    %v100 = vlaneseq
    %v101 = vshrl.u32 %v100, 7
    %v102 = vsub.s32 0, %v101
    %v103 = vrot.slane %v98, %v102
    %vm105 = vcmask 130048
    %v107 = vsel %vm105, %v80, 0
    %v110 = vsel %vm105, %v81, 0
    %v113 = vsel %vm105, %v82, 0
    %v116 = vsel %vm105, %v83, 0
    %v119 = vsel %vm105, %v84, 0
    %v122 = vsel %vm105, %v85, 0
    %v125 = vsel %vm105, %v86, 0
    %v128 = vsel %vm105, %v87, 0
    %v131 = vsel %vm105, %v88, 0
    %v134 = vsel %vm105, %v89, 0
    %v137 = vsel %vm105, %v90, 0
    %v140 = vsel %vm105, %v91, 0
    %v143 = vsel %vm105, %v92, 0
    %v146 = vsel %vm105, %v93, 0
    %v149 = vsel %vm105, %v94, 0
    %v152 = vsel %vm105, %v95, 0
    %154 = vmatprep.subr.mxu0 0.0
    %155 = vmatpush1.msra.mxu0 %v96
    %156 = vmatprep.subr.mxu0 0.0
    %157 = vmatpush1.msra.mxu0 %v97
    %158 = vmatprep.subr.mxu0 0.0
    %159 = vmatpush1.msra.mxu0 0.0
    %160 = vmatprep.subr.mxu0 0.0
    %161 = vmatpush1.msra.mxu0 0.0
    %162 = vmatprep.subr.mxu0 0.0
    %163 = vmatpush1.msra.mxu0 0.0
    %164 = vmatprep.subr.mxu0 0.0
    %165 = vmatpush1.msra.mxu0 0.0
    %166 = vmatprep.subr.mxu0 0.0
    %167 = vmatpush1.msra.mxu0 0.0
    %168 = vmatprep.subr.mxu0 0.0
    %169 = vmatpush1.msra.mxu0 0.0
    %170 = vmatprep.subr.mxu0 0.0
    %171 = vmatpush1.msra.mxu0 0.0
    %172 = vmatprep.subr.mxu0 0.0
    %173 = vmatpush1.msra.mxu0 0.0
    %174 = vmatprep.subr.mxu0 0.0
    %175 = vmatpush1.msra.mxu0 0.0
    %176 = vmatprep.subr.mxu0 0.0
    %177 = vmatpush1.msra.mxu0 0.0
    %178 = vmatprep.subr.mxu0 0.0
    %179 = vmatpush1.msra.mxu0 0.0
    %180 = vmatprep.subr.mxu0 0.0
    %181 = vmatpush1.msra.mxu0 0.0
    %182 = vmatprep.subr.mxu0 0.0
    %183 = vmatpush1.msra.mxu0 0.0
    %184 = vmatprep.subr.mxu0 0.0
    %185 = vmatpush1.msra.mxu0 0.0
    %186 = vmatprep.subr.mxu0 0.0
    %187 = vmatpush1.msra.mxu0 0.0
    %188 = vmatprep.subr.mxu0 0.0
    %189 = vmatpush1.msra.mxu0 0.0
    %190 = vmatprep.subr.mxu0 0.0
    %191 = vmatpush1.msra.mxu0 0.0
    %192 = vmatprep.subr.mxu0 0.0
    %193 = vmatpush1.msra.mxu0 0.0
    %194 = vmatprep.subr.mxu0 0.0
    %195 = vmatpush1.msra.mxu0 0.0
    %196 = vmatprep.subr.mxu0 0.0
    %197 = vmatpush1.msra.mxu0 0.0
    %198 = vmatprep.subr.mxu0 0.0
    %199 = vmatpush1.msra.mxu0 0.0
    %200 = vmatprep.subr.mxu0 0.0
    %201 = vmatpush1.msra.mxu0 0.0
    %202 = vmatprep.subr.mxu0 0.0
    %203 = vmatpush1.msra.mxu0 0.0
    %204 = vmatprep.subr.mxu0 0.0
    %205 = vmatpush1.msra.mxu0 0.0
    %206 = vmatprep.subr.mxu0 0.0
    %207 = vmatpush1.msra.mxu0 0.0
    %208 = vmatprep.subr.mxu0 0.0
    %209 = vmatpush1.msra.mxu0 0.0
    %210 = vmatprep.subr.mxu0 0.0
    %211 = vmatpush1.msra.mxu0 0.0
    %212 = vmatprep.subr.mxu0 0.0
    %213 = vmatpush1.msra.mxu0 0.0
    %214 = vmatprep.subr.mxu0 0.0
    %215 = vmatpush1.msra.mxu0 0.0
    %216 = vmatprep.subr.mxu0 0.0
    %217 = vmatpush1.msra.mxu0 0.0
    %218 = vmatprep.mubr.f32.mxu0 0.0
    %219 = vmatmul.mubr.f32.gmra.mrb[0].mxu0 %v107
    %v220 = vpop.f32.mrb[0].mxu0
    %v221 = vadd.f32 %v103, %v220
    %v222 = vpop.f32.mrb[0].mxu0
    %223 = vmatprep.mubr.f32.mxu0 0.0
    %224 = vmatmul.mubr.f32.gmra.mrb[0].mxu0 %v110
    %v225 = vpop.f32.mrb[0].mxu0
    %v226 = vadd.f32 %v103, %v225
    %v227 = vpop.f32.mrb[0].mxu0
    %228 = vmatprep.mubr.f32.mxu0 0.0
    %229 = vmatmul.mubr.f32.gmra.mrb[0].mxu0 %v113
    %v230 = vpop.f32.mrb[0].mxu0
    %v231 = vadd.f32 %v103, %v230
    %v232 = vpop.f32.mrb[0].mxu0
    %233 = vmatprep.mubr.f32.mxu0 0.0
    %234 = vmatmul.mubr.f32.gmra.mrb[0].mxu0 %v116
    %v235 = vpop.f32.mrb[0].mxu0
    %v236 = vadd.f32 %v103, %v235
    %v237 = vpop.f32.mrb[0].mxu0
    %238 = vmatprep.mubr.f32.mxu0 0.0
    %239 = vmatmul.mubr.f32.gmra.mrb[0].mxu0 %v119
    %v240 = vpop.f32.mrb[0].mxu0
    %v241 = vadd.f32 %v103, %v240
    %v242 = vpop.f32.mrb[0].mxu0
    %243 = vmatprep.mubr.f32.mxu0 0.0
    %244 = vmatmul.mubr.f32.gmra.mrb[0].mxu0 %v122
    %v245 = vpop.f32.mrb[0].mxu0
    %v246 = vadd.f32 %v103, %v245
    %v247 = vpop.f32.mrb[0].mxu0
    %248 = vmatprep.mubr.f32.mxu0 0.0
    %249 = vmatmul.mubr.f32.gmra.mrb[0].mxu0 %v125
    %v250 = vpop.f32.mrb[0].mxu0
    %v251 = vadd.f32 %v103, %v250
    %v252 = vpop.f32.mrb[0].mxu0
    %253 = vmatprep.mubr.f32.mxu0 0.0
    %254 = vmatmul.mubr.f32.gmra.mrb[0].mxu0 %v128
    %v255 = vpop.f32.mrb[0].mxu0
    %v256 = vadd.f32 %v103, %v255
    %v257 = vpop.f32.mrb[0].mxu0
    %258 = vmatprep.mubr.f32.mxu0 0.0
    %259 = vmatmul.mubr.f32.gmra.mrb[0].mxu0 %v131
    %v260 = vpop.f32.mrb[0].mxu0
    %v261 = vadd.f32 %v103, %v260
    %v262 = vpop.f32.mrb[0].mxu0
    %263 = vmatprep.mubr.f32.mxu0 0.0
    %264 = vmatmul.mubr.f32.gmra.mrb[0].mxu0 %v134
    %v265 = vpop.f32.mrb[0].mxu0
    %v266 = vadd.f32 %v103, %v265
    %v267 = vpop.f32.mrb[0].mxu0
    %268 = vmatprep.mubr.f32.mxu0 0.0
    %269 = vmatmul.mubr.f32.gmra.mrb[0].mxu0 %v137
    %v270 = vpop.f32.mrb[0].mxu0
    %v271 = vadd.f32 %v103, %v270
    %v272 = vpop.f32.mrb[0].mxu0
    %273 = vmatprep.mubr.f32.mxu0 0.0
    %274 = vmatmul.mubr.f32.gmra.mrb[0].mxu0 %v140
    %v275 = vpop.f32.mrb[0].mxu0
    %v276 = vadd.f32 %v103, %v275
    %v277 = vpop.f32.mrb[0].mxu0
    %278 = vmatprep.mubr.f32.mxu0 0.0
    %279 = vmatmul.mubr.f32.gmra.mrb[0].mxu0 %v143
    %v280 = vpop.f32.mrb[0].mxu0
    %v281 = vadd.f32 %v103, %v280
    %v282 = vpop.f32.mrb[0].mxu0
    %283 = vmatprep.mubr.f32.mxu0 0.0
    %284 = vmatmul.mubr.f32.gmra.mrb[0].mxu0 %v146
    %v285 = vpop.f32.mrb[0].mxu0
    %v286 = vadd.f32 %v103, %v285
    %v287 = vpop.f32.mrb[0].mxu0
    %288 = vmatprep.mubr.f32.mxu0 0.0
    %289 = vmatmul.mubr.f32.gmra.mrb[0].mxu0 %v149
    %v290 = vpop.f32.mrb[0].mxu0
    %v291 = vadd.f32 %v103, %v290
    %v292 = vpop.f32.mrb[0].mxu0
    %293 = vmatprep.mubr.f32.mxu0 0.0
    %294 = vmatmul.mubr.f32.gmra.mrb[0].mxu0 %v152
    %v295 = vpop.f32.mrb[0].mxu0
    %v296 = vadd.f32 %v103, %v295
    %v297 = vpop.f32.mrb[0].mxu0
    %298 = vdwg.mxu0
    %v299 = vmul.f32 %v221, 0.2
    %v300 = vmul.f32 %v226, 0.2
    %v301 = vmul.f32 %v231, 0.2
    %v302 = vmul.f32 %v236, 0.2
    %v303 = vmul.f32 %v241, 0.2
    %v304 = vmul.f32 %v246, 0.2
    %v305 = vmul.f32 %v251, 0.2
    %v306 = vmul.f32 %v256, 0.2
    %v307 = vmul.f32 %v261, 0.2
    %v308 = vmul.f32 %v266, 0.2
    %v309 = vmul.f32 %v271, 0.2
    %v310 = vmul.f32 %v276, 0.2
    %v311 = vmul.f32 %v281, 0.2
    %v312 = vmul.f32 %v286, 0.2
    %v313 = vmul.f32 %v291, 0.2
    %v314 = vmul.f32 %v296, 0.2
    %v315 = vmax.f32 %v221, %v299
    %v316 = vmax.f32 %v226, %v300
    %v317 = vmax.f32 %v231, %v301
    %v318 = vmax.f32 %v236, %v302
    %v319 = vmax.f32 %v241, %v303
    %v320 = vmax.f32 %v246, %v304
    %v321 = vmax.f32 %v251, %v305
    %v322 = vmax.f32 %v256, %v306
    %v323 = vmax.f32 %v261, %v307
    %v324 = vmax.f32 %v266, %v308
    %v325 = vmax.f32 %v271, %v309
    %v326 = vmax.f32 %v276, %v310
    %v327 = vmax.f32 %v281, %v311
    %v328 = vmax.f32 %v286, %v312
    %v329 = vmax.f32 %v291, %v313
    %v330 = vmax.f32 %v296, %v314
    %v331 = vld [vmem:[%s3] sm:$0x1]
    %v333 = vlaneseq
    %v334 = vshrl.u32 %v333, 7
    %v335 = vsub.s32 0, %v334
    %v336 = vrot.slane %v331, %v335
    %v338 = vmul.f32 %v315, %v336
    %v339 = vmul.f32 %v316, %v336
    %v340 = vmul.f32 %v317, %v336
    %v341 = vmul.f32 %v318, %v336
    %v342 = vmul.f32 %v319, %v336
    %v343 = vmul.f32 %v320, %v336
    %v344 = vmul.f32 %v321, %v336
    %v345 = vmul.f32 %v322, %v336
    %v346 = vmul.f32 %v323, %v336
    %v347 = vmul.f32 %v324, %v336
    %v348 = vmul.f32 %v325, %v336
    %v349 = vmul.f32 %v326, %v336
    %v350 = vmul.f32 %v327, %v336
    %v351 = vmul.f32 %v328, %v336
    %v352 = vmul.f32 %v329, %v336
    %v353 = vmul.f32 %v330, %v336
    %v354 = vld [vmem:[%s4] sm:$0x1]
    %v356 = vlaneseq
    %v357 = vshrl.u32 %v356, 7
    %v358 = vsub.s32 0, %v357
    %v359 = vrot.slane %v354, %v358
    %v361 = vadd.f32 %v338, %v359
    %v362 = vadd.f32 %v339, %v359
    %v363 = vadd.f32 %v340, %v359
    %v364 = vadd.f32 %v341, %v359
    %v365 = vadd.f32 %v342, %v359
    %v366 = vadd.f32 %v343, %v359
    %v367 = vadd.f32 %v344, %v359
    %v368 = vadd.f32 %v345, %v359
    %v369 = vadd.f32 %v346, %v359
    %v370 = vadd.f32 %v347, %v359
    %v371 = vadd.f32 %v348, %v359
    %v372 = vadd.f32 %v349, %v359
    %v373 = vadd.f32 %v350, %v359
    %v374 = vadd.f32 %v351, %v359
    %v375 = vadd.f32 %v352, %v359
    %v376 = vadd.f32 %v353, %v359
    %377 = vst [vmem:[#allocation12] sm:$0xff] %v361
    %378 = vst [vmem:[#allocation12 + $0x8] sm:$0xff] %v362
    %379 = vst [vmem:[#allocation12 + $0x10] sm:$0xff] %v363
    %380 = vst [vmem:[#allocation12 + $0x18] sm:$0xff] %v364
    %381 = vst [vmem:[#allocation12 + $0x20] sm:$0xff] %v365
    %382 = vst [vmem:[#allocation12 + $0x28] sm:$0xff] %v366
    %383 = vst [vmem:[#allocation12 + $0x30] sm:$0xff] %v367
    %384 = vst [vmem:[#allocation12 + $0x38] sm:$0xff] %v368
    %385 = vst [vmem:[#allocation12 + $0x40] sm:$0xff] %v369
    %386 = vst [vmem:[#allocation12 + $0x48] sm:$0xff] %v370
    %387 = vst [vmem:[#allocation12 + $0x50] sm:$0xff] %v371
    %388 = vst [vmem:[#allocation12 + $0x58] sm:$0xff] %v372
    %389 = vst [vmem:[#allocation12 + $0x60] sm:$0xff] %v373
    %390 = vst [vmem:[#allocation12 + $0x68] sm:$0xff] %v374
    %391 = vst [vmem:[#allocation12 + $0x70] sm:$0xff] %v375
    %392 = vst [vmem:[#allocation12 + $0x78] sm:$0xff] %v376
    %393 = vst [vmem:[#allocation2] sm:$0xff] 0.0
    %394 = vst [vmem:[#allocation2 + $0x8] sm:$0xff] 0.0
    %395 = vst [vmem:[#allocation2 + $0xa0] sm:$0xff] 0.0
    %396 = vst [vmem:[#allocation2 + $0xa8] sm:$0xff] 0.0
    %397 = vst [vmem:[#allocation2] sm:$0xff] 0.0
    %398 = vst [vmem:[#allocation2 + $0x10] sm:$0xff] 0.0
    %399 = vst [vmem:[#allocation2 + $0x20] sm:$0xff] 0.0
    %400 = vst [vmem:[#allocation2 + $0x30] sm:$0xff] 0.0
    %401 = vst [vmem:[#allocation2 + $0x40] sm:$0xff] 0.0
    %402 = vst [vmem:[#allocation2 + $0x50] sm:$0xff] 0.0
    %403 = vst [vmem:[#allocation2 + $0x60] sm:$0xff] 0.0
    %404 = vst [vmem:[#allocation2 + $0x70] sm:$0xff] 0.0
    %405 = vst [vmem:[#allocation2 + $0x80] sm:$0xff] 0.0
    %406 = vst [vmem:[#allocation2 + $0x90] sm:$0xff] 0.0
    %407 = vst [vmem:[#allocation2 + $0xa0] sm:$0xff] 0.0
    %408 = vst [vmem:[#allocation2 + $0xb0] sm:$0xff] 0.0
    %409 = vst [vmem:[#allocation2 + $0xc0] sm:$0xff] 0.0
    %410 = vst [vmem:[#allocation2 + $0xd0] sm:$0xff] 0.0
    %411 = vst [vmem:[#allocation2 + $0xe0] sm:$0xff] 0.0
    %412 = vst [vmem:[#allocation2 + $0xf0] sm:$0xff] 0.0
    %413 = vst [vmem:[#allocation2 + $0x100] sm:$0xff] 0.0
    %414 = vst [vmem:[#allocation2 + $0x110] sm:$0xff] 0.0
    %415 = vst [vmem:[#allocation2 + $0x120] sm:$0xff] 0.0
    %416 = vst [vmem:[#allocation2 + $0x130] sm:$0xff] 0.0
    %s417 = scalar_lea.vmem [#allocation2], 16
    %418 = vst [vmem:[%s417 + $0x8] sm:$0xff] %v361
    %419 = vst [vmem:[%s417 + $0x18] sm:$0xff] %v362
    %420 = vst [vmem:[%s417 + $0x28] sm:$0xff] %v363
    %421 = vst [vmem:[%s417 + $0x38] sm:$0xff] %v364
    %422 = vst [vmem:[%s417 + $0x48] sm:$0xff] %v365
    %423 = vst [vmem:[%s417 + $0x58] sm:$0xff] %v366
    %424 = vst [vmem:[%s417 + $0x68] sm:$0xff] %v367
    %425 = vst [vmem:[%s417 + $0x78] sm:$0xff] %v368
    %426 = vst [vmem:[%s417 + $0xa8] sm:$0xff] %v369
    %427 = vst [vmem:[%s417 + $0xb8] sm:$0xff] %v370
    %428 = vst [vmem:[%s417 + $0xc8] sm:$0xff] %v371
    %429 = vst [vmem:[%s417 + $0xd8] sm:$0xff] %v372
    %430 = vst [vmem:[%s417 + $0xe8] sm:$0xff] %v373
    %431 = vst [vmem:[%s417 + $0xf8] sm:$0xff] %v374
    %432 = vst [vmem:[%s417 + $0x108] sm:$0xff] %v375
    %433 = vst [vmem:[%s417 + $0x118] sm:$0xff] %v376
    %s434 = scalar_lea.vmem [#allocation2], 7
    %v435 = vld [vmem:[%s434] ss:$2 sm:$0xf]
    %s436 = scalar_lea.vmem [#allocation2], 39
    %v437 = vld [vmem:[%s436] ss:$2 sm:$0xf]
    %s438 = scalar_lea.vmem [#allocation2], 71
    %v439 = vld [vmem:[%s438] ss:$2 sm:$0xf]
    %s440 = scalar_lea.vmem [#allocation2], 103
    %v441 = vld [vmem:[%s440] ss:$2 sm:$0xf]
    %s442 = scalar_lea.vmem [#allocation2], 167
    %v443 = vld [vmem:[%s442] ss:$2 sm:$0xf]
    %s444 = scalar_lea.vmem [#allocation2], 199
    %v445 = vld [vmem:[%s444] ss:$2 sm:$0xf]
    %s446 = scalar_lea.vmem [#allocation2], 231
    %v447 = vld [vmem:[%s446] ss:$2 sm:$0xf]
    %s448 = scalar_lea.vmem [#allocation2], 263
    %v449 = vld [vmem:[%s448] ss:$2 sm:$0xf]
    %v458 = vcombine.low %v435, %v437
    %v459 = vcombine.low %v439, %v441
    %v460 = vcombine.low %v443, %v445
    %v461 = vcombine.low %v447, %v449
    %466 = vst [vmem:[#allocation4] sm:$0xff] %v458
    %467 = vst [vmem:[#allocation4 + $0x48] sm:$0xff] %v459
    %468 = vst [vmem:[#allocation4 + $0x90] sm:$0xff] %v460
    %469 = vst [vmem:[#allocation4 + $0xd8] sm:$0xff] %v461
    %s470 = scalar_lea.vmem [#allocation2], 8
    %v471 = vld [vmem:[%s470] ss:$2 sm:$0xf]
    %s472 = scalar_lea.vmem [#allocation2], 40
    %v473 = vld [vmem:[%s472] ss:$2 sm:$0xf]
    %s474 = scalar_lea.vmem [#allocation2], 72
    %v475 = vld [vmem:[%s474] ss:$2 sm:$0xf]
    %s476 = scalar_lea.vmem [#allocation2], 104
    %v477 = vld [vmem:[%s476] ss:$2 sm:$0xf]
    %s478 = scalar_lea.vmem [#allocation2], 168
    %v479 = vld [vmem:[%s478] ss:$2 sm:$0xf]
    %s480 = scalar_lea.vmem [#allocation2], 200
    %v481 = vld [vmem:[%s480] ss:$2 sm:$0xf]
    %s482 = scalar_lea.vmem [#allocation2], 232
    %v483 = vld [vmem:[%s482] ss:$2 sm:$0xf]
    %s484 = scalar_lea.vmem [#allocation2], 264
    %v485 = vld [vmem:[%s484] ss:$2 sm:$0xf]
    %v494 = vcombine.low %v471, %v473
    %v495 = vcombine.low %v475, %v477
    %v496 = vcombine.low %v479, %v481
    %v497 = vcombine.low %v483, %v485
    %502 = vst [vmem:[#allocation4 + $0x8] sm:$0xff] %v494
    %503 = vst [vmem:[#allocation4 + $0x50] sm:$0xff] %v495
    %504 = vst [vmem:[#allocation4 + $0x98] sm:$0xff] %v496
    %505 = vst [vmem:[#allocation4 + $0xe0] sm:$0xff] %v497
    %s506 = scalar_lea.vmem [#allocation2], 9
    %v507 = vld [vmem:[%s506] ss:$2 sm:$0xf]
    %s508 = scalar_lea.vmem [#allocation2], 41
    %v509 = vld [vmem:[%s508] ss:$2 sm:$0xf]
    %s510 = scalar_lea.vmem [#allocation2], 73
    %v511 = vld [vmem:[%s510] ss:$2 sm:$0xf]
    %s512 = scalar_lea.vmem [#allocation2], 105
    %v513 = vld [vmem:[%s512] ss:$2 sm:$0xf]
    %s514 = scalar_lea.vmem [#allocation2], 169
    %v515 = vld [vmem:[%s514] ss:$2 sm:$0xf]
    %s516 = scalar_lea.vmem [#allocation2], 201
    %v517 = vld [vmem:[%s516] ss:$2 sm:$0xf]
    %s518 = scalar_lea.vmem [#allocation2], 233
    %v519 = vld [vmem:[%s518] ss:$2 sm:$0xf]
    %s520 = scalar_lea.vmem [#allocation2], 265
    %v521 = vld [vmem:[%s520] ss:$2 sm:$0xf]
    %v530 = vcombine.low %v507, %v509
    %v531 = vcombine.low %v511, %v513
    %v532 = vcombine.low %v515, %v517
    %v533 = vcombine.low %v519, %v521
    %538 = vst [vmem:[#allocation4 + $0x10] sm:$0xff] %v530
    %539 = vst [vmem:[#allocation4 + $0x58] sm:$0xff] %v531
    %540 = vst [vmem:[#allocation4 + $0xa0] sm:$0xff] %v532
    %541 = vst [vmem:[#allocation4 + $0xe8] sm:$0xff] %v533
    %s542 = scalar_lea.vmem %s417, 7 [#allocation2]
    %v543 = vld [vmem:[%s542] ss:$2 sm:$0xf]
    %s544 = scalar_lea.vmem %s417, 39 [#allocation2]
    %v545 = vld [vmem:[%s544] ss:$2 sm:$0xf]
    %s546 = scalar_lea.vmem %s417, 71 [#allocation2]
    %v547 = vld [vmem:[%s546] ss:$2 sm:$0xf]
    %s548 = scalar_lea.vmem %s417, 103 [#allocation2]
    %v549 = vld [vmem:[%s548] ss:$2 sm:$0xf]
    %s550 = scalar_lea.vmem %s417, 167 [#allocation2]
    %v551 = vld [vmem:[%s550] ss:$2 sm:$0xf]
    %s552 = scalar_lea.vmem %s417, 199 [#allocation2]
    %v553 = vld [vmem:[%s552] ss:$2 sm:$0xf]
    %s554 = scalar_lea.vmem %s417, 231 [#allocation2]
    %v555 = vld [vmem:[%s554] ss:$2 sm:$0xf]
    %s556 = scalar_lea.vmem %s417, 263 [#allocation2]
    %v557 = vld [vmem:[%s556] ss:$2 sm:$0xf]
    %v566 = vcombine.low %v543, %v545
    %v567 = vcombine.low %v547, %v549
    %v568 = vcombine.low %v551, %v553
    %v569 = vcombine.low %v555, %v557
    %574 = vst [vmem:[#allocation4 + $0x18] sm:$0xff] %v566
    %575 = vst [vmem:[#allocation4 + $0x60] sm:$0xff] %v567
    %576 = vst [vmem:[#allocation4 + $0xa8] sm:$0xff] %v568
    %577 = vst [vmem:[#allocation4 + $0xf0] sm:$0xff] %v569
    %s578 = scalar_lea.vmem %s417, 8 [#allocation2]
    %v579 = vld [vmem:[%s578] ss:$2 sm:$0xf]
    %s580 = scalar_lea.vmem %s417, 40 [#allocation2]
    %v581 = vld [vmem:[%s580] ss:$2 sm:$0xf]
    %s582 = scalar_lea.vmem %s417, 72 [#allocation2]
    %v583 = vld [vmem:[%s582] ss:$2 sm:$0xf]
    %s584 = scalar_lea.vmem %s417, 104 [#allocation2]
    %v585 = vld [vmem:[%s584] ss:$2 sm:$0xf]
    %s586 = scalar_lea.vmem %s417, 168 [#allocation2]
    %v587 = vld [vmem:[%s586] ss:$2 sm:$0xf]
    %s588 = scalar_lea.vmem %s417, 200 [#allocation2]
    %v589 = vld [vmem:[%s588] ss:$2 sm:$0xf]
    %s590 = scalar_lea.vmem %s417, 232 [#allocation2]
    %v591 = vld [vmem:[%s590] ss:$2 sm:$0xf]
    %s592 = scalar_lea.vmem %s417, 264 [#allocation2]
    %v593 = vld [vmem:[%s592] ss:$2 sm:$0xf]
    %v602 = vcombine.low %v579, %v581
    %v603 = vcombine.low %v583, %v585
    %v604 = vcombine.low %v587, %v589
    %v605 = vcombine.low %v591, %v593
    %610 = vst [vmem:[#allocation4 + $0x20] sm:$0xff] %v602
    %611 = vst [vmem:[#allocation4 + $0x68] sm:$0xff] %v603
    %612 = vst [vmem:[#allocation4 + $0xb0] sm:$0xff] %v604
    %613 = vst [vmem:[#allocation4 + $0xf8] sm:$0xff] %v605
    %s614 = scalar_lea.vmem %s417, 9 [#allocation2]
    %v615 = vld [vmem:[%s614] ss:$2 sm:$0xf]
    %s616 = scalar_lea.vmem %s417, 41 [#allocation2]
    %v617 = vld [vmem:[%s616] ss:$2 sm:$0xf]
    %s618 = scalar_lea.vmem %s417, 73 [#allocation2]
    %v619 = vld [vmem:[%s618] ss:$2 sm:$0xf]
    %s620 = scalar_lea.vmem %s417, 105 [#allocation2]
    %v621 = vld [vmem:[%s620] ss:$2 sm:$0xf]
    %s622 = scalar_lea.vmem %s417, 169 [#allocation2]
    %v623 = vld [vmem:[%s622] ss:$2 sm:$0xf]
    %s624 = scalar_lea.vmem %s417, 201 [#allocation2]
    %v625 = vld [vmem:[%s624] ss:$2 sm:$0xf]
    %s626 = scalar_lea.vmem %s417, 233 [#allocation2]
    %v627 = vld [vmem:[%s626] ss:$2 sm:$0xf]
    %s628 = scalar_lea.vmem %s417, 265 [#allocation2]
    %v629 = vld [vmem:[%s628] ss:$2 sm:$0xf]
    %v638 = vcombine.low %v615, %v617
    %v639 = vcombine.low %v619, %v621
    %v640 = vcombine.low %v623, %v625
    %v641 = vcombine.low %v627, %v629
    %646 = vst [vmem:[#allocation4 + $0x28] sm:$0xff] %v638
    %647 = vst [vmem:[#allocation4 + $0x70] sm:$0xff] %v639
    %648 = vst [vmem:[#allocation4 + $0xb8] sm:$0xff] %v640
    %649 = vst [vmem:[#allocation4 + $0x100] sm:$0xff] %v641
    %s650 = scalar_lea.vmem [#allocation2], 32
    %s651 = scalar_lea.vmem %s650, 7 [#allocation2]
    %v652 = vld [vmem:[%s651] ss:$2 sm:$0xf]
    %s653 = scalar_lea.vmem %s650, 39 [#allocation2]
    %v654 = vld [vmem:[%s653] ss:$2 sm:$0xf]
    %s655 = scalar_lea.vmem %s650, 71 [#allocation2]
    %v656 = vld [vmem:[%s655] ss:$2 sm:$0xf]
    %s657 = scalar_lea.vmem %s650, 103 [#allocation2]
    %v658 = vld [vmem:[%s657] ss:$2 sm:$0xf]
    %s659 = scalar_lea.vmem %s650, 167 [#allocation2]
    %v660 = vld [vmem:[%s659] ss:$2 sm:$0xf]
    %s661 = scalar_lea.vmem %s650, 199 [#allocation2]
    %v662 = vld [vmem:[%s661] ss:$2 sm:$0xf]
    %s663 = scalar_lea.vmem %s650, 231 [#allocation2]
    %v664 = vld [vmem:[%s663] ss:$2 sm:$0xf]
    %s665 = scalar_lea.vmem %s650, 263 [#allocation2]
    %v666 = vld [vmem:[%s665] ss:$2 sm:$0xf]
    %v675 = vcombine.low %v652, %v654
    %v676 = vcombine.low %v656, %v658
    %v677 = vcombine.low %v660, %v662
    %v678 = vcombine.low %v664, %v666
    %683 = vst [vmem:[#allocation4 + $0x30] sm:$0xff] %v675
    %684 = vst [vmem:[#allocation4 + $0x78] sm:$0xff] %v676
    %685 = vst [vmem:[#allocation4 + $0xc0] sm:$0xff] %v677
    %686 = vst [vmem:[#allocation4 + $0x108] sm:$0xff] %v678
    %s687 = scalar_lea.vmem %s650, 8 [#allocation2]
    %v688 = vld [vmem:[%s687] ss:$2 sm:$0xf]
    %s689 = scalar_lea.vmem %s650, 40 [#allocation2]
    %v690 = vld [vmem:[%s689] ss:$2 sm:$0xf]
    %s691 = scalar_lea.vmem %s650, 72 [#allocation2]
    %v692 = vld [vmem:[%s691] ss:$2 sm:$0xf]
    %s693 = scalar_lea.vmem %s650, 104 [#allocation2]
    %v694 = vld [vmem:[%s693] ss:$2 sm:$0xf]
    %s695 = scalar_lea.vmem %s650, 168 [#allocation2]
    %v696 = vld [vmem:[%s695] ss:$2 sm:$0xf]
    %s697 = scalar_lea.vmem %s650, 200 [#allocation2]
    %v698 = vld [vmem:[%s697] ss:$2 sm:$0xf]
    %s699 = scalar_lea.vmem %s650, 232 [#allocation2]
    %v700 = vld [vmem:[%s699] ss:$2 sm:$0xf]
    %s701 = scalar_lea.vmem %s650, 264 [#allocation2]
    %v702 = vld [vmem:[%s701] ss:$2 sm:$0xf]
    %v711 = vcombine.low %v688, %v690
    %v712 = vcombine.low %v692, %v694
    %v713 = vcombine.low %v696, %v698
    %v714 = vcombine.low %v700, %v702
    %719 = vst [vmem:[#allocation4 + $0x38] sm:$0xff] %v711
    %720 = vst [vmem:[#allocation4 + $0x80] sm:$0xff] %v712
    %721 = vst [vmem:[#allocation4 + $0xc8] sm:$0xff] %v713
    %722 = vst [vmem:[#allocation4 + $0x110] sm:$0xff] %v714
    %s723 = scalar_lea.vmem %s650, 9 [#allocation2]
    %v724 = vld [vmem:[%s723] ss:$2 sm:$0xf]
    %s725 = scalar_lea.vmem %s650, 41 [#allocation2]
    %v726 = vld [vmem:[%s725] ss:$2 sm:$0xf]
    %s727 = scalar_lea.vmem %s650, 73 [#allocation2]
    %v728 = vld [vmem:[%s727] ss:$2 sm:$0xf]
    %s729 = scalar_lea.vmem %s650, 105 [#allocation2]
    %v730 = vld [vmem:[%s729] ss:$2 sm:$0xf]
    %s731 = scalar_lea.vmem %s650, 169 [#allocation2]
    %v732 = vld [vmem:[%s731] ss:$2 sm:$0xf]
    %s733 = scalar_lea.vmem %s650, 201 [#allocation2]
    %v734 = vld [vmem:[%s733] ss:$2 sm:$0xf]
    %s735 = scalar_lea.vmem %s650, 233 [#allocation2]
    %v736 = vld [vmem:[%s735] ss:$2 sm:$0xf]
    %s737 = scalar_lea.vmem %s650, 265 [#allocation2]
    %v738 = vld [vmem:[%s737] ss:$2 sm:$0xf]
    %v747 = vcombine.low %v724, %v726
    %v748 = vcombine.low %v728, %v730
    %v749 = vcombine.low %v732, %v734
    %v750 = vcombine.low %v736, %v738
    %755 = vst [vmem:[#allocation4 + $0x40] sm:$0xff] %v747
    %756 = vst [vmem:[#allocation4 + $0x88] sm:$0xff] %v748
    %757 = vst [vmem:[#allocation4 + $0xd0] sm:$0xff] %v749
    %758 = vst [vmem:[#allocation4 + $0x118] sm:$0xff] %v750
    %v759 = vld [vmem:[#allocation4] sm:$0xff]
    %v760 = vld [vmem:[#allocation4 + $0x8] sm:$0xff]
    %v761 = vld [vmem:[#allocation4 + $0x10] sm:$0xff]
    %v762 = vld [vmem:[#allocation4 + $0x18] sm:$0xff]
    %v763 = vld [vmem:[#allocation4 + $0x20] sm:$0xff]
    %v764 = vld [vmem:[#allocation4 + $0x28] sm:$0xff]
    %v765 = vld [vmem:[#allocation4 + $0x30] sm:$0xff]
    %v766 = vld [vmem:[#allocation4 + $0x38] sm:$0xff]
    %v767 = vld [vmem:[#allocation4 + $0x40] sm:$0xff]
    %v768 = vld [vmem:[#allocation4 + $0x48] sm:$0xff]
    %v769 = vld [vmem:[#allocation4 + $0x50] sm:$0xff]
    %v770 = vld [vmem:[#allocation4 + $0x58] sm:$0xff]
    %v771 = vld [vmem:[#allocation4 + $0x60] sm:$0xff]
    %v772 = vld [vmem:[#allocation4 + $0x68] sm:$0xff]
    %v773 = vld [vmem:[#allocation4 + $0x70] sm:$0xff]
    %v774 = vld [vmem:[#allocation4 + $0x78] sm:$0xff]
    %v775 = vld [vmem:[#allocation4 + $0x80] sm:$0xff]
    %v776 = vld [vmem:[#allocation4 + $0x88] sm:$0xff]
    %v777 = vld [vmem:[#allocation4 + $0x90] sm:$0xff]
    %v778 = vld [vmem:[#allocation4 + $0x98] sm:$0xff]
    %v779 = vld [vmem:[#allocation4 + $0xa0] sm:$0xff]
    %v780 = vld [vmem:[#allocation4 + $0xa8] sm:$0xff]
    %v781 = vld [vmem:[#allocation4 + $0xb0] sm:$0xff]
    %v782 = vld [vmem:[#allocation4 + $0xb8] sm:$0xff]
    %v783 = vld [vmem:[#allocation4 + $0xc0] sm:$0xff]
    %v784 = vld [vmem:[#allocation4 + $0xc8] sm:$0xff]
    %v785 = vld [vmem:[#allocation4 + $0xd0] sm:$0xff]
    %v786 = vld [vmem:[#allocation4 + $0xd8] sm:$0xff]
    %v787 = vld [vmem:[#allocation4 + $0xe0] sm:$0xff]
    %v788 = vld [vmem:[#allocation4 + $0xe8] sm:$0xff]
    %v789 = vld [vmem:[#allocation4 + $0xf0] sm:$0xff]
    %v790 = vld [vmem:[#allocation4 + $0xf8] sm:$0xff]
    %v791 = vld [vmem:[#allocation4 + $0x100] sm:$0xff]
    %v792 = vld [vmem:[#allocation4 + $0x108] sm:$0xff]
    %v793 = vld [vmem:[#allocation4 + $0x110] sm:$0xff]
    %v794 = vld [vmem:[#allocation4 + $0x118] sm:$0xff]
    %v795 = vld [vmem:[#allocation7] sm:$0xff]
    %v796 = vld [vmem:[#allocation7 + $0x8] sm:$0xff]
    %v797 = vld [vmem:[#allocation7 + $0x10] sm:$0xff]
    %v798 = vld [vmem:[#allocation7 + $0x18] sm:$0xff]
    %v799 = vld [vmem:[#allocation7 + $0x20] sm:$0xff]
    %v800 = vld [vmem:[#allocation7 + $0x28] sm:$0xff]
    %v801 = vld [vmem:[#allocation7 + $0x30] sm:$0xff]
    %v802 = vld [vmem:[#allocation7 + $0x38] sm:$0xff]
    %v803 = vld [vmem:[#allocation7 + $0x40] sm:$0xff]
    %v804 = vld [vmem:[#allocation7 + $0x48] sm:$0xff]
    %v805 = vld [vmem:[#allocation7 + $0x50] sm:$0xff]
    %v806 = vld [vmem:[#allocation7 + $0x58] sm:$0xff]
    %v807 = vld [vmem:[#allocation7 + $0x60] sm:$0xff]
    %v808 = vld [vmem:[#allocation7 + $0x68] sm:$0xff]
    %v809 = vld [vmem:[#allocation7 + $0x70] sm:$0xff]
    %v810 = vld [vmem:[#allocation7 + $0x78] sm:$0xff]
    %v811 = vld [vmem:[#allocation7 + $0x80] sm:$0xff]
    %v812 = vld [vmem:[#allocation7 + $0x88] sm:$0xff]
    %v813 = vld [vmem:[#allocation7 + $0x90] sm:$0xff]
    %v814 = vld [vmem:[#allocation7 + $0x98] sm:$0xff]
    %v815 = vld [vmem:[#allocation7 + $0xa0] sm:$0xff]
    %v816 = vld [vmem:[#allocation7 + $0xa8] sm:$0xff]
    %v817 = vld [vmem:[#allocation7 + $0xb0] sm:$0xff]
    %v818 = vld [vmem:[#allocation7 + $0xb8] sm:$0xff]
    %v819 = vld [vmem:[#allocation7 + $0xc0] sm:$0xff]
    %v820 = vld [vmem:[#allocation7 + $0xc8] sm:$0xff]
    %v821 = vld [vmem:[#allocation7 + $0xd0] sm:$0xff]
    %v822 = vld [vmem:[#allocation7 + $0xd8] sm:$0xff]
    %v823 = vld [vmem:[#allocation7 + $0xe0] sm:$0xff]
    %v824 = vld [vmem:[#allocation7 + $0xe8] sm:$0xff]
    %v825 = vld [vmem:[#allocation7 + $0xf0] sm:$0xff]
    %v826 = vld [vmem:[#allocation7 + $0xf8] sm:$0xff]
    %v827 = vld [vmem:[#allocation7 + $0x100] sm:$0xff]
    %v828 = vld [vmem:[#allocation7 + $0x108] sm:$0xff]
    %v829 = vld [vmem:[#allocation7 + $0x110] sm:$0xff]
    %v830 = vld [vmem:[#allocation7 + $0x118] sm:$0xff]
    %v831 = vld [vmem:[#allocation7 + $0x120] sm:$0xff]
    %v832 = vld [vmem:[#allocation7 + $0x128] sm:$0xff]
    %v833 = vld [vmem:[#allocation7 + $0x130] sm:$0xff]
    %v834 = vld [vmem:[#allocation7 + $0x138] sm:$0xff]
    %v835 = vld [vmem:[#allocation7 + $0x140] sm:$0xff]
    %v836 = vld [vmem:[#allocation7 + $0x148] sm:$0xff]
    %v837 = vld [vmem:[#allocation7 + $0x150] sm:$0xff]
    %v838 = vld [vmem:[#allocation7 + $0x158] sm:$0xff]
    %v839 = vld [vmem:[#allocation7 + $0x160] sm:$0xff]
    %v840 = vld [vmem:[#allocation7 + $0x168] sm:$0xff]
    %v841 = vld [vmem:[#allocation7 + $0x170] sm:$0xff]
    %v842 = vld [vmem:[#allocation7 + $0x178] sm:$0xff]
    %v843 = vld [vmem:[#allocation7 + $0x180] sm:$0xff]
    %v844 = vld [vmem:[#allocation7 + $0x188] sm:$0xff]
    %v845 = vld [vmem:[#allocation7 + $0x190] sm:$0xff]
    %v846 = vld [vmem:[#allocation7 + $0x198] sm:$0xff]
    %v847 = vld [vmem:[#allocation7 + $0x1a0] sm:$0xff]
    %v848 = vld [vmem:[#allocation7 + $0x1a8] sm:$0xff]
    %v849 = vld [vmem:[#allocation7 + $0x1b0] sm:$0xff]
    %v850 = vld [vmem:[#allocation7 + $0x1b8] sm:$0xff]
    %v851 = vld [vmem:[#allocation7 + $0x1c0] sm:$0xff]
    %v852 = vld [vmem:[#allocation7 + $0x1c8] sm:$0xff]
    %v853 = vld [vmem:[#allocation7 + $0x1d0] sm:$0xff]
    %v854 = vld [vmem:[#allocation7 + $0x1d8] sm:$0xff]
    %v855 = vld [vmem:[#allocation7 + $0x1e0] sm:$0xff]
    %v856 = vld [vmem:[#allocation7 + $0x1e8] sm:$0xff]
    %v857 = vld [vmem:[#allocation7 + $0x1f0] sm:$0xff]
    %v858 = vld [vmem:[#allocation7 + $0x1f8] sm:$0xff]
    %v859 = vld [vmem:[#allocation7 + $0x200] sm:$0xff]
    %v860 = vld [vmem:[#allocation7 + $0x208] sm:$0xff]
    %v861 = vld [vmem:[#allocation7 + $0x210] sm:$0xff]
    %v862 = vld [vmem:[#allocation7 + $0x218] sm:$0xff]
    %v863 = vld [vmem:[#allocation7 + $0x220] sm:$0xff]
    %v864 = vld [vmem:[#allocation7 + $0x228] sm:$0xff]
    %v865 = vld [vmem:[#allocation7 + $0x230] sm:$0xff]
    %v866 = vld [vmem:[#allocation7 + $0x238] sm:$0xff]
    %v867 = vld [vmem:[#allocation7 + $0x240] sm:$0xff]
    %v868 = vld [vmem:[#allocation7 + $0x248] sm:$0xff]
    %v869 = vld [vmem:[#allocation7 + $0x250] sm:$0xff]
    %v870 = vld [vmem:[#allocation7 + $0x258] sm:$0xff]
    %v871 = vld [vmem:[#allocation7 + $0x260] sm:$0xff]
    %v872 = vld [vmem:[#allocation7 + $0x268] sm:$0xff]
    %v873 = vld [vmem:[#allocation7 + $0x270] sm:$0xff]
    %v874 = vld [vmem:[#allocation7 + $0x278] sm:$0xff]
    %v875 = vld [vmem:[#allocation7 + $0x280] sm:$0xff]
    %v876 = vld [vmem:[#allocation7 + $0x288] sm:$0xff]
    %v877 = vld [vmem:[#allocation7 + $0x290] sm:$0xff]
    %v878 = vld [vmem:[#allocation7 + $0x298] sm:$0xff]
    %v879 = vld [vmem:[#allocation7 + $0x2a0] sm:$0xff]
    %v880 = vld [vmem:[#allocation7 + $0x2a8] sm:$0xff]
    %v881 = vld [vmem:[#allocation7 + $0x2b0] sm:$0xff]
    %v882 = vld [vmem:[#allocation7 + $0x2b8] sm:$0xff]
    %v883 = vld [vmem:[#allocation7 + $0x2c0] sm:$0xff]
    %v884 = vld [vmem:[#allocation7 + $0x2c8] sm:$0xff]
    %v885 = vld [vmem:[#allocation7 + $0x2d0] sm:$0xff]
    %v886 = vld [vmem:[#allocation7 + $0x2d8] sm:$0xff]
    %v887 = vld [vmem:[#allocation7 + $0x2e0] sm:$0xff]
    %v888 = vld [vmem:[#allocation7 + $0x2e8] sm:$0xff]
    %v889 = vld [vmem:[#allocation7 + $0x2f0] sm:$0xff]
    %v890 = vld [vmem:[#allocation7 + $0x2f8] sm:$0xff]
    %v891 = vld [vmem:[#allocation7 + $0x300] sm:$0xff]
    %v892 = vld [vmem:[#allocation7 + $0x308] sm:$0xff]
    %v893 = vld [vmem:[#allocation7 + $0x310] sm:$0xff]
    %v894 = vld [vmem:[#allocation7 + $0x318] sm:$0xff]
    %v895 = vld [vmem:[#allocation7 + $0x320] sm:$0xff]
    %v896 = vld [vmem:[#allocation7 + $0x328] sm:$0xff]
    %v897 = vld [vmem:[#allocation7 + $0x330] sm:$0xff]
    %v898 = vld [vmem:[#allocation7 + $0x338] sm:$0xff]
    %v899 = vld [vmem:[#allocation7 + $0x340] sm:$0xff]
    %v900 = vld [vmem:[#allocation7 + $0x348] sm:$0xff]
    %v901 = vld [vmem:[#allocation7 + $0x350] sm:$0xff]
    %v902 = vld [vmem:[#allocation7 + $0x358] sm:$0xff]
    %v903 = vld [vmem:[#allocation7 + $0x360] sm:$0xff]
    %v904 = vld [vmem:[#allocation7 + $0x368] sm:$0xff]
    %v905 = vld [vmem:[#allocation7 + $0x370] sm:$0xff]
    %v906 = vld [vmem:[#allocation7 + $0x378] sm:$0xff]
    %v907 = vld [vmem:[#allocation7 + $0x380] sm:$0xff]
    %v908 = vld [vmem:[#allocation7 + $0x388] sm:$0xff]
    %v909 = vld [vmem:[#allocation7 + $0x390] sm:$0xff]
    %v910 = vld [vmem:[#allocation7 + $0x398] sm:$0xff]
    %v911 = vld [vmem:[#allocation7 + $0x3a0] sm:$0xff]
    %v912 = vld [vmem:[#allocation7 + $0x3a8] sm:$0xff]
    %v913 = vld [vmem:[#allocation7 + $0x3b0] sm:$0xff]
    %v914 = vld [vmem:[#allocation7 + $0x3b8] sm:$0xff]
    %v915 = vld [vmem:[#allocation7 + $0x3c0] sm:$0xff]
    %v916 = vld [vmem:[#allocation7 + $0x3c8] sm:$0xff]
    %v917 = vld [vmem:[#allocation7 + $0x3d0] sm:$0xff]
    %v918 = vld [vmem:[#allocation7 + $0x3d8] sm:$0xff]
    %v919 = vld [vmem:[#allocation7 + $0x3e0] sm:$0xff]
    %v920 = vld [vmem:[#allocation7 + $0x3e8] sm:$0xff]
    %v921 = vld [vmem:[#allocation7 + $0x3f0] sm:$0xff]
    %v922 = vld [vmem:[#allocation7 + $0x3f8] sm:$0xff]
    %v923 = vld [vmem:[#allocation7 + $0x400] sm:$0xff]
    %v924 = vld [vmem:[#allocation7 + $0x408] sm:$0xff]
    %v925 = vld [vmem:[#allocation7 + $0x410] sm:$0xff]
    %v926 = vld [vmem:[#allocation7 + $0x418] sm:$0xff]
    %v927 = vld [vmem:[#allocation7 + $0x420] sm:$0xff]
    %v928 = vld [vmem:[#allocation7 + $0x428] sm:$0xff]
    %v929 = vld [vmem:[#allocation7 + $0x430] sm:$0xff]
    %v930 = vld [vmem:[#allocation7 + $0x438] sm:$0xff]
    %v931 = vld [vmem:[#allocation7 + $0x440] sm:$0xff]
    %v932 = vld [vmem:[#allocation7 + $0x448] sm:$0xff]
    %v933 = vld [vmem:[#allocation7 + $0x450] sm:$0xff]
    %v934 = vld [vmem:[#allocation7 + $0x458] sm:$0xff]
    %v935 = vld [vmem:[#allocation7 + $0x460] sm:$0xff]
    %v936 = vld [vmem:[#allocation7 + $0x468] sm:$0xff]
    %v937 = vld [vmem:[#allocation7 + $0x470] sm:$0xff]
    %v938 = vld [vmem:[#allocation7 + $0x478] sm:$0xff]
    %v939 = vld [vmem:[%s6] sm:$0x1]
    %v941 = vlaneseq
    %v942 = vshrl.u32 %v941, 7
    %v943 = vsub.s32 0, %v942
    %v944 = vrot.slane %v939, %v943
    %946 = vmatprep.subr.mxu0 0.0
    %947 = vmatpush1.msra.mxu0 %v795
    %948 = vmatprep.subr.mxu0 0.0
    %949 = vmatpush1.msra.mxu0 %v796
    %950 = vmatprep.subr.mxu0 0.0
    %951 = vmatpush1.msra.mxu0 %v797
    %952 = vmatprep.subr.mxu0 0.0
    %953 = vmatpush1.msra.mxu0 %v798
    %954 = vmatprep.subr.mxu0 0.0
    %955 = vmatpush1.msra.mxu0 %v799
    %956 = vmatprep.subr.mxu0 0.0
    %957 = vmatpush1.msra.mxu0 %v800
    %958 = vmatprep.subr.mxu0 0.0
    %959 = vmatpush1.msra.mxu0 %v801
    %960 = vmatprep.subr.mxu0 0.0
    %961 = vmatpush1.msra.mxu0 %v802
    %962 = vmatprep.subr.mxu0 0.0
    %963 = vmatpush1.msra.mxu0 %v803
    %964 = vmatprep.subr.mxu0 0.0
    %965 = vmatpush1.msra.mxu0 %v804
    %966 = vmatprep.subr.mxu0 0.0
    %967 = vmatpush1.msra.mxu0 %v805
    %968 = vmatprep.subr.mxu0 0.0
    %969 = vmatpush1.msra.mxu0 %v806
    %970 = vmatprep.subr.mxu0 0.0
    %971 = vmatpush1.msra.mxu0 %v807
    %972 = vmatprep.subr.mxu0 0.0
    %973 = vmatpush1.msra.mxu0 %v808
    %974 = vmatprep.subr.mxu0 0.0
    %975 = vmatpush1.msra.mxu0 %v809
    %976 = vmatprep.subr.mxu0 0.0
    %977 = vmatpush1.msra.mxu0 %v810
    %978 = vmatprep.subr.mxu0 0.0
    %979 = vmatpush1.msra.mxu0 %v811
    %980 = vmatprep.subr.mxu0 0.0
    %981 = vmatpush1.msra.mxu0 %v812
    %982 = vmatprep.subr.mxu0 0.0
    %983 = vmatpush1.msra.mxu0 %v813
    %984 = vmatprep.subr.mxu0 0.0
    %985 = vmatpush1.msra.mxu0 %v814
    %986 = vmatprep.subr.mxu0 0.0
    %987 = vmatpush1.msra.mxu0 %v815
    %988 = vmatprep.subr.mxu0 0.0
    %989 = vmatpush1.msra.mxu0 %v816
    %990 = vmatprep.subr.mxu0 0.0
    %991 = vmatpush1.msra.mxu0 %v817
    %992 = vmatprep.subr.mxu0 0.0
    %993 = vmatpush1.msra.mxu0 %v818
    %994 = vmatprep.subr.mxu0 0.0
    %995 = vmatpush1.msra.mxu0 %v819
    %996 = vmatprep.subr.mxu0 0.0
    %997 = vmatpush1.msra.mxu0 %v820
    %998 = vmatprep.subr.mxu0 0.0
    %999 = vmatpush1.msra.mxu0 %v821
    %1000 = vmatprep.subr.mxu0 0.0
    %1001 = vmatpush1.msra.mxu0 %v822
    %1002 = vmatprep.subr.mxu0 0.0
    %1003 = vmatpush1.msra.mxu0 %v823
    %1004 = vmatprep.subr.mxu0 0.0
    %1005 = vmatpush1.msra.mxu0 %v824
    %1006 = vmatprep.subr.mxu0 0.0
    %1007 = vmatpush1.msra.mxu0 %v825
    %1008 = vmatprep.subr.mxu0 0.0
    %1009 = vmatpush1.msra.mxu0 %v826
    %1010 = vmatprep.mubr.f32.mxu0 %v760
    %1011 = vmatmul.mubr.f32.gmra.mrb[0].mxu0 %v759
    %v1012 = vpop.f32.mrb[0].mxu0
    %v1013 = vadd.f32 %v944, %v1012
    %v1014 = vpop.f32.mrb[0].mxu0
    %1015 = vmatprep.mubr.f32.mxu0 %v769
    %1016 = vmatmul.mubr.f32.gmra.mrb[0].mxu0 %v768
    %v1017 = vpop.f32.mrb[0].mxu0
    %v1018 = vadd.f32 %v944, %v1017
    %v1019 = vpop.f32.mrb[0].mxu0
    %1020 = vmatprep.mubr.f32.mxu0 %v778
    %1021 = vmatmul.mubr.f32.gmra.mrb[0].mxu0 %v777
    %v1022 = vpop.f32.mrb[0].mxu0
    %v1023 = vadd.f32 %v944, %v1022
    %v1024 = vpop.f32.mrb[0].mxu0
    %1025 = vmatprep.mubr.f32.mxu0 %v787
    %1026 = vmatmul.mubr.f32.gmra.mrb[0].mxu0 %v786
    %v1027 = vpop.f32.mrb[0].mxu0
    %v1028 = vadd.f32 %v944, %v1027
    %v1029 = vpop.f32.mrb[0].mxu0
    %1030 = vdwg.mxu0
    %1031 = vmatprep.subr.mxu0 0.0
    %1032 = vmatpush1.msra.mxu0 %v827
    %1033 = vmatprep.subr.mxu0 0.0
    %1034 = vmatpush1.msra.mxu0 %v828
    %1035 = vmatprep.subr.mxu0 0.0
    %1036 = vmatpush1.msra.mxu0 %v829
    %1037 = vmatprep.subr.mxu0 0.0
    %1038 = vmatpush1.msra.mxu0 %v830
    %1039 = vmatprep.subr.mxu0 0.0
    %1040 = vmatpush1.msra.mxu0 %v831
    %1041 = vmatprep.subr.mxu0 0.0
    %1042 = vmatpush1.msra.mxu0 %v832
    %1043 = vmatprep.subr.mxu0 0.0
    %1044 = vmatpush1.msra.mxu0 %v833
    %1045 = vmatprep.subr.mxu0 0.0
    %1046 = vmatpush1.msra.mxu0 %v834
    %1047 = vmatprep.subr.mxu0 0.0
    %1048 = vmatpush1.msra.mxu0 %v835
    %1049 = vmatprep.subr.mxu0 0.0
    %1050 = vmatpush1.msra.mxu0 %v836
    %1051 = vmatprep.subr.mxu0 0.0
    %1052 = vmatpush1.msra.mxu0 %v837
    %1053 = vmatprep.subr.mxu0 0.0
    %1054 = vmatpush1.msra.mxu0 %v838
    %1055 = vmatprep.subr.mxu0 0.0
    %1056 = vmatpush1.msra.mxu0 %v839
    %1057 = vmatprep.subr.mxu0 0.0
    %1058 = vmatpush1.msra.mxu0 %v840
    %1059 = vmatprep.subr.mxu0 0.0
    %1060 = vmatpush1.msra.mxu0 %v841
    %1061 = vmatprep.subr.mxu0 0.0
    %1062 = vmatpush1.msra.mxu0 %v842
    %1063 = vmatprep.subr.mxu0 0.0
    %1064 = vmatpush1.msra.mxu0 %v843
    %1065 = vmatprep.subr.mxu0 0.0
    %1066 = vmatpush1.msra.mxu0 %v844
    %1067 = vmatprep.subr.mxu0 0.0
    %1068 = vmatpush1.msra.mxu0 %v845
    %1069 = vmatprep.subr.mxu0 0.0
    %1070 = vmatpush1.msra.mxu0 %v846
    %1071 = vmatprep.subr.mxu0 0.0
    %1072 = vmatpush1.msra.mxu0 %v847
    %1073 = vmatprep.subr.mxu0 0.0
    %1074 = vmatpush1.msra.mxu0 %v848
    %1075 = vmatprep.subr.mxu0 0.0
    %1076 = vmatpush1.msra.mxu0 %v849
    %1077 = vmatprep.subr.mxu0 0.0
    %1078 = vmatpush1.msra.mxu0 %v850
    %1079 = vmatprep.subr.mxu0 0.0
    %1080 = vmatpush1.msra.mxu0 %v851
    %1081 = vmatprep.subr.mxu0 0.0
    %1082 = vmatpush1.msra.mxu0 %v852
    %1083 = vmatprep.subr.mxu0 0.0
    %1084 = vmatpush1.msra.mxu0 %v853
    %1085 = vmatprep.subr.mxu0 0.0
    %1086 = vmatpush1.msra.mxu0 %v854
    %1087 = vmatprep.subr.mxu0 0.0
    %1088 = vmatpush1.msra.mxu0 %v855
    %1089 = vmatprep.subr.mxu0 0.0
    %1090 = vmatpush1.msra.mxu0 %v856
    %1091 = vmatprep.subr.mxu0 0.0
    %1092 = vmatpush1.msra.mxu0 %v857
    %1093 = vmatprep.subr.mxu0 0.0
    %1094 = vmatpush1.msra.mxu0 %v858
    %1095 = vmatprep.mubr.f32.mxu0 %v762
    %1096 = vmatmul.mubr.f32.gmra.mrb[0].mxu0 %v761
    %v1097 = vpop.f32.mrb[0].mxu0
    %v1098 = vadd.f32 %v1013, %v1097
    %v1099 = vpop.f32.mrb[0].mxu0
    %1100 = vmatprep.mubr.f32.mxu0 %v771
    %1101 = vmatmul.mubr.f32.gmra.mrb[0].mxu0 %v770
    %v1102 = vpop.f32.mrb[0].mxu0
    %v1103 = vadd.f32 %v1018, %v1102
    %v1104 = vpop.f32.mrb[0].mxu0
    %1105 = vmatprep.mubr.f32.mxu0 %v780
    %1106 = vmatmul.mubr.f32.gmra.mrb[0].mxu0 %v779
    %v1107 = vpop.f32.mrb[0].mxu0
    %v1108 = vadd.f32 %v1023, %v1107
    %v1109 = vpop.f32.mrb[0].mxu0
    %1110 = vmatprep.mubr.f32.mxu0 %v789
    %1111 = vmatmul.mubr.f32.gmra.mrb[0].mxu0 %v788
    %v1112 = vpop.f32.mrb[0].mxu0
    %v1113 = vadd.f32 %v1028, %v1112
    %v1114 = vpop.f32.mrb[0].mxu0
    %1115 = vdwg.mxu0
    %1116 = vmatprep.subr.mxu0 0.0
    %1117 = vmatpush1.msra.mxu0 %v859
    %1118 = vmatprep.subr.mxu0 0.0
    %1119 = vmatpush1.msra.mxu0 %v860
    %1120 = vmatprep.subr.mxu0 0.0
    %1121 = vmatpush1.msra.mxu0 %v861
    %1122 = vmatprep.subr.mxu0 0.0
    %1123 = vmatpush1.msra.mxu0 %v862
    %1124 = vmatprep.subr.mxu0 0.0
    %1125 = vmatpush1.msra.mxu0 %v863
    %1126 = vmatprep.subr.mxu0 0.0
    %1127 = vmatpush1.msra.mxu0 %v864
    %1128 = vmatprep.subr.mxu0 0.0
    %1129 = vmatpush1.msra.mxu0 %v865
    %1130 = vmatprep.subr.mxu0 0.0
    %1131 = vmatpush1.msra.mxu0 %v866
    %1132 = vmatprep.subr.mxu0 0.0
    %1133 = vmatpush1.msra.mxu0 %v867
    %1134 = vmatprep.subr.mxu0 0.0
    %1135 = vmatpush1.msra.mxu0 %v868
    %1136 = vmatprep.subr.mxu0 0.0
    %1137 = vmatpush1.msra.mxu0 %v869
    %1138 = vmatprep.subr.mxu0 0.0
    %1139 = vmatpush1.msra.mxu0 %v870
    %1140 = vmatprep.subr.mxu0 0.0
    %1141 = vmatpush1.msra.mxu0 %v871
    %1142 = vmatprep.subr.mxu0 0.0
    %1143 = vmatpush1.msra.mxu0 %v872
    %1144 = vmatprep.subr.mxu0 0.0
    %1145 = vmatpush1.msra.mxu0 %v873
    %1146 = vmatprep.subr.mxu0 0.0
    %1147 = vmatpush1.msra.mxu0 %v874
    %1148 = vmatprep.subr.mxu0 0.0
    %1149 = vmatpush1.msra.mxu0 %v875
    %1150 = vmatprep.subr.mxu0 0.0
    %1151 = vmatpush1.msra.mxu0 %v876
    %1152 = vmatprep.subr.mxu0 0.0
    %1153 = vmatpush1.msra.mxu0 %v877
    %1154 = vmatprep.subr.mxu0 0.0
    %1155 = vmatpush1.msra.mxu0 %v878
    %1156 = vmatprep.subr.mxu0 0.0
    %1157 = vmatpush1.msra.mxu0 %v879
    %1158 = vmatprep.subr.mxu0 0.0
    %1159 = vmatpush1.msra.mxu0 %v880
    %1160 = vmatprep.subr.mxu0 0.0
    %1161 = vmatpush1.msra.mxu0 %v881
    %1162 = vmatprep.subr.mxu0 0.0
    %1163 = vmatpush1.msra.mxu0 %v882
    %1164 = vmatprep.subr.mxu0 0.0
    %1165 = vmatpush1.msra.mxu0 %v883
    %1166 = vmatprep.subr.mxu0 0.0
    %1167 = vmatpush1.msra.mxu0 %v884
    %1168 = vmatprep.subr.mxu0 0.0
    %1169 = vmatpush1.msra.mxu0 %v885
    %1170 = vmatprep.subr.mxu0 0.0
    %1171 = vmatpush1.msra.mxu0 %v886
    %1172 = vmatprep.subr.mxu0 0.0
    %1173 = vmatpush1.msra.mxu0 %v887
    %1174 = vmatprep.subr.mxu0 0.0
    %1175 = vmatpush1.msra.mxu0 %v888
    %1176 = vmatprep.subr.mxu0 0.0
    %1177 = vmatpush1.msra.mxu0 %v889
    %1178 = vmatprep.subr.mxu0 0.0
    %1179 = vmatpush1.msra.mxu0 %v890
    %1180 = vmatprep.mubr.f32.mxu0 %v764
    %1181 = vmatmul.mubr.f32.gmra.mrb[0].mxu0 %v763
    %v1182 = vpop.f32.mrb[0].mxu0
    %v1183 = vadd.f32 %v1098, %v1182
    %v1184 = vpop.f32.mrb[0].mxu0
    %1185 = vmatprep.mubr.f32.mxu0 %v773
    %1186 = vmatmul.mubr.f32.gmra.mrb[0].mxu0 %v772
    %v1187 = vpop.f32.mrb[0].mxu0
    %v1188 = vadd.f32 %v1103, %v1187
    %v1189 = vpop.f32.mrb[0].mxu0
    %1190 = vmatprep.mubr.f32.mxu0 %v782
    %1191 = vmatmul.mubr.f32.gmra.mrb[0].mxu0 %v781
    %v1192 = vpop.f32.mrb[0].mxu0
    %v1193 = vadd.f32 %v1108, %v1192
    %v1194 = vpop.f32.mrb[0].mxu0
    %1195 = vmatprep.mubr.f32.mxu0 %v791
    %1196 = vmatmul.mubr.f32.gmra.mrb[0].mxu0 %v790
    %v1197 = vpop.f32.mrb[0].mxu0
    %v1198 = vadd.f32 %v1113, %v1197
    %v1199 = vpop.f32.mrb[0].mxu0
    %1200 = vdwg.mxu0
    %1201 = vmatprep.subr.mxu0 0.0
    %1202 = vmatpush1.msra.mxu0 %v891
    %1203 = vmatprep.subr.mxu0 0.0
    %1204 = vmatpush1.msra.mxu0 %v892
    %1205 = vmatprep.subr.mxu0 0.0
    %1206 = vmatpush1.msra.mxu0 %v893
    %1207 = vmatprep.subr.mxu0 0.0
    %1208 = vmatpush1.msra.mxu0 %v894
    %1209 = vmatprep.subr.mxu0 0.0
    %1210 = vmatpush1.msra.mxu0 %v895
    %1211 = vmatprep.subr.mxu0 0.0
    %1212 = vmatpush1.msra.mxu0 %v896
    %1213 = vmatprep.subr.mxu0 0.0
    %1214 = vmatpush1.msra.mxu0 %v897
    %1215 = vmatprep.subr.mxu0 0.0
    %1216 = vmatpush1.msra.mxu0 %v898
    %1217 = vmatprep.subr.mxu0 0.0
    %1218 = vmatpush1.msra.mxu0 %v899
    %1219 = vmatprep.subr.mxu0 0.0
    %1220 = vmatpush1.msra.mxu0 %v900
    %1221 = vmatprep.subr.mxu0 0.0
    %1222 = vmatpush1.msra.mxu0 %v901
    %1223 = vmatprep.subr.mxu0 0.0
    %1224 = vmatpush1.msra.mxu0 %v902
    %1225 = vmatprep.subr.mxu0 0.0
    %1226 = vmatpush1.msra.mxu0 %v903
    %1227 = vmatprep.subr.mxu0 0.0
    %1228 = vmatpush1.msra.mxu0 %v904
    %1229 = vmatprep.subr.mxu0 0.0
    %1230 = vmatpush1.msra.mxu0 %v905
    %1231 = vmatprep.subr.mxu0 0.0
    %1232 = vmatpush1.msra.mxu0 %v906
    %1233 = vmatprep.subr.mxu0 0.0
    %1234 = vmatpush1.msra.mxu0 %v907
    %1235 = vmatprep.subr.mxu0 0.0
    %1236 = vmatpush1.msra.mxu0 %v908
    %1237 = vmatprep.subr.mxu0 0.0
    %1238 = vmatpush1.msra.mxu0 %v909
    %1239 = vmatprep.subr.mxu0 0.0
    %1240 = vmatpush1.msra.mxu0 %v910
    %1241 = vmatprep.subr.mxu0 0.0
    %1242 = vmatpush1.msra.mxu0 %v911
    %1243 = vmatprep.subr.mxu0 0.0
    %1244 = vmatpush1.msra.mxu0 %v912
    %1245 = vmatprep.subr.mxu0 0.0
    %1246 = vmatpush1.msra.mxu0 %v913
    %1247 = vmatprep.subr.mxu0 0.0
    %1248 = vmatpush1.msra.mxu0 %v914
    %1249 = vmatprep.subr.mxu0 0.0
    %1250 = vmatpush1.msra.mxu0 %v915
    %1251 = vmatprep.subr.mxu0 0.0
    %1252 = vmatpush1.msra.mxu0 %v916
    %1253 = vmatprep.subr.mxu0 0.0
    %1254 = vmatpush1.msra.mxu0 %v917
    %1255 = vmatprep.subr.mxu0 0.0
    %1256 = vmatpush1.msra.mxu0 %v918
    %1257 = vmatprep.subr.mxu0 0.0
    %1258 = vmatpush1.msra.mxu0 %v919
    %1259 = vmatprep.subr.mxu0 0.0
    %1260 = vmatpush1.msra.mxu0 %v920
    %1261 = vmatprep.subr.mxu0 0.0
    %1262 = vmatpush1.msra.mxu0 %v921
    %1263 = vmatprep.subr.mxu0 0.0
    %1264 = vmatpush1.msra.mxu0 %v922
    %1265 = vmatprep.mubr.f32.mxu0 %v766
    %1266 = vmatmul.mubr.f32.gmra.mrb[0].mxu0 %v765
    %v1267 = vpop.f32.mrb[0].mxu0
    %v1268 = vadd.f32 %v1183, %v1267
    %v1269 = vpop.f32.mrb[0].mxu0
    %1270 = vmatprep.mubr.f32.mxu0 %v775
    %1271 = vmatmul.mubr.f32.gmra.mrb[0].mxu0 %v774
    %v1272 = vpop.f32.mrb[0].mxu0
    %v1273 = vadd.f32 %v1188, %v1272
    %v1274 = vpop.f32.mrb[0].mxu0
    %1275 = vmatprep.mubr.f32.mxu0 %v784
    %1276 = vmatmul.mubr.f32.gmra.mrb[0].mxu0 %v783
    %v1277 = vpop.f32.mrb[0].mxu0
    %v1278 = vadd.f32 %v1193, %v1277
    %v1279 = vpop.f32.mrb[0].mxu0
    %1280 = vmatprep.mubr.f32.mxu0 %v793
    %1281 = vmatmul.mubr.f32.gmra.mrb[0].mxu0 %v792
    %v1282 = vpop.f32.mrb[0].mxu0
    %v1283 = vadd.f32 %v1198, %v1282
    %v1284 = vpop.f32.mrb[0].mxu0
    %1285 = vdwg.mxu0
    %1286 = vmatprep.subr.mxu0 0.0
    %1287 = vmatpush1.msra.mxu0 %v923
    %1288 = vmatprep.subr.mxu0 0.0
    %1289 = vmatpush1.msra.mxu0 %v924
    %1290 = vmatprep.subr.mxu0 0.0
    %1291 = vmatpush1.msra.mxu0 %v925
    %1292 = vmatprep.subr.mxu0 0.0
    %1293 = vmatpush1.msra.mxu0 %v926
    %1294 = vmatprep.subr.mxu0 0.0
    %1295 = vmatpush1.msra.mxu0 %v927
    %1296 = vmatprep.subr.mxu0 0.0
    %1297 = vmatpush1.msra.mxu0 %v928
    %1298 = vmatprep.subr.mxu0 0.0
    %1299 = vmatpush1.msra.mxu0 %v929
    %1300 = vmatprep.subr.mxu0 0.0
    %1301 = vmatpush1.msra.mxu0 %v930
    %1302 = vmatprep.subr.mxu0 0.0
    %1303 = vmatpush1.msra.mxu0 %v931
    %1304 = vmatprep.subr.mxu0 0.0
    %1305 = vmatpush1.msra.mxu0 %v932
    %1306 = vmatprep.subr.mxu0 0.0
    %1307 = vmatpush1.msra.mxu0 %v933
    %1308 = vmatprep.subr.mxu0 0.0
    %1309 = vmatpush1.msra.mxu0 %v934
    %1310 = vmatprep.subr.mxu0 0.0
    %1311 = vmatpush1.msra.mxu0 %v935
    %1312 = vmatprep.subr.mxu0 0.0
    %1313 = vmatpush1.msra.mxu0 %v936
    %1314 = vmatprep.subr.mxu0 0.0
    %1315 = vmatpush1.msra.mxu0 %v937
    %1316 = vmatprep.subr.mxu0 0.0
    %1317 = vmatpush1.msra.mxu0 %v938
    %1318 = vmatprep.subr.mxu0 0.0
    %1319 = vmatpush1.msra.mxu0 0.0
    %1320 = vmatprep.subr.mxu0 0.0
    %1321 = vmatpush1.msra.mxu0 0.0
    %1322 = vmatprep.subr.mxu0 0.0
    %1323 = vmatpush1.msra.mxu0 0.0
    %1324 = vmatprep.subr.mxu0 0.0
    %1325 = vmatpush1.msra.mxu0 0.0
    %1326 = vmatprep.subr.mxu0 0.0
    %1327 = vmatpush1.msra.mxu0 0.0
    %1328 = vmatprep.subr.mxu0 0.0
    %1329 = vmatpush1.msra.mxu0 0.0
    %1330 = vmatprep.subr.mxu0 0.0
    %1331 = vmatpush1.msra.mxu0 0.0
    %1332 = vmatprep.subr.mxu0 0.0
    %1333 = vmatpush1.msra.mxu0 0.0
    %1334 = vmatprep.subr.mxu0 0.0
    %1335 = vmatpush1.msra.mxu0 0.0
    %1336 = vmatprep.subr.mxu0 0.0
    %1337 = vmatpush1.msra.mxu0 0.0
    %1338 = vmatprep.subr.mxu0 0.0
    %1339 = vmatpush1.msra.mxu0 0.0
    %1340 = vmatprep.subr.mxu0 0.0
    %1341 = vmatpush1.msra.mxu0 0.0
    %1342 = vmatprep.subr.mxu0 0.0
    %1343 = vmatpush1.msra.mxu0 0.0
    %1344 = vmatprep.subr.mxu0 0.0
    %1345 = vmatpush1.msra.mxu0 0.0
    %1346 = vmatprep.subr.mxu0 0.0
    %1347 = vmatpush1.msra.mxu0 0.0
    %1348 = vmatprep.subr.mxu0 0.0
    %1349 = vmatpush1.msra.mxu0 0.0
    %1350 = vmatprep.mubr.f32.mxu0 0.0
    %1351 = vmatmul.mubr.f32.gmra.mrb[0].mxu0 %v767
    %v1352 = vpop.f32.mrb[0].mxu0
    %v1353 = vadd.f32 %v1268, %v1352
    %v1354 = vpop.f32.mrb[0].mxu0
    %1355 = vmatprep.mubr.f32.mxu0 0.0
    %1356 = vmatmul.mubr.f32.gmra.mrb[0].mxu0 %v776
    %v1357 = vpop.f32.mrb[0].mxu0
    %v1358 = vadd.f32 %v1273, %v1357
    %v1359 = vpop.f32.mrb[0].mxu0
    %1360 = vmatprep.mubr.f32.mxu0 0.0
    %1361 = vmatmul.mubr.f32.gmra.mrb[0].mxu0 %v785
    %v1362 = vpop.f32.mrb[0].mxu0
    %v1363 = vadd.f32 %v1278, %v1362
    %v1364 = vpop.f32.mrb[0].mxu0
    %1365 = vmatprep.mubr.f32.mxu0 0.0
    %1366 = vmatmul.mubr.f32.gmra.mrb[0].mxu0 %v794
    %v1367 = vpop.f32.mrb[0].mxu0
    %v1368 = vadd.f32 %v1283, %v1367
    %v1369 = vpop.f32.mrb[0].mxu0
    %1370 = vdwg.mxu0
    %v1371 = vmul.f32 %v1353, 0.2
    %v1372 = vmul.f32 %v1358, 0.2
    %v1373 = vmul.f32 %v1363, 0.2
    %v1374 = vmul.f32 %v1368, 0.2
    %v1375 = vmax.f32 %v1353, %v1371
    %v1376 = vmax.f32 %v1358, %v1372
    %v1377 = vmax.f32 %v1363, %v1373
    %v1378 = vmax.f32 %v1368, %v1374
    %v1379 = vld [vmem:[%s7] sm:$0x1]
    %v1381 = vlaneseq
    %v1382 = vshrl.u32 %v1381, 7
    %v1383 = vsub.s32 0, %v1382
    %v1384 = vrot.slane %v1379, %v1383
    %v1386 = vmul.f32 %v1375, %v1384
    %v1387 = vmul.f32 %v1376, %v1384
    %v1388 = vmul.f32 %v1377, %v1384
    %v1389 = vmul.f32 %v1378, %v1384
    %v1390 = vld [vmem:[%s8] sm:$0x1]
    %v1392 = vlaneseq
    %v1393 = vshrl.u32 %v1392, 7
    %v1394 = vsub.s32 0, %v1393
    %v1395 = vrot.slane %v1390, %v1394
    %v1397 = vadd.f32 %v1386, %v1395
    %v1398 = vadd.f32 %v1387, %v1395
    %v1399 = vadd.f32 %v1388, %v1395
    %v1400 = vadd.f32 %v1389, %v1395
    %1401 = vst [vmem:[#allocation13] sm:$0xff] %v1397
    %1402 = vst [vmem:[#allocation13 + $0x8] sm:$0xff] %v1398
    %1403 = vst [vmem:[#allocation13 + $0x10] sm:$0xff] %v1399
    %1404 = vst [vmem:[#allocation13 + $0x18] sm:$0xff] %v1400
    %1405 = vst [vmem:[#allocation3] sm:$0xff] 0.0
    %1406 = vst [vmem:[#allocation3 + $0x8] sm:$0xff] 0.0
    %1407 = vst [vmem:[#allocation3 + $0x60] sm:$0xff] 0.0
    %1408 = vst [vmem:[#allocation3 + $0x68] sm:$0xff] 0.0
    %1409 = vst [vmem:[#allocation3] sm:$0xff] 0.0
    %1410 = vst [vmem:[#allocation3 + $0x10] sm:$0xff] 0.0
    %1411 = vst [vmem:[#allocation3 + $0x20] sm:$0xff] 0.0
    %1412 = vst [vmem:[#allocation3 + $0x30] sm:$0xff] 0.0
    %1413 = vst [vmem:[#allocation3 + $0x40] sm:$0xff] 0.0
    %1414 = vst [vmem:[#allocation3 + $0x50] sm:$0xff] 0.0
    %1415 = vst [vmem:[#allocation3 + $0x60] sm:$0xff] 0.0
    %1416 = vst [vmem:[#allocation3 + $0x70] sm:$0xff] 0.0
    %1417 = vst [vmem:[#allocation3 + $0x80] sm:$0xff] 0.0
    %1418 = vst [vmem:[#allocation3 + $0x90] sm:$0xff] 0.0
    %1419 = vst [vmem:[#allocation3 + $0xa0] sm:$0xff] 0.0
    %1420 = vst [vmem:[#allocation3 + $0xb0] sm:$0xff] 0.0
    %v1425 = vcombine.high %v1397, %v1397
    %v1426 = vcombine.high %v1398, %v1398
    %v1427 = vcombine.high %v1399, %v1399
    %v1428 = vcombine.high %v1400, %v1400
    %s1433 = scalar_lea.vmem [#allocation3], 16
    %1434 = vst [vmem:[%s1433 + $0x8] sm:$0xf] %v1397
    %1435 = vst [vmem:[%s1433 + $0x18] sm:$0xf] %v1425
    %1436 = vst [vmem:[%s1433 + $0x28] sm:$0xf] %v1398
    %1437 = vst [vmem:[%s1433 + $0x38] sm:$0xf] %v1426
    %1438 = vst [vmem:[%s1433 + $0x68] sm:$0xf] %v1399
    %1439 = vst [vmem:[%s1433 + $0x78] sm:$0xf] %v1427
    %1440 = vst [vmem:[%s1433 + $0x88] sm:$0xf] %v1400
    %1441 = vst [vmem:[%s1433 + $0x98] sm:$0xf] %v1428
    %s1442 = scalar_lea.vmem [#allocation3], 7
    %v1443 = vld [vmem:[%s1442] ss:$2 sm:$0x3]
    %s1444 = scalar_lea.vmem [#allocation3], 39
    %v1445 = vld [vmem:[%s1444] ss:$2 sm:$0x3]
    %s1446 = scalar_lea.vmem [#allocation3], 103
    %v1447 = vld [vmem:[%s1446] ss:$2 sm:$0x3]
    %s1448 = scalar_lea.vmem [#allocation3], 135
    %v1449 = vld [vmem:[%s1448] ss:$2 sm:$0x3]
    %v1454 = vcombine.low %v1443, %v1445
    %v1455 = vcombine.low %v1447, %v1449
    %v1457 = vunpack.c.l.s4 1983009808
    %v1458 = vunpack.c.0.s8 %v1457
    %v1459 = vlaneseq
    %v1460 = vshrl.u32 %v1459, 7
    %v1461 = vsub.s32 %v1458, %v1460
    %v1462 = vrot.slane %v1454, %v1461
    %v1464 = vunpack.c.l.s4 1983009808
    %v1465 = vunpack.c.0.s8 %v1464
    %v1466 = vlaneseq
    %v1467 = vshrl.u32 %v1466, 7
    %v1468 = vsub.s32 %v1465, %v1467
    %v1469 = vrot.slane %v1455, %v1468
    %v1470 = vcombine.low %v1462, %v1469
    %1472 = vst [vmem:[#allocation5] sm:$0xff] %v1470
    %s1473 = scalar_lea.vmem [#allocation3], 8
    %v1474 = vld [vmem:[%s1473] ss:$2 sm:$0x3]
    %s1475 = scalar_lea.vmem [#allocation3], 40
    %v1476 = vld [vmem:[%s1475] ss:$2 sm:$0x3]
    %s1477 = scalar_lea.vmem [#allocation3], 104
    %v1478 = vld [vmem:[%s1477] ss:$2 sm:$0x3]
    %s1479 = scalar_lea.vmem [#allocation3], 136
    %v1480 = vld [vmem:[%s1479] ss:$2 sm:$0x3]
    %v1485 = vcombine.low %v1474, %v1476
    %v1486 = vcombine.low %v1478, %v1480
    %v1488 = vunpack.c.l.s4 1983009808
    %v1489 = vunpack.c.0.s8 %v1488
    %v1490 = vlaneseq
    %v1491 = vshrl.u32 %v1490, 7
    %v1492 = vsub.s32 %v1489, %v1491
    %v1493 = vrot.slane %v1485, %v1492
    %v1495 = vunpack.c.l.s4 1983009808
    %v1496 = vunpack.c.0.s8 %v1495
    %v1497 = vlaneseq
    %v1498 = vshrl.u32 %v1497, 7
    %v1499 = vsub.s32 %v1496, %v1498
    %v1500 = vrot.slane %v1486, %v1499
    %v1501 = vcombine.low %v1493, %v1500
    %1503 = vst [vmem:[#allocation5 + $0x8] sm:$0xff] %v1501
    %s1504 = scalar_lea.vmem [#allocation3], 9
    %v1505 = vld [vmem:[%s1504] ss:$2 sm:$0x3]
    %s1506 = scalar_lea.vmem [#allocation3], 41
    %v1507 = vld [vmem:[%s1506] ss:$2 sm:$0x3]
    %s1508 = scalar_lea.vmem [#allocation3], 105
    %v1509 = vld [vmem:[%s1508] ss:$2 sm:$0x3]
    %s1510 = scalar_lea.vmem [#allocation3], 137
    %v1511 = vld [vmem:[%s1510] ss:$2 sm:$0x3]
    %v1516 = vcombine.low %v1505, %v1507
    %v1517 = vcombine.low %v1509, %v1511
    %v1519 = vunpack.c.l.s4 1983009808
    %v1520 = vunpack.c.0.s8 %v1519
    %v1521 = vlaneseq
    %v1522 = vshrl.u32 %v1521, 7
    %v1523 = vsub.s32 %v1520, %v1522
    %v1524 = vrot.slane %v1516, %v1523
    %v1526 = vunpack.c.l.s4 1983009808
    %v1527 = vunpack.c.0.s8 %v1526
    %v1528 = vlaneseq
    %v1529 = vshrl.u32 %v1528, 7
    %v1530 = vsub.s32 %v1527, %v1529
    %v1531 = vrot.slane %v1517, %v1530
    %v1532 = vcombine.low %v1524, %v1531
    %1534 = vst [vmem:[#allocation5 + $0x10] sm:$0xff] %v1532
    %s1535 = scalar_lea.vmem %s1433, 7 [#allocation3]
    %v1536 = vld [vmem:[%s1535] ss:$2 sm:$0x3]
    %s1537 = scalar_lea.vmem %s1433, 39 [#allocation3]
    %v1538 = vld [vmem:[%s1537] ss:$2 sm:$0x3]
    %s1539 = scalar_lea.vmem %s1433, 103 [#allocation3]
    %v1540 = vld [vmem:[%s1539] ss:$2 sm:$0x3]
    %s1541 = scalar_lea.vmem %s1433, 135 [#allocation3]
    %v1542 = vld [vmem:[%s1541] ss:$2 sm:$0x3]
    %v1547 = vcombine.low %v1536, %v1538
    %v1548 = vcombine.low %v1540, %v1542
    %v1550 = vunpack.c.l.s4 1983009808
    %v1551 = vunpack.c.0.s8 %v1550
    %v1552 = vlaneseq
    %v1553 = vshrl.u32 %v1552, 7
    %v1554 = vsub.s32 %v1551, %v1553
    %v1555 = vrot.slane %v1547, %v1554
    %v1557 = vunpack.c.l.s4 1983009808
    %v1558 = vunpack.c.0.s8 %v1557
    %v1559 = vlaneseq
    %v1560 = vshrl.u32 %v1559, 7
    %v1561 = vsub.s32 %v1558, %v1560
    %v1562 = vrot.slane %v1548, %v1561
    %v1563 = vcombine.low %v1555, %v1562
    %1565 = vst [vmem:[#allocation5 + $0x18] sm:$0xff] %v1563
    %s1566 = scalar_lea.vmem %s1433, 8 [#allocation3]
    %v1567 = vld [vmem:[%s1566] ss:$2 sm:$0x3]
    %s1568 = scalar_lea.vmem %s1433, 40 [#allocation3]
    %v1569 = vld [vmem:[%s1568] ss:$2 sm:$0x3]
    %s1570 = scalar_lea.vmem %s1433, 104 [#allocation3]
    %v1571 = vld [vmem:[%s1570] ss:$2 sm:$0x3]
    %s1572 = scalar_lea.vmem %s1433, 136 [#allocation3]
    %v1573 = vld [vmem:[%s1572] ss:$2 sm:$0x3]
    %v1578 = vcombine.low %v1567, %v1569
    %v1579 = vcombine.low %v1571, %v1573
    %v1581 = vunpack.c.l.s4 1983009808
    %v1582 = vunpack.c.0.s8 %v1581
    %v1583 = vlaneseq
    %v1584 = vshrl.u32 %v1583, 7
    %v1585 = vsub.s32 %v1582, %v1584
    %v1586 = vrot.slane %v1578, %v1585
    %v1588 = vunpack.c.l.s4 1983009808
    %v1589 = vunpack.c.0.s8 %v1588
    %v1590 = vlaneseq
    %v1591 = vshrl.u32 %v1590, 7
    %v1592 = vsub.s32 %v1589, %v1591
    %v1593 = vrot.slane %v1579, %v1592
    %v1594 = vcombine.low %v1586, %v1593
    %1596 = vst [vmem:[#allocation5 + $0x20] sm:$0xff] %v1594
    %s1597 = scalar_lea.vmem %s1433, 9 [#allocation3]
    %v1598 = vld [vmem:[%s1597] ss:$2 sm:$0x3]
    %s1599 = scalar_lea.vmem %s1433, 41 [#allocation3]
    %v1600 = vld [vmem:[%s1599] ss:$2 sm:$0x3]
    %s1601 = scalar_lea.vmem %s1433, 105 [#allocation3]
    %v1602 = vld [vmem:[%s1601] ss:$2 sm:$0x3]
    %s1603 = scalar_lea.vmem %s1433, 137 [#allocation3]
    %v1604 = vld [vmem:[%s1603] ss:$2 sm:$0x3]
    %v1609 = vcombine.low %v1598, %v1600
    %v1610 = vcombine.low %v1602, %v1604
    %v1612 = vunpack.c.l.s4 1983009808
    %v1613 = vunpack.c.0.s8 %v1612
    %v1614 = vlaneseq
    %v1615 = vshrl.u32 %v1614, 7
    %v1616 = vsub.s32 %v1613, %v1615
    %v1617 = vrot.slane %v1609, %v1616
    %v1619 = vunpack.c.l.s4 1983009808
    %v1620 = vunpack.c.0.s8 %v1619
    %v1621 = vlaneseq
    %v1622 = vshrl.u32 %v1621, 7
    %v1623 = vsub.s32 %v1620, %v1622
    %v1624 = vrot.slane %v1610, %v1623
    %v1625 = vcombine.low %v1617, %v1624
    %1627 = vst [vmem:[#allocation5 + $0x28] sm:$0xff] %v1625
    %s1628 = scalar_lea.vmem [#allocation3], 32
    %s1629 = scalar_lea.vmem %s1628, 7 [#allocation3]
    %v1630 = vld [vmem:[%s1629] ss:$2 sm:$0x3]
    %s1631 = scalar_lea.vmem %s1628, 39 [#allocation3]
    %v1632 = vld [vmem:[%s1631] ss:$2 sm:$0x3]
    %s1633 = scalar_lea.vmem %s1628, 103 [#allocation3]
    %v1634 = vld [vmem:[%s1633] ss:$2 sm:$0x3]
    %s1635 = scalar_lea.vmem %s1628, 135 [#allocation3]
    %v1636 = vld [vmem:[%s1635] ss:$2 sm:$0x3]
    %v1641 = vcombine.low %v1630, %v1632
    %v1642 = vcombine.low %v1634, %v1636
    %v1644 = vunpack.c.l.s4 1983009808
    %v1645 = vunpack.c.0.s8 %v1644
    %v1646 = vlaneseq
    %v1647 = vshrl.u32 %v1646, 7
    %v1648 = vsub.s32 %v1645, %v1647
    %v1649 = vrot.slane %v1641, %v1648
    %v1651 = vunpack.c.l.s4 1983009808
    %v1652 = vunpack.c.0.s8 %v1651
    %v1653 = vlaneseq
    %v1654 = vshrl.u32 %v1653, 7
    %v1655 = vsub.s32 %v1652, %v1654
    %v1656 = vrot.slane %v1642, %v1655
    %v1657 = vcombine.low %v1649, %v1656
    %1659 = vst [vmem:[#allocation5 + $0x30] sm:$0xff] %v1657
    %s1660 = scalar_lea.vmem %s1628, 8 [#allocation3]
    %v1661 = vld [vmem:[%s1660] ss:$2 sm:$0x3]
    %s1662 = scalar_lea.vmem %s1628, 40 [#allocation3]
    %v1663 = vld [vmem:[%s1662] ss:$2 sm:$0x3]
    %s1664 = scalar_lea.vmem %s1628, 104 [#allocation3]
    %v1665 = vld [vmem:[%s1664] ss:$2 sm:$0x3]
    %s1666 = scalar_lea.vmem %s1628, 136 [#allocation3]
    %v1667 = vld [vmem:[%s1666] ss:$2 sm:$0x3]
    %v1672 = vcombine.low %v1661, %v1663
    %v1673 = vcombine.low %v1665, %v1667
    %v1675 = vunpack.c.l.s4 1983009808
    %v1676 = vunpack.c.0.s8 %v1675
    %v1677 = vlaneseq
    %v1678 = vshrl.u32 %v1677, 7
    %v1679 = vsub.s32 %v1676, %v1678
    %v1680 = vrot.slane %v1672, %v1679
    %v1682 = vunpack.c.l.s4 1983009808
    %v1683 = vunpack.c.0.s8 %v1682
    %v1684 = vlaneseq
    %v1685 = vshrl.u32 %v1684, 7
    %v1686 = vsub.s32 %v1683, %v1685
    %v1687 = vrot.slane %v1673, %v1686
    %v1688 = vcombine.low %v1680, %v1687
    %1690 = vst [vmem:[#allocation5 + $0x38] sm:$0xff] %v1688
    %s1691 = scalar_lea.vmem %s1628, 9 [#allocation3]
    %v1692 = vld [vmem:[%s1691] ss:$2 sm:$0x3]
    %s1693 = scalar_lea.vmem %s1628, 41 [#allocation3]
    %v1694 = vld [vmem:[%s1693] ss:$2 sm:$0x3]
    %s1695 = scalar_lea.vmem %s1628, 105 [#allocation3]
    %v1696 = vld [vmem:[%s1695] ss:$2 sm:$0x3]
    %s1697 = scalar_lea.vmem %s1628, 137 [#allocation3]
    %v1698 = vld [vmem:[%s1697] ss:$2 sm:$0x3]
    %v1703 = vcombine.low %v1692, %v1694
    %v1704 = vcombine.low %v1696, %v1698
    %v1706 = vunpack.c.l.s4 1983009808
    %v1707 = vunpack.c.0.s8 %v1706
    %v1708 = vlaneseq
    %v1709 = vshrl.u32 %v1708, 7
    %v1710 = vsub.s32 %v1707, %v1709
    %v1711 = vrot.slane %v1703, %v1710
    %v1713 = vunpack.c.l.s4 1983009808
    %v1714 = vunpack.c.0.s8 %v1713
    %v1715 = vlaneseq
    %v1716 = vshrl.u32 %v1715, 7
    %v1717 = vsub.s32 %v1714, %v1716
    %v1718 = vrot.slane %v1704, %v1717
    %v1719 = vcombine.low %v1711, %v1718
    %1721 = vst [vmem:[#allocation5 + $0x40] sm:$0xff] %v1719
    %v1722 = vld [vmem:[#allocation5] sm:$0xff]
    %v1723 = vld [vmem:[#allocation5 + $0x8] sm:$0xff]
    %v1724 = vld [vmem:[#allocation5 + $0x10] sm:$0xff]
    %v1725 = vld [vmem:[#allocation5 + $0x18] sm:$0xff]
    %v1726 = vld [vmem:[#allocation5 + $0x20] sm:$0xff]
    %v1727 = vld [vmem:[#allocation5 + $0x28] sm:$0xff]
    %v1728 = vld [vmem:[#allocation5 + $0x30] sm:$0xff]
    %v1729 = vld [vmem:[#allocation5 + $0x38] sm:$0xff]
    %v1730 = vld [vmem:[#allocation5 + $0x40] sm:$0xff]
    %v1731 = vld [vmem:[#allocation10] sm:$0xff]
    %v1732 = vld [vmem:[#allocation10 + $0x8] sm:$0xff]
    %v1733 = vld [vmem:[#allocation10 + $0x10] sm:$0xff]
    %v1734 = vld [vmem:[#allocation10 + $0x18] sm:$0xff]
    %v1735 = vld [vmem:[#allocation10 + $0x20] sm:$0xff]
    %v1736 = vld [vmem:[#allocation10 + $0x28] sm:$0xff]
    %v1737 = vld [vmem:[#allocation10 + $0x30] sm:$0xff]
    %v1738 = vld [vmem:[#allocation10 + $0x38] sm:$0xff]
    %v1739 = vld [vmem:[#allocation10 + $0x40] sm:$0xff]
    %v1740 = vld [vmem:[#allocation10 + $0x48] sm:$0xff]
    %v1741 = vld [vmem:[#allocation10 + $0x50] sm:$0xff]
    %v1742 = vld [vmem:[#allocation10 + $0x58] sm:$0xff]
    %v1743 = vld [vmem:[#allocation10 + $0x60] sm:$0xff]
    %v1744 = vld [vmem:[#allocation10 + $0x68] sm:$0xff]
    %v1745 = vld [vmem:[#allocation10 + $0x70] sm:$0xff]
    %v1746 = vld [vmem:[#allocation10 + $0x78] sm:$0xff]
    %v1747 = vld [vmem:[#allocation10 + $0x80] sm:$0xff]
    %v1748 = vld [vmem:[#allocation10 + $0x88] sm:$0xff]
    %v1749 = vld [vmem:[#allocation10 + $0x90] sm:$0xff]
    %v1750 = vld [vmem:[#allocation10 + $0x98] sm:$0xff]
    %v1751 = vld [vmem:[#allocation10 + $0xa0] sm:$0xff]
    %v1752 = vld [vmem:[#allocation10 + $0xa8] sm:$0xff]
    %v1753 = vld [vmem:[#allocation10 + $0xb0] sm:$0xff]
    %v1754 = vld [vmem:[#allocation10 + $0xb8] sm:$0xff]
    %v1755 = vld [vmem:[#allocation10 + $0xc0] sm:$0xff]
    %v1756 = vld [vmem:[#allocation10 + $0xc8] sm:$0xff]
    %v1757 = vld [vmem:[#allocation10 + $0xd0] sm:$0xff]
    %v1758 = vld [vmem:[#allocation10 + $0xd8] sm:$0xff]
    %v1759 = vld [vmem:[#allocation10 + $0xe0] sm:$0xff]
    %v1760 = vld [vmem:[#allocation10 + $0xe8] sm:$0xff]
    %v1761 = vld [vmem:[#allocation10 + $0xf0] sm:$0xff]
    %v1762 = vld [vmem:[#allocation10 + $0xf8] sm:$0xff]
    %v1763 = vld [vmem:[#allocation10 + $0x100] sm:$0xff]
    %v1764 = vld [vmem:[#allocation10 + $0x108] sm:$0xff]
    %v1765 = vld [vmem:[#allocation10 + $0x110] sm:$0xff]
    %v1766 = vld [vmem:[#allocation10 + $0x118] sm:$0xff]
    %v1767 = vld [vmem:[#allocation10 + $0x120] sm:$0xff]
    %v1768 = vld [vmem:[#allocation10 + $0x128] sm:$0xff]
    %v1769 = vld [vmem:[#allocation10 + $0x130] sm:$0xff]
    %v1770 = vld [vmem:[#allocation10 + $0x138] sm:$0xff]
    %v1771 = vld [vmem:[#allocation10 + $0x140] sm:$0xff]
    %v1772 = vld [vmem:[#allocation10 + $0x148] sm:$0xff]
    %v1773 = vld [vmem:[#allocation10 + $0x150] sm:$0xff]
    %v1774 = vld [vmem:[#allocation10 + $0x158] sm:$0xff]
    %v1775 = vld [vmem:[#allocation10 + $0x160] sm:$0xff]
    %v1776 = vld [vmem:[#allocation10 + $0x168] sm:$0xff]
    %v1777 = vld [vmem:[#allocation10 + $0x170] sm:$0xff]
    %v1778 = vld [vmem:[#allocation10 + $0x178] sm:$0xff]
    %v1779 = vld [vmem:[#allocation10 + $0x180] sm:$0xff]
    %v1780 = vld [vmem:[#allocation10 + $0x188] sm:$0xff]
    %v1781 = vld [vmem:[#allocation10 + $0x190] sm:$0xff]
    %v1782 = vld [vmem:[#allocation10 + $0x198] sm:$0xff]
    %v1783 = vld [vmem:[#allocation10 + $0x1a0] sm:$0xff]
    %v1784 = vld [vmem:[#allocation10 + $0x1a8] sm:$0xff]
    %v1785 = vld [vmem:[#allocation10 + $0x1b0] sm:$0xff]
    %v1786 = vld [vmem:[#allocation10 + $0x1b8] sm:$0xff]
    %v1787 = vld [vmem:[#allocation10 + $0x1c0] sm:$0xff]
    %v1788 = vld [vmem:[#allocation10 + $0x1c8] sm:$0xff]
    %v1789 = vld [vmem:[#allocation10 + $0x1d0] sm:$0xff]
    %v1790 = vld [vmem:[#allocation10 + $0x1d8] sm:$0xff]
    %v1791 = vld [vmem:[#allocation10 + $0x1e0] sm:$0xff]
    %v1792 = vld [vmem:[#allocation10 + $0x1e8] sm:$0xff]
    %v1793 = vld [vmem:[#allocation10 + $0x1f0] sm:$0xff]
    %v1794 = vld [vmem:[#allocation10 + $0x1f8] sm:$0xff]
    %v1795 = vld [vmem:[#allocation10 + $0x200] sm:$0xff]
    %v1796 = vld [vmem:[#allocation10 + $0x208] sm:$0xff]
    %v1797 = vld [vmem:[#allocation10 + $0x210] sm:$0xff]
    %v1798 = vld [vmem:[#allocation10 + $0x218] sm:$0xff]
    %v1799 = vld [vmem:[#allocation10 + $0x220] sm:$0xff]
    %v1800 = vld [vmem:[#allocation10 + $0x228] sm:$0xff]
    %v1801 = vld [vmem:[#allocation10 + $0x230] sm:$0xff]
    %v1802 = vld [vmem:[#allocation10 + $0x238] sm:$0xff]
    %v1803 = vld [vmem:[#allocation10 + $0x240] sm:$0xff]
    %v1804 = vld [vmem:[#allocation10 + $0x248] sm:$0xff]
    %v1805 = vld [vmem:[#allocation10 + $0x250] sm:$0xff]
    %v1806 = vld [vmem:[#allocation10 + $0x258] sm:$0xff]
    %v1807 = vld [vmem:[#allocation10 + $0x260] sm:$0xff]
    %v1808 = vld [vmem:[#allocation10 + $0x268] sm:$0xff]
    %v1809 = vld [vmem:[#allocation10 + $0x270] sm:$0xff]
    %v1810 = vld [vmem:[#allocation10 + $0x278] sm:$0xff]
    %v1811 = vld [vmem:[#allocation10 + $0x280] sm:$0xff]
    %v1812 = vld [vmem:[#allocation10 + $0x288] sm:$0xff]
    %v1813 = vld [vmem:[#allocation10 + $0x290] sm:$0xff]
    %v1814 = vld [vmem:[#allocation10 + $0x298] sm:$0xff]
    %v1815 = vld [vmem:[#allocation10 + $0x2a0] sm:$0xff]
    %v1816 = vld [vmem:[#allocation10 + $0x2a8] sm:$0xff]
    %v1817 = vld [vmem:[#allocation10 + $0x2b0] sm:$0xff]
    %v1818 = vld [vmem:[#allocation10 + $0x2b8] sm:$0xff]
    %v1819 = vld [vmem:[#allocation10 + $0x2c0] sm:$0xff]
    %v1820 = vld [vmem:[#allocation10 + $0x2c8] sm:$0xff]
    %v1821 = vld [vmem:[#allocation10 + $0x2d0] sm:$0xff]
    %v1822 = vld [vmem:[#allocation10 + $0x2d8] sm:$0xff]
    %v1823 = vld [vmem:[#allocation10 + $0x2e0] sm:$0xff]
    %v1824 = vld [vmem:[#allocation10 + $0x2e8] sm:$0xff]
    %v1825 = vld [vmem:[#allocation10 + $0x2f0] sm:$0xff]
    %v1826 = vld [vmem:[#allocation10 + $0x2f8] sm:$0xff]
    %v1827 = vld [vmem:[#allocation10 + $0x300] sm:$0xff]
    %v1828 = vld [vmem:[#allocation10 + $0x308] sm:$0xff]
    %v1829 = vld [vmem:[#allocation10 + $0x310] sm:$0xff]
    %v1830 = vld [vmem:[#allocation10 + $0x318] sm:$0xff]
    %v1831 = vld [vmem:[#allocation10 + $0x320] sm:$0xff]
    %v1832 = vld [vmem:[#allocation10 + $0x328] sm:$0xff]
    %v1833 = vld [vmem:[#allocation10 + $0x330] sm:$0xff]
    %v1834 = vld [vmem:[#allocation10 + $0x338] sm:$0xff]
    %v1835 = vld [vmem:[#allocation10 + $0x340] sm:$0xff]
    %v1836 = vld [vmem:[#allocation10 + $0x348] sm:$0xff]
    %v1837 = vld [vmem:[#allocation10 + $0x350] sm:$0xff]
    %v1838 = vld [vmem:[#allocation10 + $0x358] sm:$0xff]
    %v1839 = vld [vmem:[#allocation10 + $0x360] sm:$0xff]
    %v1840 = vld [vmem:[#allocation10 + $0x368] sm:$0xff]
    %v1841 = vld [vmem:[#allocation10 + $0x370] sm:$0xff]
    %v1842 = vld [vmem:[#allocation10 + $0x378] sm:$0xff]
    %v1843 = vld [vmem:[#allocation10 + $0x380] sm:$0xff]
    %v1844 = vld [vmem:[#allocation10 + $0x388] sm:$0xff]
    %v1845 = vld [vmem:[#allocation10 + $0x390] sm:$0xff]
    %v1846 = vld [vmem:[#allocation10 + $0x398] sm:$0xff]
    %v1847 = vld [vmem:[#allocation10 + $0x3a0] sm:$0xff]
    %v1848 = vld [vmem:[#allocation10 + $0x3a8] sm:$0xff]
    %v1849 = vld [vmem:[#allocation10 + $0x3b0] sm:$0xff]
    %v1850 = vld [vmem:[#allocation10 + $0x3b8] sm:$0xff]
    %v1851 = vld [vmem:[#allocation10 + $0x3c0] sm:$0xff]
    %v1852 = vld [vmem:[#allocation10 + $0x3c8] sm:$0xff]
    %v1853 = vld [vmem:[#allocation10 + $0x3d0] sm:$0xff]
    %v1854 = vld [vmem:[#allocation10 + $0x3d8] sm:$0xff]
    %v1855 = vld [vmem:[#allocation10 + $0x3e0] sm:$0xff]
    %v1856 = vld [vmem:[#allocation10 + $0x3e8] sm:$0xff]
    %v1857 = vld [vmem:[#allocation10 + $0x3f0] sm:$0xff]
    %v1858 = vld [vmem:[#allocation10 + $0x3f8] sm:$0xff]
    %v1859 = vld [vmem:[#allocation10 + $0x400] sm:$0xff]
    %v1860 = vld [vmem:[#allocation10 + $0x408] sm:$0xff]
    %v1861 = vld [vmem:[#allocation10 + $0x410] sm:$0xff]
    %v1862 = vld [vmem:[#allocation10 + $0x418] sm:$0xff]
    %v1863 = vld [vmem:[#allocation10 + $0x420] sm:$0xff]
    %v1864 = vld [vmem:[#allocation10 + $0x428] sm:$0xff]
    %v1865 = vld [vmem:[#allocation10 + $0x430] sm:$0xff]
    %v1866 = vld [vmem:[#allocation10 + $0x438] sm:$0xff]
    %v1867 = vld [vmem:[#allocation10 + $0x440] sm:$0xff]
    %v1868 = vld [vmem:[#allocation10 + $0x448] sm:$0xff]
    %v1869 = vld [vmem:[#allocation10 + $0x450] sm:$0xff]
    %v1870 = vld [vmem:[#allocation10 + $0x458] sm:$0xff]
    %v1871 = vld [vmem:[#allocation10 + $0x460] sm:$0xff]
    %v1872 = vld [vmem:[#allocation10 + $0x468] sm:$0xff]
    %v1873 = vld [vmem:[#allocation10 + $0x470] sm:$0xff]
    %v1874 = vld [vmem:[#allocation10 + $0x478] sm:$0xff]
    %v1875 = vld [vmem:[%s10] sm:$0x1]
    %v1877 = vlaneseq
    %v1878 = vshrl.u32 %v1877, 7
    %v1879 = vsub.s32 0, %v1878
    %v1880 = vrot.slane %v1875, %v1879
    %1882 = vmatprep.subr.mxu0 0.0
    %1883 = vmatpush1.msra.mxu0 %v1731
    %1884 = vmatprep.subr.mxu0 0.0
    %1885 = vmatpush1.msra.mxu0 %v1732
    %1886 = vmatprep.subr.mxu0 0.0
    %1887 = vmatpush1.msra.mxu0 %v1733
    %1888 = vmatprep.subr.mxu0 0.0
    %1889 = vmatpush1.msra.mxu0 %v1734
    %1890 = vmatprep.subr.mxu0 0.0
    %1891 = vmatpush1.msra.mxu0 %v1735
    %1892 = vmatprep.subr.mxu0 0.0
    %1893 = vmatpush1.msra.mxu0 %v1736
    %1894 = vmatprep.subr.mxu0 0.0
    %1895 = vmatpush1.msra.mxu0 %v1737
    %1896 = vmatprep.subr.mxu0 0.0
    %1897 = vmatpush1.msra.mxu0 %v1738
    %1898 = vmatprep.subr.mxu0 0.0
    %1899 = vmatpush1.msra.mxu0 %v1739
    %1900 = vmatprep.subr.mxu0 0.0
    %1901 = vmatpush1.msra.mxu0 %v1740
    %1902 = vmatprep.subr.mxu0 0.0
    %1903 = vmatpush1.msra.mxu0 %v1741
    %1904 = vmatprep.subr.mxu0 0.0
    %1905 = vmatpush1.msra.mxu0 %v1742
    %1906 = vmatprep.subr.mxu0 0.0
    %1907 = vmatpush1.msra.mxu0 %v1743
    %1908 = vmatprep.subr.mxu0 0.0
    %1909 = vmatpush1.msra.mxu0 %v1744
    %1910 = vmatprep.subr.mxu0 0.0
    %1911 = vmatpush1.msra.mxu0 %v1745
    %1912 = vmatprep.subr.mxu0 0.0
    %1913 = vmatpush1.msra.mxu0 %v1746
    %1914 = vmatprep.subr.mxu0 0.0
    %1915 = vmatpush1.msra.mxu0 %v1747
    %1916 = vmatprep.subr.mxu0 0.0
    %1917 = vmatpush1.msra.mxu0 %v1748
    %1918 = vmatprep.subr.mxu0 0.0
    %1919 = vmatpush1.msra.mxu0 %v1749
    %1920 = vmatprep.subr.mxu0 0.0
    %1921 = vmatpush1.msra.mxu0 %v1750
    %1922 = vmatprep.subr.mxu0 0.0
    %1923 = vmatpush1.msra.mxu0 %v1751
    %1924 = vmatprep.subr.mxu0 0.0
    %1925 = vmatpush1.msra.mxu0 %v1752
    %1926 = vmatprep.subr.mxu0 0.0
    %1927 = vmatpush1.msra.mxu0 %v1753
    %1928 = vmatprep.subr.mxu0 0.0
    %1929 = vmatpush1.msra.mxu0 %v1754
    %1930 = vmatprep.subr.mxu0 0.0
    %1931 = vmatpush1.msra.mxu0 %v1755
    %1932 = vmatprep.subr.mxu0 0.0
    %1933 = vmatpush1.msra.mxu0 %v1756
    %1934 = vmatprep.subr.mxu0 0.0
    %1935 = vmatpush1.msra.mxu0 %v1757
    %1936 = vmatprep.subr.mxu0 0.0
    %1937 = vmatpush1.msra.mxu0 %v1758
    %1938 = vmatprep.subr.mxu0 0.0
    %1939 = vmatpush1.msra.mxu0 %v1759
    %1940 = vmatprep.subr.mxu0 0.0
    %1941 = vmatpush1.msra.mxu0 %v1760
    %1942 = vmatprep.subr.mxu0 0.0
    %1943 = vmatpush1.msra.mxu0 %v1761
    %1944 = vmatprep.subr.mxu0 0.0
    %1945 = vmatpush1.msra.mxu0 %v1762
    %1946 = vmatprep.mubr.f32.mxu0 %v1723
    %1947 = vmatmul.mubr.f32.gmra.mrb[0].mxu0 %v1722
    %v1948 = vpop.f32.mrb[0].mxu0
    %v1949 = vadd.f32 %v1880, %v1948
    %v1950 = vpop.f32.mrb[0].mxu0
    %1951 = vdwg.mxu0
    %1952 = vmatprep.subr.mxu0 0.0
    %1953 = vmatpush1.msra.mxu0 %v1763
    %1954 = vmatprep.subr.mxu0 0.0
    %1955 = vmatpush1.msra.mxu0 %v1764
    %1956 = vmatprep.subr.mxu0 0.0
    %1957 = vmatpush1.msra.mxu0 %v1765
    %1958 = vmatprep.subr.mxu0 0.0
    %1959 = vmatpush1.msra.mxu0 %v1766
    %1960 = vmatprep.subr.mxu0 0.0
    %1961 = vmatpush1.msra.mxu0 %v1767
    %1962 = vmatprep.subr.mxu0 0.0
    %1963 = vmatpush1.msra.mxu0 %v1768
    %1964 = vmatprep.subr.mxu0 0.0
    %1965 = vmatpush1.msra.mxu0 %v1769
    %1966 = vmatprep.subr.mxu0 0.0
    %1967 = vmatpush1.msra.mxu0 %v1770
    %1968 = vmatprep.subr.mxu0 0.0
    %1969 = vmatpush1.msra.mxu0 %v1771
    %1970 = vmatprep.subr.mxu0 0.0
    %1971 = vmatpush1.msra.mxu0 %v1772
    %1972 = vmatprep.subr.mxu0 0.0
    %1973 = vmatpush1.msra.mxu0 %v1773
    %1974 = vmatprep.subr.mxu0 0.0
    %1975 = vmatpush1.msra.mxu0 %v1774
    %1976 = vmatprep.subr.mxu0 0.0
    %1977 = vmatpush1.msra.mxu0 %v1775
    %1978 = vmatprep.subr.mxu0 0.0
    %1979 = vmatpush1.msra.mxu0 %v1776
    %1980 = vmatprep.subr.mxu0 0.0
    %1981 = vmatpush1.msra.mxu0 %v1777
    %1982 = vmatprep.subr.mxu0 0.0
    %1983 = vmatpush1.msra.mxu0 %v1778
    %1984 = vmatprep.subr.mxu0 0.0
    %1985 = vmatpush1.msra.mxu0 %v1779
    %1986 = vmatprep.subr.mxu0 0.0
    %1987 = vmatpush1.msra.mxu0 %v1780
    %1988 = vmatprep.subr.mxu0 0.0
    %1989 = vmatpush1.msra.mxu0 %v1781
    %1990 = vmatprep.subr.mxu0 0.0
    %1991 = vmatpush1.msra.mxu0 %v1782
    %1992 = vmatprep.subr.mxu0 0.0
    %1993 = vmatpush1.msra.mxu0 %v1783
    %1994 = vmatprep.subr.mxu0 0.0
    %1995 = vmatpush1.msra.mxu0 %v1784
    %1996 = vmatprep.subr.mxu0 0.0
    %1997 = vmatpush1.msra.mxu0 %v1785
    %1998 = vmatprep.subr.mxu0 0.0
    %1999 = vmatpush1.msra.mxu0 %v1786
    %2000 = vmatprep.subr.mxu0 0.0
    %2001 = vmatpush1.msra.mxu0 %v1787
    %2002 = vmatprep.subr.mxu0 0.0
    %2003 = vmatpush1.msra.mxu0 %v1788
    %2004 = vmatprep.subr.mxu0 0.0
    %2005 = vmatpush1.msra.mxu0 %v1789
    %2006 = vmatprep.subr.mxu0 0.0
    %2007 = vmatpush1.msra.mxu0 %v1790
    %2008 = vmatprep.subr.mxu0 0.0
    %2009 = vmatpush1.msra.mxu0 %v1791
    %2010 = vmatprep.subr.mxu0 0.0
    %2011 = vmatpush1.msra.mxu0 %v1792
    %2012 = vmatprep.subr.mxu0 0.0
    %2013 = vmatpush1.msra.mxu0 %v1793
    %2014 = vmatprep.subr.mxu0 0.0
    %2015 = vmatpush1.msra.mxu0 %v1794
    %2016 = vmatprep.mubr.f32.mxu0 %v1725
    %2017 = vmatmul.mubr.f32.gmra.mrb[0].mxu0 %v1724
    %v2018 = vpop.f32.mrb[0].mxu0
    %v2019 = vadd.f32 %v1949, %v2018
    %v2020 = vpop.f32.mrb[0].mxu0
    %2021 = vdwg.mxu0
    %2022 = vmatprep.subr.mxu0 0.0
    %2023 = vmatpush1.msra.mxu0 %v1795
    %2024 = vmatprep.subr.mxu0 0.0
    %2025 = vmatpush1.msra.mxu0 %v1796
    %2026 = vmatprep.subr.mxu0 0.0
    %2027 = vmatpush1.msra.mxu0 %v1797
    %2028 = vmatprep.subr.mxu0 0.0
    %2029 = vmatpush1.msra.mxu0 %v1798
    %2030 = vmatprep.subr.mxu0 0.0
    %2031 = vmatpush1.msra.mxu0 %v1799
    %2032 = vmatprep.subr.mxu0 0.0
    %2033 = vmatpush1.msra.mxu0 %v1800
    %2034 = vmatprep.subr.mxu0 0.0
    %2035 = vmatpush1.msra.mxu0 %v1801
    %2036 = vmatprep.subr.mxu0 0.0
    %2037 = vmatpush1.msra.mxu0 %v1802
    %2038 = vmatprep.subr.mxu0 0.0
    %2039 = vmatpush1.msra.mxu0 %v1803
    %2040 = vmatprep.subr.mxu0 0.0
    %2041 = vmatpush1.msra.mxu0 %v1804
    %2042 = vmatprep.subr.mxu0 0.0
    %2043 = vmatpush1.msra.mxu0 %v1805
    %2044 = vmatprep.subr.mxu0 0.0
    %2045 = vmatpush1.msra.mxu0 %v1806
    %2046 = vmatprep.subr.mxu0 0.0
    %2047 = vmatpush1.msra.mxu0 %v1807
    %2048 = vmatprep.subr.mxu0 0.0
    %2049 = vmatpush1.msra.mxu0 %v1808
    %2050 = vmatprep.subr.mxu0 0.0
    %2051 = vmatpush1.msra.mxu0 %v1809
    %2052 = vmatprep.subr.mxu0 0.0
    %2053 = vmatpush1.msra.mxu0 %v1810
    %2054 = vmatprep.subr.mxu0 0.0
    %2055 = vmatpush1.msra.mxu0 %v1811
    %2056 = vmatprep.subr.mxu0 0.0
    %2057 = vmatpush1.msra.mxu0 %v1812
    %2058 = vmatprep.subr.mxu0 0.0
    %2059 = vmatpush1.msra.mxu0 %v1813
    %2060 = vmatprep.subr.mxu0 0.0
    %2061 = vmatpush1.msra.mxu0 %v1814
    %2062 = vmatprep.subr.mxu0 0.0
    %2063 = vmatpush1.msra.mxu0 %v1815
    %2064 = vmatprep.subr.mxu0 0.0
    %2065 = vmatpush1.msra.mxu0 %v1816
    %2066 = vmatprep.subr.mxu0 0.0
    %2067 = vmatpush1.msra.mxu0 %v1817
    %2068 = vmatprep.subr.mxu0 0.0
    %2069 = vmatpush1.msra.mxu0 %v1818
    %2070 = vmatprep.subr.mxu0 0.0
    %2071 = vmatpush1.msra.mxu0 %v1819
    %2072 = vmatprep.subr.mxu0 0.0
    %2073 = vmatpush1.msra.mxu0 %v1820
    %2074 = vmatprep.subr.mxu0 0.0
    %2075 = vmatpush1.msra.mxu0 %v1821
    %2076 = vmatprep.subr.mxu0 0.0
    %2077 = vmatpush1.msra.mxu0 %v1822
    %2078 = vmatprep.subr.mxu0 0.0
    %2079 = vmatpush1.msra.mxu0 %v1823
    %2080 = vmatprep.subr.mxu0 0.0
    %2081 = vmatpush1.msra.mxu0 %v1824
    %2082 = vmatprep.subr.mxu0 0.0
    %2083 = vmatpush1.msra.mxu0 %v1825
    %2084 = vmatprep.subr.mxu0 0.0
    %2085 = vmatpush1.msra.mxu0 %v1826
    %2086 = vmatprep.mubr.f32.mxu0 %v1727
    %2087 = vmatmul.mubr.f32.gmra.mrb[0].mxu0 %v1726
    %v2088 = vpop.f32.mrb[0].mxu0
    %v2089 = vadd.f32 %v2019, %v2088
    %v2090 = vpop.f32.mrb[0].mxu0
    %2091 = vdwg.mxu0
    %2092 = vmatprep.subr.mxu0 0.0
    %2093 = vmatpush1.msra.mxu0 %v1827
    %2094 = vmatprep.subr.mxu0 0.0
    %2095 = vmatpush1.msra.mxu0 %v1828
    %2096 = vmatprep.subr.mxu0 0.0
    %2097 = vmatpush1.msra.mxu0 %v1829
    %2098 = vmatprep.subr.mxu0 0.0
    %2099 = vmatpush1.msra.mxu0 %v1830
    %2100 = vmatprep.subr.mxu0 0.0
    %2101 = vmatpush1.msra.mxu0 %v1831
    %2102 = vmatprep.subr.mxu0 0.0
    %2103 = vmatpush1.msra.mxu0 %v1832
    %2104 = vmatprep.subr.mxu0 0.0
    %2105 = vmatpush1.msra.mxu0 %v1833
    %2106 = vmatprep.subr.mxu0 0.0
    %2107 = vmatpush1.msra.mxu0 %v1834
    %2108 = vmatprep.subr.mxu0 0.0
    %2109 = vmatpush1.msra.mxu0 %v1835
    %2110 = vmatprep.subr.mxu0 0.0
    %2111 = vmatpush1.msra.mxu0 %v1836
    %2112 = vmatprep.subr.mxu0 0.0
    %2113 = vmatpush1.msra.mxu0 %v1837
    %2114 = vmatprep.subr.mxu0 0.0
    %2115 = vmatpush1.msra.mxu0 %v1838
    %2116 = vmatprep.subr.mxu0 0.0
    %2117 = vmatpush1.msra.mxu0 %v1839
    %2118 = vmatprep.subr.mxu0 0.0
    %2119 = vmatpush1.msra.mxu0 %v1840
    %2120 = vmatprep.subr.mxu0 0.0
    %2121 = vmatpush1.msra.mxu0 %v1841
    %2122 = vmatprep.subr.mxu0 0.0
    %2123 = vmatpush1.msra.mxu0 %v1842
    %2124 = vmatprep.subr.mxu0 0.0
    %2125 = vmatpush1.msra.mxu0 %v1843
    %2126 = vmatprep.subr.mxu0 0.0
    %2127 = vmatpush1.msra.mxu0 %v1844
    %2128 = vmatprep.subr.mxu0 0.0
    %2129 = vmatpush1.msra.mxu0 %v1845
    %2130 = vmatprep.subr.mxu0 0.0
    %2131 = vmatpush1.msra.mxu0 %v1846
    %2132 = vmatprep.subr.mxu0 0.0
    %2133 = vmatpush1.msra.mxu0 %v1847
    %2134 = vmatprep.subr.mxu0 0.0
    %2135 = vmatpush1.msra.mxu0 %v1848
    %2136 = vmatprep.subr.mxu0 0.0
    %2137 = vmatpush1.msra.mxu0 %v1849
    %2138 = vmatprep.subr.mxu0 0.0
    %2139 = vmatpush1.msra.mxu0 %v1850
    %2140 = vmatprep.subr.mxu0 0.0
    %2141 = vmatpush1.msra.mxu0 %v1851
    %2142 = vmatprep.subr.mxu0 0.0
    %2143 = vmatpush1.msra.mxu0 %v1852
    %2144 = vmatprep.subr.mxu0 0.0
    %2145 = vmatpush1.msra.mxu0 %v1853
    %2146 = vmatprep.subr.mxu0 0.0
    %2147 = vmatpush1.msra.mxu0 %v1854
    %2148 = vmatprep.subr.mxu0 0.0
    %2149 = vmatpush1.msra.mxu0 %v1855
    %2150 = vmatprep.subr.mxu0 0.0
    %2151 = vmatpush1.msra.mxu0 %v1856
    %2152 = vmatprep.subr.mxu0 0.0
    %2153 = vmatpush1.msra.mxu0 %v1857
    %2154 = vmatprep.subr.mxu0 0.0
    %2155 = vmatpush1.msra.mxu0 %v1858
    %2156 = vmatprep.mubr.f32.mxu0 %v1729
    %2157 = vmatmul.mubr.f32.gmra.mrb[0].mxu0 %v1728
    %v2158 = vpop.f32.mrb[0].mxu0
    %v2159 = vadd.f32 %v2089, %v2158
    %v2160 = vpop.f32.mrb[0].mxu0
    %2161 = vdwg.mxu0
    %2162 = vmatprep.subr.mxu0 0.0
    %2163 = vmatpush1.msra.mxu0 %v1859
    %2164 = vmatprep.subr.mxu0 0.0
    %2165 = vmatpush1.msra.mxu0 %v1860
    %2166 = vmatprep.subr.mxu0 0.0
    %2167 = vmatpush1.msra.mxu0 %v1861
    %2168 = vmatprep.subr.mxu0 0.0
    %2169 = vmatpush1.msra.mxu0 %v1862
    %2170 = vmatprep.subr.mxu0 0.0
    %2171 = vmatpush1.msra.mxu0 %v1863
    %2172 = vmatprep.subr.mxu0 0.0
    %2173 = vmatpush1.msra.mxu0 %v1864
    %2174 = vmatprep.subr.mxu0 0.0
    %2175 = vmatpush1.msra.mxu0 %v1865
    %2176 = vmatprep.subr.mxu0 0.0
    %2177 = vmatpush1.msra.mxu0 %v1866
    %2178 = vmatprep.subr.mxu0 0.0
    %2179 = vmatpush1.msra.mxu0 %v1867
    %2180 = vmatprep.subr.mxu0 0.0
    %2181 = vmatpush1.msra.mxu0 %v1868
    %2182 = vmatprep.subr.mxu0 0.0
    %2183 = vmatpush1.msra.mxu0 %v1869
    %2184 = vmatprep.subr.mxu0 0.0
    %2185 = vmatpush1.msra.mxu0 %v1870
    %2186 = vmatprep.subr.mxu0 0.0
    %2187 = vmatpush1.msra.mxu0 %v1871
    %2188 = vmatprep.subr.mxu0 0.0
    %2189 = vmatpush1.msra.mxu0 %v1872
    %2190 = vmatprep.subr.mxu0 0.0
    %2191 = vmatpush1.msra.mxu0 %v1873
    %2192 = vmatprep.subr.mxu0 0.0
    %2193 = vmatpush1.msra.mxu0 %v1874
    %2194 = vmatprep.subr.mxu0 0.0
    %2195 = vmatpush1.msra.mxu0 0.0
    %2196 = vmatprep.subr.mxu0 0.0
    %2197 = vmatpush1.msra.mxu0 0.0
    %2198 = vmatprep.subr.mxu0 0.0
    %2199 = vmatpush1.msra.mxu0 0.0
    %2200 = vmatprep.subr.mxu0 0.0
    %2201 = vmatpush1.msra.mxu0 0.0
    %2202 = vmatprep.subr.mxu0 0.0
    %2203 = vmatpush1.msra.mxu0 0.0
    %2204 = vmatprep.subr.mxu0 0.0
    %2205 = vmatpush1.msra.mxu0 0.0
    %2206 = vmatprep.subr.mxu0 0.0
    %2207 = vmatpush1.msra.mxu0 0.0
    %2208 = vmatprep.subr.mxu0 0.0
    %2209 = vmatpush1.msra.mxu0 0.0
    %2210 = vmatprep.subr.mxu0 0.0
    %2211 = vmatpush1.msra.mxu0 0.0
    %2212 = vmatprep.subr.mxu0 0.0
    %2213 = vmatpush1.msra.mxu0 0.0
    %2214 = vmatprep.subr.mxu0 0.0
    %2215 = vmatpush1.msra.mxu0 0.0
    %2216 = vmatprep.subr.mxu0 0.0
    %2217 = vmatpush1.msra.mxu0 0.0
    %2218 = vmatprep.subr.mxu0 0.0
    %2219 = vmatpush1.msra.mxu0 0.0
    %2220 = vmatprep.subr.mxu0 0.0
    %2221 = vmatpush1.msra.mxu0 0.0
    %2222 = vmatprep.subr.mxu0 0.0
    %2223 = vmatpush1.msra.mxu0 0.0
    %2224 = vmatprep.subr.mxu0 0.0
    %2225 = vmatpush1.msra.mxu0 0.0
    %2226 = vmatprep.mubr.f32.mxu0 0.0
    %2227 = vmatmul.mubr.f32.gmra.mrb[0].mxu0 %v1730
    %v2228 = vpop.f32.mrb[0].mxu0
    %v2229 = vadd.f32 %v2159, %v2228
    %v2230 = vpop.f32.mrb[0].mxu0
    %2231 = vdwg.mxu0
    %v2232 = vmul.f32 %v2229, 0.2
    %v2233 = vmax.f32 %v2229, %v2232
    %v2235 = vcombine.high %v2233, %v2233
    %2237 = vst [vmem:[#allocation15] sm:$0xf] %v2233
    %2238 = vst [vmem:[#allocation15 + $0x4] sm:$0xf] %v2235
    %v2239 = vld [vmem:[%s11] sm:$0xf]
    %v2240 = vmul.f32 %v2233, %v2239
    %v2241 = vmul.f32 %v2235, %v2239
    %vm2242 = vcmask 1043456
    %v2243 = vsel %vm2242, %v2240, 0.0
    %2244 = vadd.xlane.f32.xlu0 %v2243
    %v2245 = vpop.xlane.xlu0 %2244
    %v2246 = vsel %vm2242, %v2241, 0.0
    %2247 = vadd.xlane.f32.xlu0 %v2246
    %v2248 = vpop.xlane.xlu0 %2247
    %v2251 = vlaneseq
    %v2252 = vand.u32 %v2251, 127
    %v2253 = vlaneseq
    %v2254 = vshrl.u32 %v2253, 7
    %v2255 = vsub.s32 %v2252, %v2254
    %v2256 = vrot.slane %v2245, %v2255
    %v2257 = vlaneseq
    %v2258 = vshrl.u32 %v2257, 7
    %v2259 = vsub.s32 %v2252, %v2258
    %v2260 = vrot.slane %v2248, %v2259
    %vm2261 = vcmask 1041409
    %v2262 = vsel %vm2261, %v2260, %v2256
    %vm2264 = vcmask 25600
    %v2265 = vsel %vm2264, %v2262, 0.0
    %2266 = vadd.xlane.f32.xlu0 %v2265
    %v2267 = vpop.xlane.xlu0 %2266
    %v2268 = vld [vmem:[#allocation6] sm:$0x1]
    %v2270 = vlaneseq
    %v2271 = vshrl.u32 %v2270, 7
    %v2272 = vsub.s32 0, %v2271
    %v2273 = vrot.slane %v2268, %v2272
    %v2275 = vadd.f32 %v2267, %v2273
    %vm2276 = vcmask 1024
    %2277 = vst.msk [vmem:[%s16] sm:$0x3] %vm2276, %v2275
    // Predicated region
    $region62: #{tpu_custom_call.1} parent=1 // pred_check
      _
    $region63: #{tpu_custom_call.1} parent=1 // pred_check_branch
      %2279 = sbr.rel (0) target = $region65
    $region64: #{tpu_custom_call.1} parent=1 // pred_region
      %s2281 = ssub.s32 2048, 2048
      %2282 = vsyncadd [#allocation9], %s2281
      %s2283 = sshll.u32 [#allocation12], 4
      %s2284 = int_to_ptr.vmem [resolvable:$true] %s2283
      %2289 = dma.vmem_to_hbm [thread:$0]  %s2284, 2048, %s13, [#allocation9], 128, 128, 8
    $region65: #{tpu_custom_call.1} parent=1 // pred_fallthru
      _
    // Predicated region
    $region66: #{tpu_custom_call.1} parent=1 // pred_check
      _
    $region67: #{tpu_custom_call.1} parent=1 // pred_check_branch
      %2291 = sbr.rel (0) target = $region69
    $region68: #{tpu_custom_call.1} parent=1 // pred_region
      %s2293 = ssub.s32 512, 512
      %2294 = vsyncadd [#allocation14], %s2293
      %s2295 = sshll.u32 [#allocation13], 4
      %s2296 = int_to_ptr.vmem [resolvable:$true] %s2295
      %2301 = dma.vmem_to_hbm [thread:$0]  %s2296, 512, %s14, [#allocation14], 128, 128, 8
    $region69: #{tpu_custom_call.1} parent=1 // pred_fallthru
      _
    // Predicated region
    $region70: #{tpu_custom_call.1} parent=1 // pred_check
      _
    $region71: #{tpu_custom_call.1} parent=1 // pred_check_branch
      %2303 = sbr.rel (0) target = $region73
    $region72: #{tpu_custom_call.1} parent=1 // pred_region
      %s2305 = ssub.s32 128, 128
      %2306 = vsyncadd [#allocation14], %s2305
      %s2307 = sshll.u32 [#allocation15], 4
      %s2308 = int_to_ptr.vmem [resolvable:$true] %s2307
      %2313 = dma.vmem_to_hbm [thread:$0]  %s2308, 128, %s15, [#allocation14], 64, 64, 4
    $region73: #{tpu_custom_call.1} parent=1 // pred_fallthru
      _
    // Predicated region
    $region74: #{tpu_custom_call.1} parent=1 // pred_check
      _
    $region75: #{tpu_custom_call.1} parent=1 // pred_check_branch
      %2315 = sbr.rel (0) target = $region77
    $region76: #{tpu_custom_call.1} parent=1 // pred_region
      _
    $region77: #{tpu_custom_call.1} parent=1 // pred_fallthru
      _
    // Predicated region
    $region78: #{tpu_custom_call.1} parent=1 // pred_check
      _
    $region79: #{tpu_custom_call.1} parent=1 // pred_check_branch
      %2317 = sbr.rel (0) target = $region81
    $region80: #{tpu_custom_call.1} parent=1 // pred_region
      %2318 = dma.done [#allocation9], 2048
    $region81: #{tpu_custom_call.1} parent=1 // pred_fallthru
      _
    // Predicated region
    $region82: #{tpu_custom_call.1} parent=1 // pred_check
      _
    $region83: #{tpu_custom_call.1} parent=1 // pred_check_branch
      %2320 = sbr.rel (0) target = $region85
    $region84: #{tpu_custom_call.1} parent=1 // pred_region
      %2321 = dma.done [#allocation14], 512
    $region85: #{tpu_custom_call.1} parent=1 // pred_fallthru
      _
    // Predicated region
    $region86: #{tpu_custom_call.1} parent=1 // pred_check
      _
    $region87: #{tpu_custom_call.1} parent=1 // pred_check_branch
      %2323 = sbr.rel (0) target = $region89
    $region88: #{tpu_custom_call.1} parent=1 // pred_region
      %2324 = dma.done [#allocation14], 128
    $region89: #{tpu_custom_call.1} parent=1 // pred_fallthru
      _
    // Predicated region
    $region90: #{tpu_custom_call.1} parent=1 // pred_check
      _
    $region91: #{tpu_custom_call.1} parent=1 // pred_check_branch
      %2326 = sbr.rel (0) target = $region93
    $region92: #{tpu_custom_call.1} parent=1 // pred_region
      _
    $region93: #{tpu_custom_call.1} parent=1 // pred_fallthru
      _
    %2327 = vsyncpa [#allocation8], 1
    %2328 = vsyncpa [#allocation11], 1
    %2329 = vsyncpa [#allocation9], 1
    %2330 = vsyncpa [#allocation14], 1

</llo_original>
